<compile_context>
chip_gen: v6e
topology: v6e:2x2x1
jax: 0.10.0
libtpu: 0.0.40
codegen_flags: <defaults>
</compile_context>

<pallas_src>
import functools

import jax
import jax.numpy as jnp
from jax.experimental import pallas as pl
from jax.experimental.pallas import tpu as pltpu


def _round_up(x, m):
    return (x + m - 1) // m * m


# ----------------------------- Pallas kernels -----------------------------

def _matmul_bias_act_kernel(a_ref, b_ref, bias_ref, o_ref, *, sigmoid_start):
    """out = a @ b + bias, with sigmoid applied to output columns >= sigmoid_start."""
    y = jnp.dot(a_ref[...], b_ref[...], preferred_element_type=jnp.float32)
    y = y + bias_ref[...]
    if sigmoid_start is not None:
        col = jax.lax.broadcasted_iota(jnp.int32, y.shape, 1)
        sig = 1.0 / (1.0 + jnp.exp(-y))
        y = jnp.where(col >= sigmoid_start, sig, y)
    o_ref[...] = y


def pallas_matmul_bias(a, b, bias, *, sigmoid_start=None):
    """(M,K) @ (K,N) + bias with fused epilogue.

    Operands are cast to bf16 (MXU-native on v6e/v7x), accumulation stays f32.
    M is tiled with the largest block <= 256 that divides M (so the parallel
    grid axis has >= 2 steps at M = 512, feeding both v7x TensorCores); no
    pad/slice wrappers are needed for the shapes used here.
    """
    M, K = a.shape
    K2, N = b.shape
    assert K == K2
    a = a.astype(jnp.bfloat16)
    b = b.astype(jnp.bfloat16)
    bias = bias.reshape(1, N).astype(jnp.float32)

    Mp = _round_up(M, 8)
    if Mp != M:
        a = jnp.pad(a, ((0, Mp - M), (0, 0)))
    tm = 8
    for cand in (256, 128, 64, 32, 16, 8):
        if Mp % cand == 0:
            tm = cand
            break

    kernel = functools.partial(_matmul_bias_act_kernel,
                               sigmoid_start=sigmoid_start)
    out = pl.pallas_call(
        kernel,
        out_shape=jax.ShapeDtypeStruct((Mp, N), jnp.float32),
        grid=(Mp // tm,),
        in_specs=[
            pl.BlockSpec((tm, K), lambda i: (i, 0)),
            pl.BlockSpec((K, N), lambda i: (0, 0)),
            pl.BlockSpec((1, N), lambda i: (0, 0)),
        ],
        out_specs=pl.BlockSpec((tm, N), lambda i: (i, 0)),
        compiler_params=pltpu.CompilerParams(
            dimension_semantics=("parallel",)),
    )(a, b, bias)
    return out[:M] if Mp != M else out


# ------------------------------- glue (JAX) -------------------------------

def _im2col(x_nhwc, kh, kw, stride, padding, dilation):
    """Regular-conv im2col (tap-major, channel-minor columns)."""
    N, H, W, C = x_nhwc.shape
    Ho = (H + 2 * padding - dilation * (kh - 1) - 1) // stride + 1
    Wo = (W + 2 * padding - dilation * (kw - 1) - 1) // stride + 1
    xp = jnp.pad(x_nhwc, ((0, 0), (padding, padding), (padding, padding), (0, 0)))
    cols = []
    for i in range(kh):
        for j in range(kw):
            h0 = i * dilation
            w0 = j * dilation
            cols.append(xp[:, h0:h0 + (Ho - 1) * stride + 1:stride,
                           w0:w0 + (Wo - 1) * stride + 1:stride, :])
    cols = jnp.concatenate(cols, axis=-1)               # (N, Ho, Wo, kh*kw*C)
    return cols.reshape(N * Ho * Wo, kh * kw * C), (N, Ho, Wo)


def _deform_sample(x_nhwc, off_y, off_x, mask, stride, padding, dilation, kh, kw):
    """Modulated deformable bilinear sampling (DCNv2 semantics).

    Returns (N, Ho, Wo, T, C) with T = kh*kw, already multiplied by mask and
    zeroed outside the valid image window, matching the mmcv CUDA kernel.
    """
    # TODO(synk): this data-dependent gather stays in plain JAX; expressing it
    # in Pallas would need a manual per-row DMA gather kernel.
    N, H, W, C = x_nhwc.shape
    _, Ho, Wo, T = off_y.shape

    dh = jnp.repeat(jnp.arange(kh, dtype=jnp.float32) * dilation, kw)   # (T,)
    dw = jnp.tile(jnp.arange(kw, dtype=jnp.float32) * dilation, kh)     # (T,)
    base_h = jnp.arange(Ho, dtype=jnp.float32) * stride - padding
    base_w = jnp.arange(Wo, dtype=jnp.float32) * stride - padding

    h_im = base_h[None, :, None, None] + dh[None, None, None, :] + off_y
    w_im = base_w[None, None, :, None] + dw[None, None, None, :] + off_x

    h0 = jnp.floor(h_im)
    w0 = jnp.floor(w_im)
    lh = h_im - h0
    lw = w_im - w0
    hh = 1.0 - lh
    hw = 1.0 - lw
    h0i = h0.astype(jnp.int32)
    w0i = w0.astype(jnp.int32)
    h1i = h0i + 1
    w1i = w0i + 1

    x_flat = x_nhwc.reshape(N, H * W, C)

    def corner(hi, wi):
        ok = (hi >= 0) & (hi < H) & (wi >= 0) & (wi < W)
        idx = jnp.clip(hi, 0, H - 1) * W + jnp.clip(wi, 0, W - 1)
        g = jax.vmap(lambda xn, idxn: jnp.take(xn, idxn, axis=0))(x_flat, idx)
        return g * ok[..., None].astype(x_nhwc.dtype)

    v = ((hh * hw)[..., None] * corner(h0i, w0i)
         + (hh * lw)[..., None] * corner(h0i, w1i)
         + (lh * hw)[..., None] * corner(h1i, w0i)
         + (lh * lw)[..., None] * corner(h1i, w1i))

    valid = (h_im > -1) & (w_im > -1) & (h_im < H) & (w_im < W)
    v = v * (valid.astype(v.dtype) * mask)[..., None]
    return v


# ------------------------------ DCN forward -------------------------------

def dcn_layer_forward(params, input_keyt_nchw, inter_nchw, *,
                      kernel_size=3, stride=1, padding=1, dilation=1,
                      groups=1, deformable_groups=1):
    assert groups == 1 and deformable_groups == 1  # TODO(synk): grouped variants
    kh = kw = kernel_size
    T = kh * kw

    x = jnp.transpose(input_keyt_nchw, (0, 2, 3, 1))       # NHWC
    inter = jnp.transpose(inter_nchw, (0, 2, 3, 1))
    xin = jnp.concatenate([x, inter], axis=-1)              # (N, H, W, 2*Cin)

    # --- conv_offset_mask: im2col + Pallas matmul, bias + sigmoid(mask) fused ---
    cols, (N, Ho, Wo) = _im2col(xin, kh, kw, stride, padding, dilation)
    w_off = params['offset_w']                              # (3T, 2Cin, kh, kw)
    w_off_mat = jnp.transpose(w_off, (2, 3, 1, 0)).reshape(-1, 3 * T)
    omc = pallas_matmul_bias(cols, w_off_mat, params['offset_b'],
                             sigmoid_start=2 * T)
    omc = omc.reshape(N, Ho, Wo, 3 * T)

    # offset = cat(o1, o2); CUDA kernel reads dy from channel 2t, dx from 2t+1
    off_y = omc[..., 0:2 * T:2]
    off_x = omc[..., 1:2 * T:2]
    mask = omc[..., 2 * T:]                                 # sigmoid done in-kernel

    # --- modulated deformable sampling + main conv as Pallas matmul ---
    v = _deform_sample(x, off_y, off_x, mask, stride, padding, dilation, kh, kw)
    Cin = x.shape[-1]
    v2d = v.reshape(N * Ho * Wo, T * Cin)                   # tap-major columns

    w = params['weight']                                    # (Cout, Cin, kh, kw)
    Cout = w.shape[0]
    w_mat = jnp.transpose(w, (2, 3, 1, 0)).reshape(T * Cin, Cout)  # tap-major rows
    out2d = pallas_matmul_bias(v2d, w_mat, params['bias'])
    out = out2d.reshape(N, Ho, Wo, Cout)
    return jnp.transpose(out, (0, 3, 1, 2))                 # back to NCHW


# --------------------------- deterministic init ---------------------------

def init_params(key, in_channels, out_channels, kernel_size, deformable_groups):
    kh = kw = kernel_size
    k1, k2, k3, k4 = jax.random.split(key, 4)
    off_ch = deformable_groups * 3 * kh * kw
    fan_w = in_channels * kh * kw
    fan_o = 2 * in_channels * kh * kw
    return {
        'weight': jax.random.normal(
            k1, (out_channels, in_channels, kh, kw), jnp.float32)
            / jnp.sqrt(float(fan_w)),
        'bias': jax.random.normal(k2, (out_channels,), jnp.float32) * 0.01,
        'offset_w': jax.random.normal(
            k3, (off_ch, 2 * in_channels, kh, kw), jnp.float32)
            * (0.1 / jnp.sqrt(float(fan_o))),
        'offset_b': jax.random.normal(k4, (off_ch,), jnp.float32) * 0.01,
    }


if __name__ == "__main__":
    rng = jax.random.PRNGKey(0)
    kx, ki, kp = jax.random.split(rng, 3)

    B, C, H, W = 2, 64, 16, 16          # DCN_layer(64, 64, 3, padding=1)
    Cout = 64
    input_keyt = jax.random.normal(kx, (B, C, H, W), jnp.float32)
    inter = jax.random.normal(ki, (B, C, H, W), jnp.float32)
    params = init_params(kp, C, Cout, kernel_size=3, deformable_groups=1)

    fwd = jax.jit(functools.partial(
        dcn_layer_forward, kernel_size=3, stride=1, padding=1, dilation=1,
        groups=1, deformable_groups=1))

    out = fwd(params, input_keyt, inter)
    jax.block_until_ready(out)
    assert out.shape == (B, Cout, H, W)
    print("KERNEL_OK")
</pallas_src>

<mosaic_0001>
module attributes {stable_mosaic.version = 11 : i64} {
  func.func @_matmul_bias_act_kernel(%arg0: i32, %arg1: memref<256x1152xbf16, #tpu.memory_space<vmem>>, %arg2: memref<1152x27xbf16, #tpu.memory_space<vmem>>, %arg3: memref<1x27xf32, #tpu.memory_space<vmem>>, %arg4: memref<256x27xf32, #tpu.memory_space<vmem>>) attributes {dimension_semantics = [#tpu.dimension_semantics<parallel>], iteration_bounds = array<i64: 2>, scalar_prefetch = 0 : i64, scratch_operands = 0 : i64, tpu.core_type = #tpu.core_type<tc>, window_params = [{transform_indices = @transform_0, window_bounds = array<i64: 256, 1152>}, {pipeline_mode = #tpu.pipeline_mode<synchronous>, transform_indices = @transform_1, window_bounds = array<i64: 1152, 27>}, {pipeline_mode = #tpu.pipeline_mode<synchronous>, transform_indices = @transform_2, window_bounds = array<i64: 1, 27>}, {transform_indices = @transform_3, window_bounds = array<i64: 256, 27>}]} {
    %c0 = arith.constant 0 : index
    %c0_0 = arith.constant 0 : index
    %0 = vector.load %arg1[%c0, %c0_0] : memref<256x1152xbf16, #tpu.memory_space<vmem>>, vector<256x1152xbf16>
    %c0_1 = arith.constant 0 : index
    %c0_2 = arith.constant 0 : index
    %1 = vector.load %arg2[%c0_1, %c0_2] : memref<1152x27xbf16, #tpu.memory_space<vmem>>, vector<1152x27xbf16>
    %cst = arith.constant dense<0.000000e+00> : vector<256x27xf32>
    %2 = tpu.matmul %0, %1, %cst {dimension_numbers = #tpu.dot_dimension_numbers<[1], [0], [0], [1], [0, 0, 1, 1], [], []>} : vector<256x1152xbf16>, vector<1152x27xbf16>, vector<256x27xf32> -> vector<256x27xf32>
    %c0_3 = arith.constant 0 : index
    %c0_4 = arith.constant 0 : index
    %3 = vector.load %arg3[%c0_3, %c0_4] : memref<1x27xf32, #tpu.memory_space<vmem>>, vector<1x27xf32>
    %4 = vector.broadcast %3 : vector<1x27xf32> to vector<256x27xf32>
    %5 = arith.addf %2, %4 : vector<256x27xf32>
    %6 = tpu.iota {dimensions = array<i32: 1>} : vector<256x27xi32>
    %cst_5 = arith.constant 0.000000e+00 : f32
    %7 = vector.broadcast %cst_5 : f32 to vector<256x27xf32>
    %8 = arith.subf %7, %5 : vector<256x27xf32>
    %9 = math.exp %8 : vector<256x27xf32>
    %cst_6 = arith.constant 1.000000e+00 : f32
    %10 = vector.broadcast %cst_6 : f32 to vector<256x27xf32>
    %11 = arith.addf %10, %9 : vector<256x27xf32>
    %cst_7 = arith.constant 1.000000e+00 : f32
    %12 = vector.broadcast %cst_7 : f32 to vector<256x27xf32>
    %13 = arith.divf %12, %11 : vector<256x27xf32>
    %c18_i32 = arith.constant 18 : i32
    %14 = vector.broadcast %c18_i32 : i32 to vector<256x27xi32>
    %15 = arith.cmpi sge, %6, %14 : vector<256x27xi32>
    %16 = arith.select %15, %13, %5 : vector<256x27xi1>, vector<256x27xf32>
    %c0_8 = arith.constant 0 : index
    %c0_9 = arith.constant 0 : index
    %17 = vector.load %arg4[%c0_8, %c0_9] : memref<256x27xf32, #tpu.memory_space<vmem>>, vector<256x27xf32>
    tpu.vector_store %arg4[%c0_8, %c0_9], %16 {strides = array<i32>} : memref<256x27xf32, #tpu.memory_space<vmem>>, vector<256x27xf32>,
    return
  }
  func.func @transform_0(%arg0: i32) -> (i32, i32) {
    %c0_i32 = arith.constant 0 : i32
    %c0_i32_0 = arith.constant 0 : i32
    return %arg0, %c0_i32 : i32, i32
  }
  func.func @transform_1(%arg0: i32) -> (i32, i32) {
    %c0_i32 = arith.constant 0 : i32
    %c0_i32_0 = arith.constant 0 : i32
    %c0_i32_1 = arith.constant 0 : i32
    return %c0_i32, %c0_i32_0 : i32, i32
  }
  func.func @transform_2(%arg0: i32) -> (i32, i32) {
    %c0_i32 = arith.constant 0 : i32
    %c0_i32_0 = arith.constant 0 : i32
    %c0_i32_1 = arith.constant 0 : i32
    return %c0_i32, %c0_i32_0 : i32, i32
  }
  func.func @transform_3(%arg0: i32) -> (i32, i32) {
    %c0_i32 = arith.constant 0 : i32
    %c0_i32_0 = arith.constant 0 : i32
    return %arg0, %c0_i32 : i32, i32
  }
}

module attributes {stable_mosaic.version = 11 : i64} {
  func.func @_matmul_bias_act_kernel(%arg0: i32, %arg1: memref<256x576xbf16, #tpu.memory_space<vmem>>, %arg2: memref<576x64xbf16, #tpu.memory_space<vmem>>, %arg3: memref<1x64xf32, #tpu.memory_space<vmem>>, %arg4: memref<256x64xf32, #tpu.memory_space<vmem>>) attributes {dimension_semantics = [#tpu.dimension_semantics<parallel>], iteration_bounds = array<i64: 2>, scalar_prefetch = 0 : i64, scratch_operands = 0 : i64, tpu.core_type = #tpu.core_type<tc>, window_params = [{transform_indices = @transform_0, window_bounds = array<i64: 256, 576>}, {pipeline_mode = #tpu.pipeline_mode<synchronous>, transform_indices = @transform_1, window_bounds = array<i64: 576, 64>}, {pipeline_mode = #tpu.pipeline_mode<synchronous>, transform_indices = @transform_2, window_bounds = array<i64: 1, 64>}, {transform_indices = @transform_3, window_bounds = array<i64: 256, 64>}]} {
    %c0 = arith.constant 0 : index
    %c0_0 = arith.constant 0 : index
    %0 = vector.load %arg1[%c0, %c0_0] : memref<256x576xbf16, #tpu.memory_space<vmem>>, vector<256x576xbf16>
    %c0_1 = arith.constant 0 : index
    %c0_2 = arith.constant 0 : index
    %1 = vector.load %arg2[%c0_1, %c0_2] : memref<576x64xbf16, #tpu.memory_space<vmem>>, vector<576x64xbf16>
    %cst = arith.constant dense<0.000000e+00> : vector<256x64xf32>
    %2 = tpu.matmul %0, %1, %cst {dimension_numbers = #tpu.dot_dimension_numbers<[1], [0], [0], [1], [0, 0, 1, 1], [], []>} : vector<256x576xbf16>, vector<576x64xbf16>, vector<256x64xf32> -> vector<256x64xf32>
    %c0_3 = arith.constant 0 : index
    %c0_4 = arith.constant 0 : index
    %3 = vector.load %arg3[%c0_3, %c0_4] : memref<1x64xf32, #tpu.memory_space<vmem>>, vector<1x64xf32>
    %4 = vector.broadcast %3 : vector<1x64xf32> to vector<256x64xf32>
    %5 = arith.addf %2, %4 : vector<256x64xf32>
    %c0_5 = arith.constant 0 : index
    %c0_6 = arith.constant 0 : index
    %6 = vector.load %arg4[%c0_5, %c0_6] : memref<256x64xf32, #tpu.memory_space<vmem>>, vector<256x64xf32>
    tpu.vector_store %arg4[%c0_5, %c0_6], %5 {strides = array<i32>} : memref<256x64xf32, #tpu.memory_space<vmem>>, vector<256x64xf32>,
    return
  }
  func.func @transform_0(%arg0: i32) -> (i32, i32) {
    %c0_i32 = arith.constant 0 : i32
    %c0_i32_0 = arith.constant 0 : i32
    return %arg0, %c0_i32 : i32, i32
  }
  func.func @transform_1(%arg0: i32) -> (i32, i32) {
    %c0_i32 = arith.constant 0 : i32
    %c0_i32_0 = arith.constant 0 : i32
    %c0_i32_1 = arith.constant 0 : i32
    return %c0_i32, %c0_i32_0 : i32, i32
  }
  func.func @transform_2(%arg0: i32) -> (i32, i32) {
    %c0_i32 = arith.constant 0 : i32
    %c0_i32_0 = arith.constant 0 : i32
    %c0_i32_1 = arith.constant 0 : i32
    return %c0_i32, %c0_i32_0 : i32, i32
  }
  func.func @transform_3(%arg0: i32) -> (i32, i32) {
    %c0_i32 = arith.constant 0 : i32
    %c0_i32_0 = arith.constant 0 : i32
    return %arg0, %c0_i32 : i32, i32
  }
}

</mosaic_0001>

<llo_original>
// kernel: dcn_layer_forward.2
$region0: #{dcn_layer_forward.2}
  #allocation0 [shape = 'u32[]', space=smem, size = 0x4, offset = 0x4, fixed_abs, tag = 'smem constant byte address 0x4 - core index']
  #allocation1 [shape = 'u32[144,128]{1,0:T(1,128)}', space=vmem, size = 0x12000, scoped, tag = 'internal scratch']
  %s0 = inlined_call_operand.vmem [shape: bf16[512,1152], index: 0, kind: input, shape index: {}]
  %s1 = inlined_call_operand.vmem [shape: bf16[1152,27], index: 1, kind: input, shape index: {}]
  %s2 = inlined_call_operand.vmem [shape: f32[1,27], index: 2, kind: input, shape index: {}]
  %s3 = inlined_call_operand.vmem [shape: f32[512,27], index: 3, kind: output, shape index: {}]
  %s4 = sld [smem:[#allocation0]]
  $region45: #{dcn_layer_forward.2} parent=0
    _
  %s6 = ssub.s32 1, %s4
  %s7 = scalar_select 0, %s6, %s4
  loop: start=0, step=1, limit=4
  $region2: #{dcn_layer_forward.2} parent=0 // loop_pre_header
    _
  $region3: #{dcn_layer_forward.2} parent=0 // loop_header
    %s9 = sphi 0, %s13
    %p10 = scmp.ge.s32.totalorder %s9, 4
    %s19 = sphi 0, %s21
    %s22 = sphi 0, %s19
    %s23 = sphi 0, %s22
    %s39 = sphi 0, %s23
    %s43 = sphi 0, %s43
    %s45 = sphi 0, %s43
    %s46 = sphi 0, %s45
    %s60 = sphi 0, %s46
    %s64 = sphi 0, %s64
    %s66 = sphi 0, %s64
    %s67 = sphi 0, %s66
    %s81 = sphi 0, %s67
    %s87 = sphi 0, %s89
    %s90 = sphi 0, %s87
    %s91 = sphi 0, %s90
    %s107 = sphi 0, %s91
  $region4: #{dcn_layer_forward.2} parent=0 // loop_header_branch
    %12 = sbr.rel (%p10) target = $region8
  $region5: #{dcn_layer_forward.2} parent=0 // loop_body
    %s14 = ssub.s32 %s9, 1
    %s15 = ssub.s32 %s9, 2
    %s16 = sadd.s32 %s9, 1
    %s17 = ssub.s32 %s9, %s16
    %p18 = scmp.eq.s32.totalorder %s17, 0
    %s20 = sadd.s32 %s19, 1
    %s21 = scalar_select %p18, %s19, %s20
    %p24 = pneg %p18
    %p25 = scmp.eq.s32.totalorder %s9, 1
    %p26 = por %p24, %p25
    %p27 = scmp.ne.s32.totalorder %s19, %s22
    %p28 = scmp.eq.s32.totalorder %s9, 0
    %p29 = por %p27, %p28
    %p30 = scmp.ne.s32.totalorder %s19, %s22
    %p31 = scmp.eq.s32.totalorder %s14, 1
    %p32 = por %p30, %p31
    %p33 = scmp.ne.s32.totalorder %s22, %s23
    %p34 = scmp.eq.s32.totalorder %s14, 0
    %p35 = por %p33, %p34
    %p36 = scmp.ne.s32.totalorder %s22, %s23
    %p37 = scmp.eq.s32.totalorder %s15, 1
    %p38 = por %p36, %p37
    %p40 = scmp.ne.s32.totalorder %s23, %s39
    %p41 = scmp.eq.s32.totalorder %s15, 0
    %p42 = por %p40, %p41
    %s44 = sadd.s32 %s43, 1
    %p47 = scmp.eq.s32.totalorder %s9, 1
    %p48 = scmp.ne.s32.totalorder %s43, %s45
    %p49 = scmp.eq.s32.totalorder %s9, 0
    %p50 = por %p48, %p49
    %p51 = scmp.ne.s32.totalorder %s43, %s45
    %p52 = scmp.eq.s32.totalorder %s14, 1
    %p53 = por %p51, %p52
    %p54 = scmp.ne.s32.totalorder %s45, %s46
    %p55 = scmp.eq.s32.totalorder %s14, 0
    %p56 = por %p54, %p55
    %p57 = scmp.ne.s32.totalorder %s45, %s46
    %p58 = scmp.eq.s32.totalorder %s15, 1
    %p59 = por %p57, %p58
    %p61 = scmp.ne.s32.totalorder %s46, %s60
    %p62 = scmp.eq.s32.totalorder %s15, 0
    %p63 = por %p61, %p62
    %s65 = sadd.s32 %s64, 1
    %p68 = scmp.eq.s32.totalorder %s9, 1
    %p69 = scmp.ne.s32.totalorder %s64, %s66
    %p70 = scmp.eq.s32.totalorder %s9, 0
    %p71 = por %p69, %p70
    %p72 = scmp.ne.s32.totalorder %s64, %s66
    %p73 = scmp.eq.s32.totalorder %s14, 1
    %p74 = por %p72, %p73
    %p75 = scmp.ne.s32.totalorder %s66, %s67
    %p76 = scmp.eq.s32.totalorder %s14, 0
    %p77 = por %p75, %p76
    %p78 = scmp.ne.s32.totalorder %s66, %s67
    %p79 = scmp.eq.s32.totalorder %s15, 1
    %p80 = por %p78, %p79
    %p82 = scmp.ne.s32.totalorder %s67, %s81
    %p83 = scmp.eq.s32.totalorder %s15, 0
    %p84 = por %p82, %p83
    %s85 = ssub.s32 %s9, %s16
    %p86 = scmp.eq.s32.totalorder %s85, 0
    %s88 = sadd.s32 %s87, 1
    %s89 = scalar_select %p86, %s87, %s88
    %p92 = pneg %p86
    %p93 = scmp.eq.s32.totalorder %s9, 1
    %p94 = por %p92, %p93
    %p95 = scmp.ne.s32.totalorder %s87, %s90
    %p96 = scmp.eq.s32.totalorder %s9, 0
    %p97 = por %p95, %p96
    %p98 = scmp.ne.s32.totalorder %s87, %s90
    %p99 = scmp.eq.s32.totalorder %s14, 1
    %p100 = por %p98, %p99
    %p101 = scmp.ne.s32.totalorder %s90, %s91
    %p102 = scmp.eq.s32.totalorder %s14, 0
    %p103 = por %p101, %p102
    %p104 = scmp.ne.s32.totalorder %s90, %s91
    %p105 = scmp.eq.s32.totalorder %s15, 1
    %p106 = por %p104, %p105
    %p108 = scmp.ne.s32.totalorder %s91, %s107
    %p109 = scmp.eq.s32.totalorder %s15, 0
    %p110 = por %p108, %p109
    %p111 = scmp.le.s32.totalorder 1, %s9
    %p112 = scmp.lt.s32.totalorder %s9, 3
    %p113 = pnand %p111, %p112
    %p114 = pneg %p113
    // Predicated region
    $region9: #{dcn_layer_forward.2} parent=5 // pred_check
      _
    $region10: #{dcn_layer_forward.2} parent=5 // pred_check_branch
      %116 = sbr.rel (%p113) target = $region12
    $region11: #{dcn_layer_forward.2} parent=5 // pred_region
      %s117 = ssub.s32 %s9, 1
      // Predicated region
      $region13: #{dcn_layer_forward.2} parent=11 // pred_check
        %p118 = pneg %p56
      $region14: #{dcn_layer_forward.2} parent=11 // pred_check_branch
        %120 = sbr.rel (%p118) target = $region16
      $region15: #{dcn_layer_forward.2} parent=11 // pred_region
        _
      $region16: #{dcn_layer_forward.2} parent=11 // pred_fallthru
        _
      // Predicated region
      $region17: #{dcn_layer_forward.2} parent=11 // pred_check
        %p121 = pneg %p77
      $region18: #{dcn_layer_forward.2} parent=11 // pred_check_branch
        %123 = sbr.rel (%p121) target = $region20
      $region19: #{dcn_layer_forward.2} parent=11 // pred_region
        _
      $region20: #{dcn_layer_forward.2} parent=11 // pred_fallthru
        _
    $region12: #{dcn_layer_forward.2} parent=5 // pred_fallthru
      _
    %p124 = scmp.lt.s32.totalorder %s9, 2
    // Predicated region
    $region21: #{dcn_layer_forward.2} parent=5 // pred_check
      %p125 = pneg %p124
    $region22: #{dcn_layer_forward.2} parent=5 // pred_check_branch
      %127 = sbr.rel (%p125) target = $region24
    $region23: #{dcn_layer_forward.2} parent=5 // pred_region
      // Predicated region
      $region25: #{dcn_layer_forward.2} parent=23 // pred_check
        %p128 = pneg %p29
      $region26: #{dcn_layer_forward.2} parent=23 // pred_check_branch
        %130 = sbr.rel (%p128) target = $region28
      $region27: #{dcn_layer_forward.2} parent=23 // pred_region
        %s131 = smul.u32 32, %s9
        %p132 = scmp.lt.s32.totalorder %s131, 63
        %s133 = scalar_select %p132, %s131, 63
        %s134 = smul.addr %s133, 9
        %s135 = smul.addr %s134, 4
        %s136 = scalar_lea.vmem %s0, %s135
        %s137 = smul.u32 32, %s9
      $region28: #{dcn_layer_forward.2} parent=23 // pred_fallthru
        _
    $region24: #{dcn_layer_forward.2} parent=5 // pred_fallthru
      _
    %p138 = scmp.le.s32.totalorder 1, %s9
    %p139 = scmp.lt.s32.totalorder %s9, 3
    %p140 = pnand %p138, %p139
    %p141 = pneg %p140
    // Predicated region
    $region29: #{dcn_layer_forward.2} parent=5 // pred_check
      _
    $region30: #{dcn_layer_forward.2} parent=5 // pred_check_branch
      %143 = sbr.rel (%p140) target = $region32
    $region31: #{dcn_layer_forward.2} parent=5 // pred_region
      %s144 = ssub.s32 %s9, 1
      %s145 = smul.u32 32, %s14
      %p146 = scmp.lt.s32.totalorder %s145, 63
      %s147 = scalar_select %p146, %s145, 63
      %s148 = smul.addr %s147, 9
      %s149 = smul.addr %s148, 4
      %s150 = scalar_lea.vmem %s0, %s149
      %p151 = pneg %p35
      %p152 = pneg %p32
      %p153 = pneg %p56
      %p154 = pneg %p53
      %p155 = pneg %p77
      %p156 = pneg %p74
      %p157 = pneg %p103
      %p158 = pneg %p100
      %s159 = smul.u32 32, %s14
      %p160 = scmp.lt.s32.totalorder %s159, 63
      %s161 = scalar_select %p160, %s159, 63
      %s162 = smul.addr %s161, 8
      %s163 = scalar_lea.vmem %s3, %s162
      %s164 = smul.u32 32, %s14
      %p165 = scmp.lt.s32.totalorder %s164, 63
      %s166 = scalar_select %p165, %s164, 63
      %s167 = smul.addr %s166, 9
      %s168 = smul.addr %s167, 4
      %s169 = scalar_lea.vmem %s0, %s168
      %s170 = smul.u32 32, %s14
      %s171 = smul.u32 32, %s14
      %p172 = scmp.lt.s32.totalorder %s171, 63
      %s173 = scalar_select %p172, %s171, 63
      %s174 = smul.addr %s173, 8
      %s175 = scalar_lea.vmem %s3, %s174
      %s176 = smul.u32 32, %s14
      %v178 = vld [vmem:[%s169] sm:$0xff]
      %v179 = vld [vmem:[%s169 + $0x8] sm:$0xff]
      %v180 = vld [vmem:[%s169 + $0x10] sm:$0xff]
      %v181 = vld [vmem:[%s169 + $0x18] sm:$0xff]
      %v182 = vld [vmem:[%s169 + $0x20] sm:$0xf]
      %v183 = vld [vmem:[%s169 + $0x24] sm:$0xff]
      %v184 = vld [vmem:[%s169 + $0x2c] sm:$0xff]
      %v185 = vld [vmem:[%s169 + $0x34] sm:$0xff]
      %v186 = vld [vmem:[%s169 + $0x3c] sm:$0xff]
      %v187 = vld [vmem:[%s169 + $0x44] sm:$0xf]
      %v188 = vld [vmem:[%s169 + $0x48] sm:$0xff]
      %v189 = vld [vmem:[%s169 + $0x50] sm:$0xff]
      %v190 = vld [vmem:[%s169 + $0x58] sm:$0xff]
      %v191 = vld [vmem:[%s169 + $0x60] sm:$0xff]
      %v192 = vld [vmem:[%s169 + $0x68] sm:$0xf]
      %v193 = vld [vmem:[%s169 + $0x6c] sm:$0xff]
      %v194 = vld [vmem:[%s169 + $0x74] sm:$0xff]
      %v195 = vld [vmem:[%s169 + $0x7c] sm:$0xff]
      %v196 = vld [vmem:[%s169 + $0x84] sm:$0xff]
      %v197 = vld [vmem:[%s169 + $0x8c] sm:$0xf]
      %v198 = vld [vmem:[%s169 + $0x90] sm:$0xff]
      %v199 = vld [vmem:[%s169 + $0x98] sm:$0xff]
      %v200 = vld [vmem:[%s169 + $0xa0] sm:$0xff]
      %v201 = vld [vmem:[%s169 + $0xa8] sm:$0xff]
      %v202 = vld [vmem:[%s169 + $0xb0] sm:$0xf]
      %v203 = vld [vmem:[%s169 + $0xb4] sm:$0xff]
      %v204 = vld [vmem:[%s169 + $0xbc] sm:$0xff]
      %v205 = vld [vmem:[%s169 + $0xc4] sm:$0xff]
      %v206 = vld [vmem:[%s169 + $0xcc] sm:$0xff]
      %v207 = vld [vmem:[%s169 + $0xd4] sm:$0xf]
      %v208 = vld [vmem:[%s169 + $0xd8] sm:$0xff]
      %v209 = vld [vmem:[%s169 + $0xe0] sm:$0xff]
      %v210 = vld [vmem:[%s169 + $0xe8] sm:$0xff]
      %v211 = vld [vmem:[%s169 + $0xf0] sm:$0xff]
      %v212 = vld [vmem:[%s169 + $0xf8] sm:$0xf]
      %v213 = vld [vmem:[%s169 + $0xfc] sm:$0xff]
      %v214 = vld [vmem:[%s169 + $0x104] sm:$0xff]
      %v215 = vld [vmem:[%s169 + $0x10c] sm:$0xff]
      %v216 = vld [vmem:[%s169 + $0x114] sm:$0xff]
      %v217 = vld [vmem:[%s169 + $0x11c] sm:$0xf]
      %v218 = vld [vmem:[%s169 + $0x120] sm:$0xff]
      %v219 = vld [vmem:[%s169 + $0x128] sm:$0xff]
      %v220 = vld [vmem:[%s169 + $0x130] sm:$0xff]
      %v221 = vld [vmem:[%s169 + $0x138] sm:$0xff]
      %v222 = vld [vmem:[%s169 + $0x140] sm:$0xf]
      %v223 = vld [vmem:[%s169 + $0x144] sm:$0xff]
      %v224 = vld [vmem:[%s169 + $0x14c] sm:$0xff]
      %v225 = vld [vmem:[%s169 + $0x154] sm:$0xff]
      %v226 = vld [vmem:[%s169 + $0x15c] sm:$0xff]
      %v227 = vld [vmem:[%s169 + $0x164] sm:$0xf]
      %v228 = vld [vmem:[%s169 + $0x168] sm:$0xff]
      %v229 = vld [vmem:[%s169 + $0x170] sm:$0xff]
      %v230 = vld [vmem:[%s169 + $0x178] sm:$0xff]
      %v231 = vld [vmem:[%s169 + $0x180] sm:$0xff]
      %v232 = vld [vmem:[%s169 + $0x188] sm:$0xf]
      %v233 = vld [vmem:[%s169 + $0x18c] sm:$0xff]
      %v234 = vld [vmem:[%s169 + $0x194] sm:$0xff]
      %v235 = vld [vmem:[%s169 + $0x19c] sm:$0xff]
      %v236 = vld [vmem:[%s169 + $0x1a4] sm:$0xff]
      %v237 = vld [vmem:[%s169 + $0x1ac] sm:$0xf]
      %v238 = vld [vmem:[%s169 + $0x1b0] sm:$0xff]
      %v239 = vld [vmem:[%s169 + $0x1b8] sm:$0xff]
      %v240 = vld [vmem:[%s169 + $0x1c0] sm:$0xff]
      %v241 = vld [vmem:[%s169 + $0x1c8] sm:$0xff]
      %v242 = vld [vmem:[%s169 + $0x1d0] sm:$0xf]
      %v243 = vld [vmem:[%s169 + $0x1d4] sm:$0xff]
      %v244 = vld [vmem:[%s169 + $0x1dc] sm:$0xff]
      %v245 = vld [vmem:[%s169 + $0x1e4] sm:$0xff]
      %v246 = vld [vmem:[%s169 + $0x1ec] sm:$0xff]
      %v247 = vld [vmem:[%s169 + $0x1f4] sm:$0xf]
      %v248 = vld [vmem:[%s169 + $0x1f8] sm:$0xff]
      %v249 = vld [vmem:[%s169 + $0x200] sm:$0xff]
      %v250 = vld [vmem:[%s169 + $0x208] sm:$0xff]
      %v251 = vld [vmem:[%s169 + $0x210] sm:$0xff]
      %v252 = vld [vmem:[%s169 + $0x218] sm:$0xf]
      %v253 = vld [vmem:[%s169 + $0x21c] sm:$0xff]
      %v254 = vld [vmem:[%s169 + $0x224] sm:$0xff]
      %v255 = vld [vmem:[%s169 + $0x22c] sm:$0xff]
      %v256 = vld [vmem:[%s169 + $0x234] sm:$0xff]
      %v257 = vld [vmem:[%s169 + $0x23c] sm:$0xf]
      %v258 = vld [vmem:[%s169 + $0x240] sm:$0xff]
      %v259 = vld [vmem:[%s169 + $0x248] sm:$0xff]
      %v260 = vld [vmem:[%s169 + $0x250] sm:$0xff]
      %v261 = vld [vmem:[%s169 + $0x258] sm:$0xff]
      %v262 = vld [vmem:[%s169 + $0x260] sm:$0xf]
      %v263 = vld [vmem:[%s169 + $0x264] sm:$0xff]
      %v264 = vld [vmem:[%s169 + $0x26c] sm:$0xff]
      %v265 = vld [vmem:[%s169 + $0x274] sm:$0xff]
      %v266 = vld [vmem:[%s169 + $0x27c] sm:$0xff]
      %v267 = vld [vmem:[%s169 + $0x284] sm:$0xf]
      %v268 = vld [vmem:[%s169 + $0x288] sm:$0xff]
      %v269 = vld [vmem:[%s169 + $0x290] sm:$0xff]
      %v270 = vld [vmem:[%s169 + $0x298] sm:$0xff]
      %v271 = vld [vmem:[%s169 + $0x2a0] sm:$0xff]
      %v272 = vld [vmem:[%s169 + $0x2a8] sm:$0xf]
      %v273 = vld [vmem:[%s169 + $0x2ac] sm:$0xff]
      %v274 = vld [vmem:[%s169 + $0x2b4] sm:$0xff]
      %v275 = vld [vmem:[%s169 + $0x2bc] sm:$0xff]
      %v276 = vld [vmem:[%s169 + $0x2c4] sm:$0xff]
      %v277 = vld [vmem:[%s169 + $0x2cc] sm:$0xf]
      %v278 = vld [vmem:[%s169 + $0x2d0] sm:$0xff]
      %v279 = vld [vmem:[%s169 + $0x2d8] sm:$0xff]
      %v280 = vld [vmem:[%s169 + $0x2e0] sm:$0xff]
      %v281 = vld [vmem:[%s169 + $0x2e8] sm:$0xff]
      %v282 = vld [vmem:[%s169 + $0x2f0] sm:$0xf]
      %v283 = vld [vmem:[%s169 + $0x2f4] sm:$0xff]
      %v284 = vld [vmem:[%s169 + $0x2fc] sm:$0xff]
      %v285 = vld [vmem:[%s169 + $0x304] sm:$0xff]
      %v286 = vld [vmem:[%s169 + $0x30c] sm:$0xff]
      %v287 = vld [vmem:[%s169 + $0x314] sm:$0xf]
      %v288 = vld [vmem:[%s169 + $0x318] sm:$0xff]
      %v289 = vld [vmem:[%s169 + $0x320] sm:$0xff]
      %v290 = vld [vmem:[%s169 + $0x328] sm:$0xff]
      %v291 = vld [vmem:[%s169 + $0x330] sm:$0xff]
      %v292 = vld [vmem:[%s169 + $0x338] sm:$0xf]
      %v293 = vld [vmem:[%s169 + $0x33c] sm:$0xff]
      %v294 = vld [vmem:[%s169 + $0x344] sm:$0xff]
      %v295 = vld [vmem:[%s169 + $0x34c] sm:$0xff]
      %v296 = vld [vmem:[%s169 + $0x354] sm:$0xff]
      %v297 = vld [vmem:[%s169 + $0x35c] sm:$0xf]
      %v298 = vld [vmem:[%s169 + $0x360] sm:$0xff]
      %v299 = vld [vmem:[%s169 + $0x368] sm:$0xff]
      %v300 = vld [vmem:[%s169 + $0x370] sm:$0xff]
      %v301 = vld [vmem:[%s169 + $0x378] sm:$0xff]
      %v302 = vld [vmem:[%s169 + $0x380] sm:$0xf]
      %v303 = vld [vmem:[%s169 + $0x384] sm:$0xff]
      %v304 = vld [vmem:[%s169 + $0x38c] sm:$0xff]
      %v305 = vld [vmem:[%s169 + $0x394] sm:$0xff]
      %v306 = vld [vmem:[%s169 + $0x39c] sm:$0xff]
      %v307 = vld [vmem:[%s169 + $0x3a4] sm:$0xf]
      %v308 = vld [vmem:[%s169 + $0x3a8] sm:$0xff]
      %v309 = vld [vmem:[%s169 + $0x3b0] sm:$0xff]
      %v310 = vld [vmem:[%s169 + $0x3b8] sm:$0xff]
      %v311 = vld [vmem:[%s169 + $0x3c0] sm:$0xff]
      %v312 = vld [vmem:[%s169 + $0x3c8] sm:$0xf]
      %v313 = vld [vmem:[%s169 + $0x3cc] sm:$0xff]
      %v314 = vld [vmem:[%s169 + $0x3d4] sm:$0xff]
      %v315 = vld [vmem:[%s169 + $0x3dc] sm:$0xff]
      %v316 = vld [vmem:[%s169 + $0x3e4] sm:$0xff]
      %v317 = vld [vmem:[%s169 + $0x3ec] sm:$0xf]
      %v318 = vld [vmem:[%s169 + $0x3f0] sm:$0xff]
      %v319 = vld [vmem:[%s169 + $0x3f8] sm:$0xff]
      %v320 = vld [vmem:[%s169 + $0x400] sm:$0xff]
      %v321 = vld [vmem:[%s169 + $0x408] sm:$0xff]
      %v322 = vld [vmem:[%s169 + $0x410] sm:$0xf]
      %v323 = vld [vmem:[%s169 + $0x414] sm:$0xff]
      %v324 = vld [vmem:[%s169 + $0x41c] sm:$0xff]
      %v325 = vld [vmem:[%s169 + $0x424] sm:$0xff]
      %v326 = vld [vmem:[%s169 + $0x42c] sm:$0xff]
      %v327 = vld [vmem:[%s169 + $0x434] sm:$0xf]
      %v328 = vld [vmem:[%s169 + $0x438] sm:$0xff]
      %v329 = vld [vmem:[%s169 + $0x440] sm:$0xff]
      %v330 = vld [vmem:[%s169 + $0x448] sm:$0xff]
      %v331 = vld [vmem:[%s169 + $0x450] sm:$0xff]
      %v332 = vld [vmem:[%s169 + $0x458] sm:$0xf]
      %v333 = vld [vmem:[%s169 + $0x45c] sm:$0xff]
      %v334 = vld [vmem:[%s169 + $0x464] sm:$0xff]
      %v335 = vld [vmem:[%s169 + $0x46c] sm:$0xff]
      %v336 = vld [vmem:[%s169 + $0x474] sm:$0xff]
      %v337 = vld [vmem:[%s169 + $0x47c] sm:$0xf]
      %v338 = vld [vmem:[%s1] sm:$0xf]
      %v339 = vld [vmem:[%s1 + $0x4] sm:$0xf]
      %v340 = vld [vmem:[%s1 + $0x8] sm:$0xf]
      %v341 = vld [vmem:[%s1 + $0xc] sm:$0xf]
      %v342 = vld [vmem:[%s1 + $0x10] sm:$0xf]
      %v343 = vld [vmem:[%s1 + $0x14] sm:$0xf]
      %v344 = vld [vmem:[%s1 + $0x18] sm:$0xf]
      %v345 = vld [vmem:[%s1 + $0x1c] sm:$0xf]
      %v346 = vld [vmem:[%s1 + $0x20] sm:$0xf]
      %v347 = vld [vmem:[%s1 + $0x24] sm:$0xf]
      %v348 = vld [vmem:[%s1 + $0x28] sm:$0xf]
      %v349 = vld [vmem:[%s1 + $0x2c] sm:$0xf]
      %v350 = vld [vmem:[%s1 + $0x30] sm:$0xf]
      %v351 = vld [vmem:[%s1 + $0x34] sm:$0xf]
      %v352 = vld [vmem:[%s1 + $0x38] sm:$0xf]
      %v353 = vld [vmem:[%s1 + $0x3c] sm:$0xf]
      %v354 = vld [vmem:[%s1 + $0x40] sm:$0xf]
      %v355 = vld [vmem:[%s1 + $0x44] sm:$0xf]
      %v356 = vld [vmem:[%s1 + $0x48] sm:$0xf]
      %v357 = vld [vmem:[%s1 + $0x4c] sm:$0xf]
      %v358 = vld [vmem:[%s1 + $0x50] sm:$0xf]
      %v359 = vld [vmem:[%s1 + $0x54] sm:$0xf]
      %v360 = vld [vmem:[%s1 + $0x58] sm:$0xf]
      %v361 = vld [vmem:[%s1 + $0x5c] sm:$0xf]
      %v362 = vld [vmem:[%s1 + $0x60] sm:$0xf]
      %v363 = vld [vmem:[%s1 + $0x64] sm:$0xf]
      %v364 = vld [vmem:[%s1 + $0x68] sm:$0xf]
      %v365 = vld [vmem:[%s1 + $0x6c] sm:$0xf]
      %v366 = vld [vmem:[%s1 + $0x70] sm:$0xf]
      %v367 = vld [vmem:[%s1 + $0x74] sm:$0xf]
      %v368 = vld [vmem:[%s1 + $0x78] sm:$0xf]
      %v369 = vld [vmem:[%s1 + $0x7c] sm:$0xf]
      %v370 = vld [vmem:[%s1 + $0x80] sm:$0xf]
      %v371 = vld [vmem:[%s1 + $0x84] sm:$0xf]
      %v372 = vld [vmem:[%s1 + $0x88] sm:$0xf]
      %v373 = vld [vmem:[%s1 + $0x8c] sm:$0xf]
      %v374 = vld [vmem:[%s1 + $0x90] sm:$0xf]
      %v375 = vld [vmem:[%s1 + $0x94] sm:$0xf]
      %v376 = vld [vmem:[%s1 + $0x98] sm:$0xf]
      %v377 = vld [vmem:[%s1 + $0x9c] sm:$0xf]
      %v378 = vld [vmem:[%s1 + $0xa0] sm:$0xf]
      %v379 = vld [vmem:[%s1 + $0xa4] sm:$0xf]
      %v380 = vld [vmem:[%s1 + $0xa8] sm:$0xf]
      %v381 = vld [vmem:[%s1 + $0xac] sm:$0xf]
      %v382 = vld [vmem:[%s1 + $0xb0] sm:$0xf]
      %v383 = vld [vmem:[%s1 + $0xb4] sm:$0xf]
      %v384 = vld [vmem:[%s1 + $0xb8] sm:$0xf]
      %v385 = vld [vmem:[%s1 + $0xbc] sm:$0xf]
      %v386 = vld [vmem:[%s1 + $0xc0] sm:$0xf]
      %v387 = vld [vmem:[%s1 + $0xc4] sm:$0xf]
      %v388 = vld [vmem:[%s1 + $0xc8] sm:$0xf]
      %v389 = vld [vmem:[%s1 + $0xcc] sm:$0xf]
      %v390 = vld [vmem:[%s1 + $0xd0] sm:$0xf]
      %v391 = vld [vmem:[%s1 + $0xd4] sm:$0xf]
      %v392 = vld [vmem:[%s1 + $0xd8] sm:$0xf]
      %v393 = vld [vmem:[%s1 + $0xdc] sm:$0xf]
      %v394 = vld [vmem:[%s1 + $0xe0] sm:$0xf]
      %v395 = vld [vmem:[%s1 + $0xe4] sm:$0xf]
      %v396 = vld [vmem:[%s1 + $0xe8] sm:$0xf]
      %v397 = vld [vmem:[%s1 + $0xec] sm:$0xf]
      %v398 = vld [vmem:[%s1 + $0xf0] sm:$0xf]
      %v399 = vld [vmem:[%s1 + $0xf4] sm:$0xf]
      %v400 = vld [vmem:[%s1 + $0xf8] sm:$0xf]
      %v401 = vld [vmem:[%s1 + $0xfc] sm:$0xf]
      %v402 = vld [vmem:[%s1 + $0x100] sm:$0xf]
      %v403 = vld [vmem:[%s1 + $0x104] sm:$0xf]
      %v404 = vld [vmem:[%s1 + $0x108] sm:$0xf]
      %v405 = vld [vmem:[%s1 + $0x10c] sm:$0xf]
      %v406 = vld [vmem:[%s1 + $0x110] sm:$0xf]
      %v407 = vld [vmem:[%s1 + $0x114] sm:$0xf]
      %v408 = vld [vmem:[%s1 + $0x118] sm:$0xf]
      %v409 = vld [vmem:[%s1 + $0x11c] sm:$0xf]
      %v410 = vld [vmem:[%s1 + $0x120] sm:$0xf]
      %v411 = vld [vmem:[%s1 + $0x124] sm:$0xf]
      %v412 = vld [vmem:[%s1 + $0x128] sm:$0xf]
      %v413 = vld [vmem:[%s1 + $0x12c] sm:$0xf]
      %v414 = vld [vmem:[%s1 + $0x130] sm:$0xf]
      %v415 = vld [vmem:[%s1 + $0x134] sm:$0xf]
      %v416 = vld [vmem:[%s1 + $0x138] sm:$0xf]
      %v417 = vld [vmem:[%s1 + $0x13c] sm:$0xf]
      %v418 = vld [vmem:[%s1 + $0x140] sm:$0xf]
      %v419 = vld [vmem:[%s1 + $0x144] sm:$0xf]
      %v420 = vld [vmem:[%s1 + $0x148] sm:$0xf]
      %v421 = vld [vmem:[%s1 + $0x14c] sm:$0xf]
      %v422 = vld [vmem:[%s1 + $0x150] sm:$0xf]
      %v423 = vld [vmem:[%s1 + $0x154] sm:$0xf]
      %v424 = vld [vmem:[%s1 + $0x158] sm:$0xf]
      %v425 = vld [vmem:[%s1 + $0x15c] sm:$0xf]
      %v426 = vld [vmem:[%s1 + $0x160] sm:$0xf]
      %v427 = vld [vmem:[%s1 + $0x164] sm:$0xf]
      %v428 = vld [vmem:[%s1 + $0x168] sm:$0xf]
      %v429 = vld [vmem:[%s1 + $0x16c] sm:$0xf]
      %v430 = vld [vmem:[%s1 + $0x170] sm:$0xf]
      %v431 = vld [vmem:[%s1 + $0x174] sm:$0xf]
      %v432 = vld [vmem:[%s1 + $0x178] sm:$0xf]
      %v433 = vld [vmem:[%s1 + $0x17c] sm:$0xf]
      %v434 = vld [vmem:[%s1 + $0x180] sm:$0xf]
      %v435 = vld [vmem:[%s1 + $0x184] sm:$0xf]
      %v436 = vld [vmem:[%s1 + $0x188] sm:$0xf]
      %v437 = vld [vmem:[%s1 + $0x18c] sm:$0xf]
      %v438 = vld [vmem:[%s1 + $0x190] sm:$0xf]
      %v439 = vld [vmem:[%s1 + $0x194] sm:$0xf]
      %v440 = vld [vmem:[%s1 + $0x198] sm:$0xf]
      %v441 = vld [vmem:[%s1 + $0x19c] sm:$0xf]
      %v442 = vld [vmem:[%s1 + $0x1a0] sm:$0xf]
      %v443 = vld [vmem:[%s1 + $0x1a4] sm:$0xf]
      %v444 = vld [vmem:[%s1 + $0x1a8] sm:$0xf]
      %v445 = vld [vmem:[%s1 + $0x1ac] sm:$0xf]
      %v446 = vld [vmem:[%s1 + $0x1b0] sm:$0xf]
      %v447 = vld [vmem:[%s1 + $0x1b4] sm:$0xf]
      %v448 = vld [vmem:[%s1 + $0x1b8] sm:$0xf]
      %v449 = vld [vmem:[%s1 + $0x1bc] sm:$0xf]
      %v450 = vld [vmem:[%s1 + $0x1c0] sm:$0xf]
      %v451 = vld [vmem:[%s1 + $0x1c4] sm:$0xf]
      %v452 = vld [vmem:[%s1 + $0x1c8] sm:$0xf]
      %v453 = vld [vmem:[%s1 + $0x1cc] sm:$0xf]
      %v454 = vld [vmem:[%s1 + $0x1d0] sm:$0xf]
      %v455 = vld [vmem:[%s1 + $0x1d4] sm:$0xf]
      %v456 = vld [vmem:[%s1 + $0x1d8] sm:$0xf]
      %v457 = vld [vmem:[%s1 + $0x1dc] sm:$0xf]
      %v458 = vld [vmem:[%s1 + $0x1e0] sm:$0xf]
      %v459 = vld [vmem:[%s1 + $0x1e4] sm:$0xf]
      %v460 = vld [vmem:[%s1 + $0x1e8] sm:$0xf]
      %v461 = vld [vmem:[%s1 + $0x1ec] sm:$0xf]
      %v462 = vld [vmem:[%s1 + $0x1f0] sm:$0xf]
      %v463 = vld [vmem:[%s1 + $0x1f4] sm:$0xf]
      %v464 = vld [vmem:[%s1 + $0x1f8] sm:$0xf]
      %v465 = vld [vmem:[%s1 + $0x1fc] sm:$0xf]
      %v466 = vld [vmem:[%s1 + $0x200] sm:$0xf]
      %v467 = vld [vmem:[%s1 + $0x204] sm:$0xf]
      %v468 = vld [vmem:[%s1 + $0x208] sm:$0xf]
      %v469 = vld [vmem:[%s1 + $0x20c] sm:$0xf]
      %v470 = vld [vmem:[%s1 + $0x210] sm:$0xf]
      %v471 = vld [vmem:[%s1 + $0x214] sm:$0xf]
      %v472 = vld [vmem:[%s1 + $0x218] sm:$0xf]
      %v473 = vld [vmem:[%s1 + $0x21c] sm:$0xf]
      %v474 = vld [vmem:[%s1 + $0x220] sm:$0xf]
      %v475 = vld [vmem:[%s1 + $0x224] sm:$0xf]
      %v476 = vld [vmem:[%s1 + $0x228] sm:$0xf]
      %v477 = vld [vmem:[%s1 + $0x22c] sm:$0xf]
      %v478 = vld [vmem:[%s1 + $0x230] sm:$0xf]
      %v479 = vld [vmem:[%s1 + $0x234] sm:$0xf]
      %v480 = vld [vmem:[%s1 + $0x238] sm:$0xf]
      %v481 = vld [vmem:[%s1 + $0x23c] sm:$0xf]
      %v482 = vld [vmem:[%s2] sm:$0x1]
      %v484 = vlaneseq
      %v485 = vshrl.u32 %v484, 7
      %v486 = vsub.s32 0, %v485
      %v487 = vrot.slane %v482, %v486
      %v649 = vunpack.c.l.b16 %v178
      %v650 = vunpack.c.h.b16 %v178
      %v651 = vunpack.c.l.b16 %v179
      %v652 = vunpack.c.h.b16 %v179
      %v653 = vunpack.c.l.b16 %v180
      %v654 = vunpack.c.h.b16 %v180
      %v655 = vunpack.c.l.b16 %v181
      %v656 = vunpack.c.h.b16 %v181
      %v657 = vunpack.c.l.b16 %v182
      %v658 = vunpack.c.l.b16 %v183
      %v659 = vunpack.c.h.b16 %v183
      %v660 = vunpack.c.l.b16 %v184
      %v661 = vunpack.c.h.b16 %v184
      %v662 = vunpack.c.l.b16 %v185
      %v663 = vunpack.c.h.b16 %v185
      %v664 = vunpack.c.l.b16 %v186
      %v665 = vunpack.c.h.b16 %v186
      %v666 = vunpack.c.l.b16 %v187
      %v667 = vunpack.c.l.b16 %v188
      %v668 = vunpack.c.h.b16 %v188
      %v669 = vunpack.c.l.b16 %v189
      %v670 = vunpack.c.h.b16 %v189
      %v671 = vunpack.c.l.b16 %v190
      %v672 = vunpack.c.h.b16 %v190
      %v673 = vunpack.c.l.b16 %v191
      %v674 = vunpack.c.h.b16 %v191
      %v675 = vunpack.c.l.b16 %v192
      %v676 = vunpack.c.l.b16 %v193
      %v677 = vunpack.c.h.b16 %v193
      %v678 = vunpack.c.l.b16 %v194
      %v679 = vunpack.c.h.b16 %v194
      %v680 = vunpack.c.l.b16 %v195
      %v681 = vunpack.c.h.b16 %v195
      %v682 = vunpack.c.l.b16 %v196
      %v683 = vunpack.c.h.b16 %v196
      %v684 = vunpack.c.l.b16 %v197
      %v685 = vunpack.c.l.b16 %v198
      %v686 = vunpack.c.h.b16 %v198
      %v687 = vunpack.c.l.b16 %v199
      %v688 = vunpack.c.h.b16 %v199
      %v689 = vunpack.c.l.b16 %v200
      %v690 = vunpack.c.h.b16 %v200
      %v691 = vunpack.c.l.b16 %v201
      %v692 = vunpack.c.h.b16 %v201
      %v693 = vunpack.c.l.b16 %v202
      %v694 = vunpack.c.l.b16 %v203
      %v695 = vunpack.c.h.b16 %v203
      %v696 = vunpack.c.l.b16 %v204
      %v697 = vunpack.c.h.b16 %v204
      %v698 = vunpack.c.l.b16 %v205
      %v699 = vunpack.c.h.b16 %v205
      %v700 = vunpack.c.l.b16 %v206
      %v701 = vunpack.c.h.b16 %v206
      %v702 = vunpack.c.l.b16 %v207
      %v703 = vunpack.c.l.b16 %v208
      %v704 = vunpack.c.h.b16 %v208
      %v705 = vunpack.c.l.b16 %v209
      %v706 = vunpack.c.h.b16 %v209
      %v707 = vunpack.c.l.b16 %v210
      %v708 = vunpack.c.h.b16 %v210
      %v709 = vunpack.c.l.b16 %v211
      %v710 = vunpack.c.h.b16 %v211
      %v711 = vunpack.c.l.b16 %v212
      %v712 = vunpack.c.l.b16 %v213
      %v713 = vunpack.c.h.b16 %v213
      %v714 = vunpack.c.l.b16 %v214
      %v715 = vunpack.c.h.b16 %v214
      %v716 = vunpack.c.l.b16 %v215
      %v717 = vunpack.c.h.b16 %v215
      %v718 = vunpack.c.l.b16 %v216
      %v719 = vunpack.c.h.b16 %v216
      %v720 = vunpack.c.l.b16 %v217
      %v721 = vunpack.c.l.b16 %v218
      %v722 = vunpack.c.h.b16 %v218
      %v723 = vunpack.c.l.b16 %v219
      %v724 = vunpack.c.h.b16 %v219
      %v725 = vunpack.c.l.b16 %v220
      %v726 = vunpack.c.h.b16 %v220
      %v727 = vunpack.c.l.b16 %v221
      %v728 = vunpack.c.h.b16 %v221
      %v729 = vunpack.c.l.b16 %v222
      %v730 = vunpack.c.l.b16 %v223
      %v731 = vunpack.c.h.b16 %v223
      %v732 = vunpack.c.l.b16 %v224
      %v733 = vunpack.c.h.b16 %v224
      %v734 = vunpack.c.l.b16 %v225
      %v735 = vunpack.c.h.b16 %v225
      %v736 = vunpack.c.l.b16 %v226
      %v737 = vunpack.c.h.b16 %v226
      %v738 = vunpack.c.l.b16 %v227
      %v739 = vunpack.c.l.b16 %v228
      %v740 = vunpack.c.h.b16 %v228
      %v741 = vunpack.c.l.b16 %v229
      %v742 = vunpack.c.h.b16 %v229
      %v743 = vunpack.c.l.b16 %v230
      %v744 = vunpack.c.h.b16 %v230
      %v745 = vunpack.c.l.b16 %v231
      %v746 = vunpack.c.h.b16 %v231
      %v747 = vunpack.c.l.b16 %v232
      %v748 = vunpack.c.l.b16 %v233
      %v749 = vunpack.c.h.b16 %v233
      %v750 = vunpack.c.l.b16 %v234
      %v751 = vunpack.c.h.b16 %v234
      %v752 = vunpack.c.l.b16 %v235
      %v753 = vunpack.c.h.b16 %v235
      %v754 = vunpack.c.l.b16 %v236
      %v755 = vunpack.c.h.b16 %v236
      %v756 = vunpack.c.l.b16 %v237
      %v757 = vunpack.c.l.b16 %v238
      %v758 = vunpack.c.h.b16 %v238
      %v759 = vunpack.c.l.b16 %v239
      %v760 = vunpack.c.h.b16 %v239
      %v761 = vunpack.c.l.b16 %v240
      %v762 = vunpack.c.h.b16 %v240
      %v763 = vunpack.c.l.b16 %v241
      %v764 = vunpack.c.h.b16 %v241
      %v765 = vunpack.c.l.b16 %v242
      %v766 = vunpack.c.l.b16 %v243
      %v767 = vunpack.c.h.b16 %v243
      %v768 = vunpack.c.l.b16 %v244
      %v769 = vunpack.c.h.b16 %v244
      %v770 = vunpack.c.l.b16 %v245
      %v771 = vunpack.c.h.b16 %v245
      %v772 = vunpack.c.l.b16 %v246
      %v773 = vunpack.c.h.b16 %v246
      %v774 = vunpack.c.l.b16 %v247
      %v775 = vunpack.c.l.b16 %v248
      %v776 = vunpack.c.h.b16 %v248
      %v777 = vunpack.c.l.b16 %v249
      %v778 = vunpack.c.h.b16 %v249
      %v779 = vunpack.c.l.b16 %v250
      %v780 = vunpack.c.h.b16 %v250
      %v781 = vunpack.c.l.b16 %v251
      %v782 = vunpack.c.h.b16 %v251
      %v783 = vunpack.c.l.b16 %v252
      %v784 = vunpack.c.l.b16 %v253
      %v785 = vunpack.c.h.b16 %v253
      %v786 = vunpack.c.l.b16 %v254
      %v787 = vunpack.c.h.b16 %v254
      %v788 = vunpack.c.l.b16 %v255
      %v789 = vunpack.c.h.b16 %v255
      %v790 = vunpack.c.l.b16 %v256
      %v791 = vunpack.c.h.b16 %v256
      %v792 = vunpack.c.l.b16 %v257
      %v793 = vunpack.c.l.b16 %v258
      %v794 = vunpack.c.h.b16 %v258
      %v795 = vunpack.c.l.b16 %v259
      %v796 = vunpack.c.h.b16 %v259
      %v797 = vunpack.c.l.b16 %v260
      %v798 = vunpack.c.h.b16 %v260
      %v799 = vunpack.c.l.b16 %v261
      %v800 = vunpack.c.h.b16 %v261
      %v801 = vunpack.c.l.b16 %v262
      %v802 = vunpack.c.l.b16 %v263
      %v803 = vunpack.c.h.b16 %v263
      %v804 = vunpack.c.l.b16 %v264
      %v805 = vunpack.c.h.b16 %v264
      %v806 = vunpack.c.l.b16 %v265
      %v807 = vunpack.c.h.b16 %v265
      %v808 = vunpack.c.l.b16 %v266
      %v809 = vunpack.c.h.b16 %v266
      %v810 = vunpack.c.l.b16 %v267
      %v811 = vunpack.c.l.b16 %v268
      %v812 = vunpack.c.h.b16 %v268
      %v813 = vunpack.c.l.b16 %v269
      %v814 = vunpack.c.h.b16 %v269
      %v815 = vunpack.c.l.b16 %v270
      %v816 = vunpack.c.h.b16 %v270
      %v817 = vunpack.c.l.b16 %v271
      %v818 = vunpack.c.h.b16 %v271
      %v819 = vunpack.c.l.b16 %v272
      %v820 = vunpack.c.l.b16 %v273
      %v821 = vunpack.c.h.b16 %v273
      %v822 = vunpack.c.l.b16 %v274
      %v823 = vunpack.c.h.b16 %v274
      %v824 = vunpack.c.l.b16 %v275
      %v825 = vunpack.c.h.b16 %v275
      %v826 = vunpack.c.l.b16 %v276
      %v827 = vunpack.c.h.b16 %v276
      %v828 = vunpack.c.l.b16 %v277
      %v829 = vunpack.c.l.b16 %v278
      %v830 = vunpack.c.h.b16 %v278
      %v831 = vunpack.c.l.b16 %v279
      %v832 = vunpack.c.h.b16 %v279
      %v833 = vunpack.c.l.b16 %v280
      %v834 = vunpack.c.h.b16 %v280
      %v835 = vunpack.c.l.b16 %v281
      %v836 = vunpack.c.h.b16 %v281
      %v837 = vunpack.c.l.b16 %v282
      %v838 = vunpack.c.l.b16 %v283
      %v839 = vunpack.c.h.b16 %v283
      %v840 = vunpack.c.l.b16 %v284
      %v841 = vunpack.c.h.b16 %v284
      %v842 = vunpack.c.l.b16 %v285
      %v843 = vunpack.c.h.b16 %v285
      %v844 = vunpack.c.l.b16 %v286
      %v845 = vunpack.c.h.b16 %v286
      %v846 = vunpack.c.l.b16 %v287
      %v847 = vunpack.c.l.b16 %v288
      %v848 = vunpack.c.h.b16 %v288
      %v849 = vunpack.c.l.b16 %v289
      %v850 = vunpack.c.h.b16 %v289
      %v851 = vunpack.c.l.b16 %v290
      %v852 = vunpack.c.h.b16 %v290
      %v853 = vunpack.c.l.b16 %v291
      %v854 = vunpack.c.h.b16 %v291
      %v855 = vunpack.c.l.b16 %v292
      %v856 = vunpack.c.l.b16 %v293
      %v857 = vunpack.c.h.b16 %v293
      %v858 = vunpack.c.l.b16 %v294
      %v859 = vunpack.c.h.b16 %v294
      %v860 = vunpack.c.l.b16 %v295
      %v861 = vunpack.c.h.b16 %v295
      %v862 = vunpack.c.l.b16 %v296
      %v863 = vunpack.c.h.b16 %v296
      %v864 = vunpack.c.l.b16 %v297
      %v865 = vunpack.c.l.b16 %v298
      %v866 = vunpack.c.h.b16 %v298
      %v867 = vunpack.c.l.b16 %v299
      %v868 = vunpack.c.h.b16 %v299
      %v869 = vunpack.c.l.b16 %v300
      %v870 = vunpack.c.h.b16 %v300
      %v871 = vunpack.c.l.b16 %v301
      %v872 = vunpack.c.h.b16 %v301
      %v873 = vunpack.c.l.b16 %v302
      %v874 = vunpack.c.l.b16 %v303
      %v875 = vunpack.c.h.b16 %v303
      %v876 = vunpack.c.l.b16 %v304
      %v877 = vunpack.c.h.b16 %v304
      %v878 = vunpack.c.l.b16 %v305
      %v879 = vunpack.c.h.b16 %v305
      %v880 = vunpack.c.l.b16 %v306
      %v881 = vunpack.c.h.b16 %v306
      %v882 = vunpack.c.l.b16 %v307
      %v883 = vunpack.c.l.b16 %v308
      %v884 = vunpack.c.h.b16 %v308
      %v885 = vunpack.c.l.b16 %v309
      %v886 = vunpack.c.h.b16 %v309
      %v887 = vunpack.c.l.b16 %v310
      %v888 = vunpack.c.h.b16 %v310
      %v889 = vunpack.c.l.b16 %v311
      %v890 = vunpack.c.h.b16 %v311
      %v891 = vunpack.c.l.b16 %v312
      %v892 = vunpack.c.l.b16 %v313
      %v893 = vunpack.c.h.b16 %v313
      %v894 = vunpack.c.l.b16 %v314
      %v895 = vunpack.c.h.b16 %v314
      %v896 = vunpack.c.l.b16 %v315
      %v897 = vunpack.c.h.b16 %v315
      %v898 = vunpack.c.l.b16 %v316
      %v899 = vunpack.c.h.b16 %v316
      %v900 = vunpack.c.l.b16 %v317
      %v901 = vunpack.c.l.b16 %v318
      %v902 = vunpack.c.h.b16 %v318
      %v903 = vunpack.c.l.b16 %v319
      %v904 = vunpack.c.h.b16 %v319
      %v905 = vunpack.c.l.b16 %v320
      %v906 = vunpack.c.h.b16 %v320
      %v907 = vunpack.c.l.b16 %v321
      %v908 = vunpack.c.h.b16 %v321
      %v909 = vunpack.c.l.b16 %v322
      %v910 = vunpack.c.l.b16 %v323
      %v911 = vunpack.c.h.b16 %v323
      %v912 = vunpack.c.l.b16 %v324
      %v913 = vunpack.c.h.b16 %v324
      %v914 = vunpack.c.l.b16 %v325
      %v915 = vunpack.c.h.b16 %v325
      %v916 = vunpack.c.l.b16 %v326
      %v917 = vunpack.c.h.b16 %v326
      %v918 = vunpack.c.l.b16 %v327
      %v919 = vunpack.c.l.b16 %v328
      %v920 = vunpack.c.h.b16 %v328
      %v921 = vunpack.c.l.b16 %v329
      %v922 = vunpack.c.h.b16 %v329
      %v923 = vunpack.c.l.b16 %v330
      %v924 = vunpack.c.h.b16 %v330
      %v925 = vunpack.c.l.b16 %v331
      %v926 = vunpack.c.h.b16 %v331
      %v927 = vunpack.c.l.b16 %v332
      %v928 = vunpack.c.l.b16 %v333
      %v929 = vunpack.c.h.b16 %v333
      %v930 = vunpack.c.l.b16 %v334
      %v931 = vunpack.c.h.b16 %v334
      %v932 = vunpack.c.l.b16 %v335
      %v933 = vunpack.c.h.b16 %v335
      %v934 = vunpack.c.l.b16 %v336
      %v935 = vunpack.c.h.b16 %v336
      %v936 = vunpack.c.l.b16 %v337
      %v937 = vpack.c.b16 %v658, %v649
      %v938 = vpack.c.b16 %v659, %v650
      %v939 = vpack.c.b16 %v660, %v651
      %v940 = vpack.c.b16 %v661, %v652
      %v941 = vpack.c.b16 %v662, %v653
      %v942 = vpack.c.b16 %v663, %v654
      %v943 = vpack.c.b16 %v664, %v655
      %v944 = vpack.c.b16 %v665, %v656
      %v945 = vpack.c.b16 %v666, %v657
      %v946 = vpack.c.b16 %v676, %v667
      %v947 = vpack.c.b16 %v677, %v668
      %v948 = vpack.c.b16 %v678, %v669
      %v949 = vpack.c.b16 %v679, %v670
      %v950 = vpack.c.b16 %v680, %v671
      %v951 = vpack.c.b16 %v681, %v672
      %v952 = vpack.c.b16 %v682, %v673
      %v953 = vpack.c.b16 %v683, %v674
      %v954 = vpack.c.b16 %v684, %v675
      %v955 = vpack.c.b16 %v694, %v685
      %v956 = vpack.c.b16 %v695, %v686
      %v957 = vpack.c.b16 %v696, %v687
      %v958 = vpack.c.b16 %v697, %v688
      %v959 = vpack.c.b16 %v698, %v689
      %v960 = vpack.c.b16 %v699, %v690
      %v961 = vpack.c.b16 %v700, %v691
      %v962 = vpack.c.b16 %v701, %v692
      %v963 = vpack.c.b16 %v702, %v693
      %v964 = vpack.c.b16 %v712, %v703
      %v965 = vpack.c.b16 %v713, %v704
      %v966 = vpack.c.b16 %v714, %v705
      %v967 = vpack.c.b16 %v715, %v706
      %v968 = vpack.c.b16 %v716, %v707
      %v969 = vpack.c.b16 %v717, %v708
      %v970 = vpack.c.b16 %v718, %v709
      %v971 = vpack.c.b16 %v719, %v710
      %v972 = vpack.c.b16 %v720, %v711
      %v973 = vpack.c.b16 %v730, %v721
      %v974 = vpack.c.b16 %v731, %v722
      %v975 = vpack.c.b16 %v732, %v723
      %v976 = vpack.c.b16 %v733, %v724
      %v977 = vpack.c.b16 %v734, %v725
      %v978 = vpack.c.b16 %v735, %v726
      %v979 = vpack.c.b16 %v736, %v727
      %v980 = vpack.c.b16 %v737, %v728
      %v981 = vpack.c.b16 %v738, %v729
      %v982 = vpack.c.b16 %v748, %v739
      %v983 = vpack.c.b16 %v749, %v740
      %v984 = vpack.c.b16 %v750, %v741
      %v985 = vpack.c.b16 %v751, %v742
      %v986 = vpack.c.b16 %v752, %v743
      %v987 = vpack.c.b16 %v753, %v744
      %v988 = vpack.c.b16 %v754, %v745
      %v989 = vpack.c.b16 %v755, %v746
      %v990 = vpack.c.b16 %v756, %v747
      %v991 = vpack.c.b16 %v766, %v757
      %v992 = vpack.c.b16 %v767, %v758
      %v993 = vpack.c.b16 %v768, %v759
      %v994 = vpack.c.b16 %v769, %v760
      %v995 = vpack.c.b16 %v770, %v761
      %v996 = vpack.c.b16 %v771, %v762
      %v997 = vpack.c.b16 %v772, %v763
      %v998 = vpack.c.b16 %v773, %v764
      %v999 = vpack.c.b16 %v774, %v765
      %v1000 = vpack.c.b16 %v784, %v775
      %v1001 = vpack.c.b16 %v785, %v776
      %v1002 = vpack.c.b16 %v786, %v777
      %v1003 = vpack.c.b16 %v787, %v778
      %v1004 = vpack.c.b16 %v788, %v779
      %v1005 = vpack.c.b16 %v789, %v780
      %v1006 = vpack.c.b16 %v790, %v781
      %v1007 = vpack.c.b16 %v791, %v782
      %v1008 = vpack.c.b16 %v792, %v783
      %v1009 = vpack.c.b16 %v802, %v793
      %v1010 = vpack.c.b16 %v803, %v794
      %v1011 = vpack.c.b16 %v804, %v795
      %v1012 = vpack.c.b16 %v805, %v796
      %v1013 = vpack.c.b16 %v806, %v797
      %v1014 = vpack.c.b16 %v807, %v798
      %v1015 = vpack.c.b16 %v808, %v799
      %v1016 = vpack.c.b16 %v809, %v800
      %v1017 = vpack.c.b16 %v810, %v801
      %v1018 = vpack.c.b16 %v820, %v811
      %v1019 = vpack.c.b16 %v821, %v812
      %v1020 = vpack.c.b16 %v822, %v813
      %v1021 = vpack.c.b16 %v823, %v814
      %v1022 = vpack.c.b16 %v824, %v815
      %v1023 = vpack.c.b16 %v825, %v816
      %v1024 = vpack.c.b16 %v826, %v817
      %v1025 = vpack.c.b16 %v827, %v818
      %v1026 = vpack.c.b16 %v828, %v819
      %v1027 = vpack.c.b16 %v838, %v829
      %v1028 = vpack.c.b16 %v839, %v830
      %v1029 = vpack.c.b16 %v840, %v831
      %v1030 = vpack.c.b16 %v841, %v832
      %v1031 = vpack.c.b16 %v842, %v833
      %v1032 = vpack.c.b16 %v843, %v834
      %v1033 = vpack.c.b16 %v844, %v835
      %v1034 = vpack.c.b16 %v845, %v836
      %v1035 = vpack.c.b16 %v846, %v837
      %v1036 = vpack.c.b16 %v856, %v847
      %v1037 = vpack.c.b16 %v857, %v848
      %v1038 = vpack.c.b16 %v858, %v849
      %v1039 = vpack.c.b16 %v859, %v850
      %v1040 = vpack.c.b16 %v860, %v851
      %v1041 = vpack.c.b16 %v861, %v852
      %v1042 = vpack.c.b16 %v862, %v853
      %v1043 = vpack.c.b16 %v863, %v854
      %v1044 = vpack.c.b16 %v864, %v855
      %v1045 = vpack.c.b16 %v874, %v865
      %v1046 = vpack.c.b16 %v875, %v866
      %v1047 = vpack.c.b16 %v876, %v867
      %v1048 = vpack.c.b16 %v877, %v868
      %v1049 = vpack.c.b16 %v878, %v869
      %v1050 = vpack.c.b16 %v879, %v870
      %v1051 = vpack.c.b16 %v880, %v871
      %v1052 = vpack.c.b16 %v881, %v872
      %v1053 = vpack.c.b16 %v882, %v873
      %v1054 = vpack.c.b16 %v892, %v883
      %v1055 = vpack.c.b16 %v893, %v884
      %v1056 = vpack.c.b16 %v894, %v885
      %v1057 = vpack.c.b16 %v895, %v886
      %v1058 = vpack.c.b16 %v896, %v887
      %v1059 = vpack.c.b16 %v897, %v888
      %v1060 = vpack.c.b16 %v898, %v889
      %v1061 = vpack.c.b16 %v899, %v890
      %v1062 = vpack.c.b16 %v900, %v891
      %v1063 = vpack.c.b16 %v910, %v901
      %v1064 = vpack.c.b16 %v911, %v902
      %v1065 = vpack.c.b16 %v912, %v903
      %v1066 = vpack.c.b16 %v913, %v904
      %v1067 = vpack.c.b16 %v914, %v905
      %v1068 = vpack.c.b16 %v915, %v906
      %v1069 = vpack.c.b16 %v916, %v907
      %v1070 = vpack.c.b16 %v917, %v908
      %v1071 = vpack.c.b16 %v918, %v909
      %v1072 = vpack.c.b16 %v928, %v919
      %v1073 = vpack.c.b16 %v929, %v920
      %v1074 = vpack.c.b16 %v930, %v921
      %v1075 = vpack.c.b16 %v931, %v922
      %v1076 = vpack.c.b16 %v932, %v923
      %v1077 = vpack.c.b16 %v933, %v924
      %v1078 = vpack.c.b16 %v934, %v925
      %v1079 = vpack.c.b16 %v935, %v926
      %v1080 = vpack.c.b16 %v936, %v927
      %v1369 = vunpack.c.l.b16 %v338
      %v1370 = vunpack.c.l.b16 %v339
      %v1371 = vunpack.c.l.b16 %v340
      %v1372 = vunpack.c.l.b16 %v341
      %v1373 = vunpack.c.l.b16 %v342
      %v1374 = vunpack.c.l.b16 %v343
      %v1375 = vunpack.c.l.b16 %v344
      %v1376 = vunpack.c.l.b16 %v345
      %v1377 = vunpack.c.l.b16 %v346
      %v1378 = vunpack.c.l.b16 %v347
      %v1379 = vunpack.c.l.b16 %v348
      %v1380 = vunpack.c.l.b16 %v349
      %v1381 = vunpack.c.l.b16 %v350
      %v1382 = vunpack.c.l.b16 %v351
      %v1383 = vunpack.c.l.b16 %v352
      %v1384 = vunpack.c.l.b16 %v353
      %v1385 = vunpack.c.l.b16 %v354
      %v1386 = vunpack.c.l.b16 %v355
      %v1387 = vunpack.c.l.b16 %v356
      %v1388 = vunpack.c.l.b16 %v357
      %v1389 = vunpack.c.l.b16 %v358
      %v1390 = vunpack.c.l.b16 %v359
      %v1391 = vunpack.c.l.b16 %v360
      %v1392 = vunpack.c.l.b16 %v361
      %v1393 = vunpack.c.l.b16 %v362
      %v1394 = vunpack.c.l.b16 %v363
      %v1395 = vunpack.c.l.b16 %v364
      %v1396 = vunpack.c.l.b16 %v365
      %v1397 = vunpack.c.l.b16 %v366
      %v1398 = vunpack.c.l.b16 %v367
      %v1399 = vunpack.c.l.b16 %v368
      %v1400 = vunpack.c.l.b16 %v369
      %v1401 = vunpack.c.l.b16 %v370
      %v1402 = vunpack.c.l.b16 %v371
      %v1403 = vunpack.c.l.b16 %v372
      %v1404 = vunpack.c.l.b16 %v373
      %v1405 = vunpack.c.l.b16 %v374
      %v1406 = vunpack.c.l.b16 %v375
      %v1407 = vunpack.c.l.b16 %v376
      %v1408 = vunpack.c.l.b16 %v377
      %v1409 = vunpack.c.l.b16 %v378
      %v1410 = vunpack.c.l.b16 %v379
      %v1411 = vunpack.c.l.b16 %v380
      %v1412 = vunpack.c.l.b16 %v381
      %v1413 = vunpack.c.l.b16 %v382
      %v1414 = vunpack.c.l.b16 %v383
      %v1415 = vunpack.c.l.b16 %v384
      %v1416 = vunpack.c.l.b16 %v385
      %v1417 = vunpack.c.l.b16 %v386
      %v1418 = vunpack.c.l.b16 %v387
      %v1419 = vunpack.c.l.b16 %v388
      %v1420 = vunpack.c.l.b16 %v389
      %v1421 = vunpack.c.l.b16 %v390
      %v1422 = vunpack.c.l.b16 %v391
      %v1423 = vunpack.c.l.b16 %v392
      %v1424 = vunpack.c.l.b16 %v393
      %v1425 = vunpack.c.l.b16 %v394
      %v1426 = vunpack.c.l.b16 %v395
      %v1427 = vunpack.c.l.b16 %v396
      %v1428 = vunpack.c.l.b16 %v397
      %v1429 = vunpack.c.l.b16 %v398
      %v1430 = vunpack.c.l.b16 %v399
      %v1431 = vunpack.c.l.b16 %v400
      %v1432 = vunpack.c.l.b16 %v401
      %v1433 = vunpack.c.l.b16 %v402
      %v1434 = vunpack.c.l.b16 %v403
      %v1435 = vunpack.c.l.b16 %v404
      %v1436 = vunpack.c.l.b16 %v405
      %v1437 = vunpack.c.l.b16 %v406
      %v1438 = vunpack.c.l.b16 %v407
      %v1439 = vunpack.c.l.b16 %v408
      %v1440 = vunpack.c.l.b16 %v409
      %v1441 = vunpack.c.l.b16 %v410
      %v1442 = vunpack.c.l.b16 %v411
      %v1443 = vunpack.c.l.b16 %v412
      %v1444 = vunpack.c.l.b16 %v413
      %v1445 = vunpack.c.l.b16 %v414
      %v1446 = vunpack.c.l.b16 %v415
      %v1447 = vunpack.c.l.b16 %v416
      %v1448 = vunpack.c.l.b16 %v417
      %v1449 = vunpack.c.l.b16 %v418
      %v1450 = vunpack.c.l.b16 %v419
      %v1451 = vunpack.c.l.b16 %v420
      %v1452 = vunpack.c.l.b16 %v421
      %v1453 = vunpack.c.l.b16 %v422
      %v1454 = vunpack.c.l.b16 %v423
      %v1455 = vunpack.c.l.b16 %v424
      %v1456 = vunpack.c.l.b16 %v425
      %v1457 = vunpack.c.l.b16 %v426
      %v1458 = vunpack.c.l.b16 %v427
      %v1459 = vunpack.c.l.b16 %v428
      %v1460 = vunpack.c.l.b16 %v429
      %v1461 = vunpack.c.l.b16 %v430
      %v1462 = vunpack.c.l.b16 %v431
      %v1463 = vunpack.c.l.b16 %v432
      %v1464 = vunpack.c.l.b16 %v433
      %v1465 = vunpack.c.l.b16 %v434
      %v1466 = vunpack.c.l.b16 %v435
      %v1467 = vunpack.c.l.b16 %v436
      %v1468 = vunpack.c.l.b16 %v437
      %v1469 = vunpack.c.l.b16 %v438
      %v1470 = vunpack.c.l.b16 %v439
      %v1471 = vunpack.c.l.b16 %v440
      %v1472 = vunpack.c.l.b16 %v441
      %v1473 = vunpack.c.l.b16 %v442
      %v1474 = vunpack.c.l.b16 %v443
      %v1475 = vunpack.c.l.b16 %v444
      %v1476 = vunpack.c.l.b16 %v445
      %v1477 = vunpack.c.l.b16 %v446
      %v1478 = vunpack.c.l.b16 %v447
      %v1479 = vunpack.c.l.b16 %v448
      %v1480 = vunpack.c.l.b16 %v449
      %v1481 = vunpack.c.l.b16 %v450
      %v1482 = vunpack.c.l.b16 %v451
      %v1483 = vunpack.c.l.b16 %v452
      %v1484 = vunpack.c.l.b16 %v453
      %v1485 = vunpack.c.l.b16 %v454
      %v1486 = vunpack.c.l.b16 %v455
      %v1487 = vunpack.c.l.b16 %v456
      %v1488 = vunpack.c.l.b16 %v457
      %v1489 = vunpack.c.l.b16 %v458
      %v1490 = vunpack.c.l.b16 %v459
      %v1491 = vunpack.c.l.b16 %v460
      %v1492 = vunpack.c.l.b16 %v461
      %v1493 = vunpack.c.l.b16 %v462
      %v1494 = vunpack.c.l.b16 %v463
      %v1495 = vunpack.c.l.b16 %v464
      %v1496 = vunpack.c.l.b16 %v465
      %v1497 = vunpack.c.l.b16 %v466
      %v1498 = vunpack.c.l.b16 %v467
      %v1499 = vunpack.c.l.b16 %v468
      %v1500 = vunpack.c.l.b16 %v469
      %v1501 = vunpack.c.l.b16 %v470
      %v1502 = vunpack.c.l.b16 %v471
      %v1503 = vunpack.c.l.b16 %v472
      %v1504 = vunpack.c.l.b16 %v473
      %v1505 = vunpack.c.l.b16 %v474
      %v1506 = vunpack.c.l.b16 %v475
      %v1507 = vunpack.c.l.b16 %v476
      %v1508 = vunpack.c.l.b16 %v477
      %v1509 = vunpack.c.l.b16 %v478
      %v1510 = vunpack.c.l.b16 %v479
      %v1511 = vunpack.c.l.b16 %v480
      %v1512 = vunpack.c.l.b16 %v481
      %v1513 = vpack.c.b16 %v1370, %v1369
      %v1514 = vpack.c.b16 %v1372, %v1371
      %v1515 = vpack.c.b16 %v1374, %v1373
      %v1516 = vpack.c.b16 %v1376, %v1375
      %v1517 = vpack.c.b16 %v1378, %v1377
      %v1518 = vpack.c.b16 %v1380, %v1379
      %v1519 = vpack.c.b16 %v1382, %v1381
      %v1520 = vpack.c.b16 %v1384, %v1383
      %v1521 = vpack.c.b16 %v1386, %v1385
      %v1522 = vpack.c.b16 %v1388, %v1387
      %v1523 = vpack.c.b16 %v1390, %v1389
      %v1524 = vpack.c.b16 %v1392, %v1391
      %v1525 = vpack.c.b16 %v1394, %v1393
      %v1526 = vpack.c.b16 %v1396, %v1395
      %v1527 = vpack.c.b16 %v1398, %v1397
      %v1528 = vpack.c.b16 %v1400, %v1399
      %v1529 = vpack.c.b16 %v1402, %v1401
      %v1530 = vpack.c.b16 %v1404, %v1403
      %v1531 = vpack.c.b16 %v1406, %v1405
      %v1532 = vpack.c.b16 %v1408, %v1407
      %v1533 = vpack.c.b16 %v1410, %v1409
      %v1534 = vpack.c.b16 %v1412, %v1411
      %v1535 = vpack.c.b16 %v1414, %v1413
      %v1536 = vpack.c.b16 %v1416, %v1415
      %v1537 = vpack.c.b16 %v1418, %v1417
      %v1538 = vpack.c.b16 %v1420, %v1419
      %v1539 = vpack.c.b16 %v1422, %v1421
      %v1540 = vpack.c.b16 %v1424, %v1423
      %v1541 = vpack.c.b16 %v1426, %v1425
      %v1542 = vpack.c.b16 %v1428, %v1427
      %v1543 = vpack.c.b16 %v1430, %v1429
      %v1544 = vpack.c.b16 %v1432, %v1431
      %v1545 = vpack.c.b16 %v1434, %v1433
      %v1546 = vpack.c.b16 %v1436, %v1435
      %v1547 = vpack.c.b16 %v1438, %v1437
      %v1548 = vpack.c.b16 %v1440, %v1439
      %v1549 = vpack.c.b16 %v1442, %v1441
      %v1550 = vpack.c.b16 %v1444, %v1443
      %v1551 = vpack.c.b16 %v1446, %v1445
      %v1552 = vpack.c.b16 %v1448, %v1447
      %v1553 = vpack.c.b16 %v1450, %v1449
      %v1554 = vpack.c.b16 %v1452, %v1451
      %v1555 = vpack.c.b16 %v1454, %v1453
      %v1556 = vpack.c.b16 %v1456, %v1455
      %v1557 = vpack.c.b16 %v1458, %v1457
      %v1558 = vpack.c.b16 %v1460, %v1459
      %v1559 = vpack.c.b16 %v1462, %v1461
      %v1560 = vpack.c.b16 %v1464, %v1463
      %v1561 = vpack.c.b16 %v1466, %v1465
      %v1562 = vpack.c.b16 %v1468, %v1467
      %v1563 = vpack.c.b16 %v1470, %v1469
      %v1564 = vpack.c.b16 %v1472, %v1471
      %v1565 = vpack.c.b16 %v1474, %v1473
      %v1566 = vpack.c.b16 %v1476, %v1475
      %v1567 = vpack.c.b16 %v1478, %v1477
      %v1568 = vpack.c.b16 %v1480, %v1479
      %v1569 = vpack.c.b16 %v1482, %v1481
      %v1570 = vpack.c.b16 %v1484, %v1483
      %v1571 = vpack.c.b16 %v1486, %v1485
      %v1572 = vpack.c.b16 %v1488, %v1487
      %v1573 = vpack.c.b16 %v1490, %v1489
      %v1574 = vpack.c.b16 %v1492, %v1491
      %v1575 = vpack.c.b16 %v1494, %v1493
      %v1576 = vpack.c.b16 %v1496, %v1495
      %v1577 = vpack.c.b16 %v1498, %v1497
      %v1578 = vpack.c.b16 %v1500, %v1499
      %v1579 = vpack.c.b16 %v1502, %v1501
      %v1580 = vpack.c.b16 %v1504, %v1503
      %v1581 = vpack.c.b16 %v1506, %v1505
      %v1582 = vpack.c.b16 %v1508, %v1507
      %v1583 = vpack.c.b16 %v1510, %v1509
      %v1584 = vpack.c.b16 %v1512, %v1511
      %1657 = vmatprep.subr.bf16.mxu0 0
      %1658 = vmatpush1.bf16.msra.mxu0 %v1520
      %1659 = vmatprep.subr.bf16.mxu0 0
      %1660 = vmatpush1.bf16.msra.mxu0 %v1519
      %1661 = vmatprep.subr.bf16.mxu0 0
      %1662 = vmatpush1.bf16.msra.mxu0 %v1518
      %1663 = vmatprep.subr.bf16.mxu0 0
      %1664 = vmatpush1.bf16.msra.mxu0 %v1517
      %1665 = vmatprep.subr.bf16.mxu0 0
      %1666 = vmatpush1.bf16.msra.mxu0 %v1516
      %1667 = vmatprep.subr.bf16.mxu0 0
      %1668 = vmatpush1.bf16.msra.mxu0 %v1515
      %1669 = vmatprep.subr.bf16.mxu0 0
      %1670 = vmatpush1.bf16.msra.mxu0 %v1514
      %1671 = vmatprep.subr.bf16.mxu0 0
      %1672 = vmatpush1.bf16.msra.mxu0 %v1513
      %1673 = vmatprep.subr.bf16.mxu0 0
      %1674 = vmatpush2.bf16.msra.mxu0 %v1528
      %1675 = vmatprep.subr.bf16.mxu0 0
      %1676 = vmatpush2.bf16.msra.mxu0 %v1527
      %1677 = vmatprep.subr.bf16.mxu0 0
      %1678 = vmatpush2.bf16.msra.mxu0 %v1526
      %1679 = vmatprep.subr.bf16.mxu0 0
      %1680 = vmatpush2.bf16.msra.mxu0 %v1525
      %1681 = vmatprep.subr.bf16.mxu0 0
      %1682 = vmatpush2.bf16.msra.mxu0 %v1524
      %1683 = vmatprep.subr.bf16.mxu0 0
      %1684 = vmatpush2.bf16.msra.mxu0 %v1523
      %1685 = vmatprep.subr.bf16.mxu0 0
      %1686 = vmatpush2.bf16.msra.mxu0 %v1522
      %1687 = vmatprep.subr.bf16.mxu0 0
      %1688 = vmatpush2.bf16.msra.mxu0 %v1521
      %1689 = vmatprep.mubr.bf16.mxu0 %v938
      %1690 = vmatmul.mubr.bf16.gmra.mxu0 %v937
      %v1691 = vpop.f32.mrf.mxu0
      %v1692 = vadd.f32 %v487, %v1691
      %v1693 = vpop.f32.mrf.mxu0
      %v1694 = vpop.f32.mrf.mxu0
      %v1695 = vadd.f32 %v487, %v1694
      %v1696 = vpop.f32.mrf.mxu0
      %1697 = vmatprep.mubr.bf16.mxu0 %v947
      %1698 = vmatmul.mubr.bf16.gmra.mxu0 %v946
      %v1699 = vpop.f32.mrf.mxu0
      %v1700 = vadd.f32 %v487, %v1699
      %v1701 = vpop.f32.mrf.mxu0
      %v1702 = vpop.f32.mrf.mxu0
      %v1703 = vadd.f32 %v487, %v1702
      %v1704 = vpop.f32.mrf.mxu0
      %1705 = vmatprep.mubr.bf16.mxu0 %v956
      %1706 = vmatmul.mubr.bf16.gmra.mxu0 %v955
      %v1707 = vpop.f32.mrf.mxu0
      %v1708 = vadd.f32 %v487, %v1707
      %v1709 = vpop.f32.mrf.mxu0
      %v1710 = vpop.f32.mrf.mxu0
      %v1711 = vadd.f32 %v487, %v1710
      %v1712 = vpop.f32.mrf.mxu0
      %1713 = vmatprep.mubr.bf16.mxu0 %v965
      %1714 = vmatmul.mubr.bf16.gmra.mxu0 %v964
      %v1715 = vpop.f32.mrf.mxu0
      %v1716 = vadd.f32 %v487, %v1715
      %v1717 = vpop.f32.mrf.mxu0
      %v1718 = vpop.f32.mrf.mxu0
      %v1719 = vadd.f32 %v487, %v1718
      %v1720 = vpop.f32.mrf.mxu0
      %1721 = vmatprep.mubr.bf16.mxu0 %v974
      %1722 = vmatmul.mubr.bf16.gmra.mxu0 %v973
      %v1723 = vpop.f32.mrf.mxu0
      %v1724 = vadd.f32 %v487, %v1723
      %v1725 = vpop.f32.mrf.mxu0
      %v1726 = vpop.f32.mrf.mxu0
      %v1727 = vadd.f32 %v487, %v1726
      %v1728 = vpop.f32.mrf.mxu0
      %1729 = vmatprep.mubr.bf16.mxu0 %v983
      %1730 = vmatmul.mubr.bf16.gmra.mxu0 %v982
      %v1731 = vpop.f32.mrf.mxu0
      %v1732 = vadd.f32 %v487, %v1731
      %v1733 = vpop.f32.mrf.mxu0
      %v1734 = vpop.f32.mrf.mxu0
      %v1735 = vadd.f32 %v487, %v1734
      %v1736 = vpop.f32.mrf.mxu0
      %1737 = vmatprep.mubr.bf16.mxu0 %v992
      %1738 = vmatmul.mubr.bf16.gmra.mxu0 %v991
      %v1739 = vpop.f32.mrf.mxu0
      %v1740 = vadd.f32 %v487, %v1739
      %v1741 = vpop.f32.mrf.mxu0
      %v1742 = vpop.f32.mrf.mxu0
      %v1743 = vadd.f32 %v487, %v1742
      %v1744 = vpop.f32.mrf.mxu0
      %1745 = vmatprep.mubr.bf16.mxu0 %v1001
      %1746 = vmatmul.mubr.bf16.gmra.mxu0 %v1000
      %v1747 = vpop.f32.mrf.mxu0
      %v1748 = vadd.f32 %v487, %v1747
      %v1749 = vpop.f32.mrf.mxu0
      %v1750 = vpop.f32.mrf.mxu0
      %v1751 = vadd.f32 %v487, %v1750
      %v1752 = vpop.f32.mrf.mxu0
      %1753 = vmatprep.mubr.bf16.mxu0 %v1010
      %1754 = vmatmul.mubr.bf16.gmra.mxu0 %v1009
      %v1755 = vpop.f32.mrf.mxu0
      %v1756 = vadd.f32 %v487, %v1755
      %v1757 = vpop.f32.mrf.mxu0
      %v1758 = vpop.f32.mrf.mxu0
      %v1759 = vadd.f32 %v487, %v1758
      %v1760 = vpop.f32.mrf.mxu0
      %1761 = vmatprep.mubr.bf16.mxu0 %v1019
      %1762 = vmatmul.mubr.bf16.gmra.mxu0 %v1018
      %v1763 = vpop.f32.mrf.mxu0
      %v1764 = vadd.f32 %v487, %v1763
      %v1765 = vpop.f32.mrf.mxu0
      %v1766 = vpop.f32.mrf.mxu0
      %v1767 = vadd.f32 %v487, %v1766
      %v1768 = vpop.f32.mrf.mxu0
      %1769 = vmatprep.mubr.bf16.mxu0 %v1028
      %1770 = vmatmul.mubr.bf16.gmra.mxu0 %v1027
      %v1771 = vpop.f32.mrf.mxu0
      %v1772 = vadd.f32 %v487, %v1771
      %v1773 = vpop.f32.mrf.mxu0
      %v1774 = vpop.f32.mrf.mxu0
      %v1775 = vadd.f32 %v487, %v1774
      %v1776 = vpop.f32.mrf.mxu0
      %1777 = vmatprep.mubr.bf16.mxu0 %v1037
      %1778 = vmatmul.mubr.bf16.gmra.mxu0 %v1036
      %v1779 = vpop.f32.mrf.mxu0
      %v1780 = vadd.f32 %v487, %v1779
      %v1781 = vpop.f32.mrf.mxu0
      %v1782 = vpop.f32.mrf.mxu0
      %v1783 = vadd.f32 %v487, %v1782
      %v1784 = vpop.f32.mrf.mxu0
      %1785 = vmatprep.mubr.bf16.mxu0 %v1046
      %1786 = vmatmul.mubr.bf16.gmra.mxu0 %v1045
      %v1787 = vpop.f32.mrf.mxu0
      %v1788 = vadd.f32 %v487, %v1787
      %v1789 = vpop.f32.mrf.mxu0
      %v1790 = vpop.f32.mrf.mxu0
      %v1791 = vadd.f32 %v487, %v1790
      %v1792 = vpop.f32.mrf.mxu0
      %1793 = vmatprep.mubr.bf16.mxu0 %v1055
      %1794 = vmatmul.mubr.bf16.gmra.mxu0 %v1054
      %v1795 = vpop.f32.mrf.mxu0
      %v1796 = vadd.f32 %v487, %v1795
      %v1797 = vpop.f32.mrf.mxu0
      %v1798 = vpop.f32.mrf.mxu0
      %v1799 = vadd.f32 %v487, %v1798
      %v1800 = vpop.f32.mrf.mxu0
      %1801 = vmatprep.mubr.bf16.mxu0 %v1064
      %1802 = vmatmul.mubr.bf16.gmra.mxu0 %v1063
      %v1803 = vpop.f32.mrf.mxu0
      %v1804 = vadd.f32 %v487, %v1803
      %v1805 = vpop.f32.mrf.mxu0
      %v1806 = vpop.f32.mrf.mxu0
      %v1807 = vadd.f32 %v487, %v1806
      %v1808 = vpop.f32.mrf.mxu0
      %1809 = vmatprep.mubr.bf16.mxu0 %v1073
      %1810 = vmatmul.mubr.bf16.gmra.mxu0 %v1072
      %v1811 = vpop.f32.mrf.mxu0
      %v1812 = vadd.f32 %v487, %v1811
      %v1813 = vpop.f32.mrf.mxu0
      %v1814 = vpop.f32.mrf.mxu0
      %v1815 = vadd.f32 %v487, %v1814
      %v1816 = vpop.f32.mrf.mxu0
      %1817 = vdwg.mxu0
      %1818 = vmatprep.subr.bf16.mxu0 0
      %1819 = vmatpush1.bf16.msra.mxu0 %v1536
      %1820 = vmatprep.subr.bf16.mxu0 0
      %1821 = vmatpush1.bf16.msra.mxu0 %v1535
      %1822 = vmatprep.subr.bf16.mxu0 0
      %1823 = vmatpush1.bf16.msra.mxu0 %v1534
      %1824 = vmatprep.subr.bf16.mxu0 0
      %1825 = vmatpush1.bf16.msra.mxu0 %v1533
      %1826 = vmatprep.subr.bf16.mxu0 0
      %1827 = vmatpush1.bf16.msra.mxu0 %v1532
      %1828 = vmatprep.subr.bf16.mxu0 0
      %1829 = vmatpush1.bf16.msra.mxu0 %v1531
      %1830 = vmatprep.subr.bf16.mxu0 0
      %1831 = vmatpush1.bf16.msra.mxu0 %v1530
      %1832 = vmatprep.subr.bf16.mxu0 0
      %1833 = vmatpush1.bf16.msra.mxu0 %v1529
      %1834 = vmatprep.subr.bf16.mxu0 0
      %1835 = vmatpush2.bf16.msra.mxu0 %v1544
      %1836 = vmatprep.subr.bf16.mxu0 0
      %1837 = vmatpush2.bf16.msra.mxu0 %v1543
      %1838 = vmatprep.subr.bf16.mxu0 0
      %1839 = vmatpush2.bf16.msra.mxu0 %v1542
      %1840 = vmatprep.subr.bf16.mxu0 0
      %1841 = vmatpush2.bf16.msra.mxu0 %v1541
      %1842 = vmatprep.subr.bf16.mxu0 0
      %1843 = vmatpush2.bf16.msra.mxu0 %v1540
      %1844 = vmatprep.subr.bf16.mxu0 0
      %1845 = vmatpush2.bf16.msra.mxu0 %v1539
      %1846 = vmatprep.subr.bf16.mxu0 0
      %1847 = vmatpush2.bf16.msra.mxu0 %v1538
      %1848 = vmatprep.subr.bf16.mxu0 0
      %1849 = vmatpush2.bf16.msra.mxu0 %v1537
      %1850 = vmatprep.mubr.bf16.mxu0 %v940
      %1851 = vmatmul.mubr.bf16.gmra.mxu0 %v939
      %v1852 = vpop.f32.mrf.mxu0
      %v1853 = vadd.f32 %v1692, %v1852
      %v1854 = vpop.f32.mrf.mxu0
      %v1855 = vpop.f32.mrf.mxu0
      %v1856 = vadd.f32 %v1695, %v1855
      %v1857 = vpop.f32.mrf.mxu0
      %1858 = vmatprep.mubr.bf16.mxu0 %v949
      %1859 = vmatmul.mubr.bf16.gmra.mxu0 %v948
      %v1860 = vpop.f32.mrf.mxu0
      %v1861 = vadd.f32 %v1700, %v1860
      %v1862 = vpop.f32.mrf.mxu0
      %v1863 = vpop.f32.mrf.mxu0
      %v1864 = vadd.f32 %v1703, %v1863
      %v1865 = vpop.f32.mrf.mxu0
      %1866 = vmatprep.mubr.bf16.mxu0 %v958
      %1867 = vmatmul.mubr.bf16.gmra.mxu0 %v957
      %v1868 = vpop.f32.mrf.mxu0
      %v1869 = vadd.f32 %v1708, %v1868
      %v1870 = vpop.f32.mrf.mxu0
      %v1871 = vpop.f32.mrf.mxu0
      %v1872 = vadd.f32 %v1711, %v1871
      %v1873 = vpop.f32.mrf.mxu0
      %1874 = vmatprep.mubr.bf16.mxu0 %v967
      %1875 = vmatmul.mubr.bf16.gmra.mxu0 %v966
      %v1876 = vpop.f32.mrf.mxu0
      %v1877 = vadd.f32 %v1716, %v1876
      %v1878 = vpop.f32.mrf.mxu0
      %v1879 = vpop.f32.mrf.mxu0
      %v1880 = vadd.f32 %v1719, %v1879
      %v1881 = vpop.f32.mrf.mxu0
      %1882 = vmatprep.mubr.bf16.mxu0 %v976
      %1883 = vmatmul.mubr.bf16.gmra.mxu0 %v975
      %v1884 = vpop.f32.mrf.mxu0
      %v1885 = vadd.f32 %v1724, %v1884
      %v1886 = vpop.f32.mrf.mxu0
      %v1887 = vpop.f32.mrf.mxu0
      %v1888 = vadd.f32 %v1727, %v1887
      %v1889 = vpop.f32.mrf.mxu0
      %1890 = vmatprep.mubr.bf16.mxu0 %v985
      %1891 = vmatmul.mubr.bf16.gmra.mxu0 %v984
      %v1892 = vpop.f32.mrf.mxu0
      %v1893 = vadd.f32 %v1732, %v1892
      %v1894 = vpop.f32.mrf.mxu0
      %v1895 = vpop.f32.mrf.mxu0
      %v1896 = vadd.f32 %v1735, %v1895
      %v1897 = vpop.f32.mrf.mxu0
      %1898 = vmatprep.mubr.bf16.mxu0 %v994
      %1899 = vmatmul.mubr.bf16.gmra.mxu0 %v993
      %v1900 = vpop.f32.mrf.mxu0
      %v1901 = vadd.f32 %v1740, %v1900
      %v1902 = vpop.f32.mrf.mxu0
      %v1903 = vpop.f32.mrf.mxu0
      %v1904 = vadd.f32 %v1743, %v1903
      %v1905 = vpop.f32.mrf.mxu0
      %1906 = vmatprep.mubr.bf16.mxu0 %v1003
      %1907 = vmatmul.mubr.bf16.gmra.mxu0 %v1002
      %v1908 = vpop.f32.mrf.mxu0
      %v1909 = vadd.f32 %v1748, %v1908
      %v1910 = vpop.f32.mrf.mxu0
      %v1911 = vpop.f32.mrf.mxu0
      %v1912 = vadd.f32 %v1751, %v1911
      %v1913 = vpop.f32.mrf.mxu0
      %1914 = vmatprep.mubr.bf16.mxu0 %v1012
      %1915 = vmatmul.mubr.bf16.gmra.mxu0 %v1011
      %v1916 = vpop.f32.mrf.mxu0
      %v1917 = vadd.f32 %v1756, %v1916
      %v1918 = vpop.f32.mrf.mxu0
      %v1919 = vpop.f32.mrf.mxu0
      %v1920 = vadd.f32 %v1759, %v1919
      %v1921 = vpop.f32.mrf.mxu0
      %1922 = vmatprep.mubr.bf16.mxu0 %v1021
      %1923 = vmatmul.mubr.bf16.gmra.mxu0 %v1020
      %v1924 = vpop.f32.mrf.mxu0
      %v1925 = vadd.f32 %v1764, %v1924
      %v1926 = vpop.f32.mrf.mxu0
      %v1927 = vpop.f32.mrf.mxu0
      %v1928 = vadd.f32 %v1767, %v1927
      %v1929 = vpop.f32.mrf.mxu0
      %1930 = vmatprep.mubr.bf16.mxu0 %v1030
      %1931 = vmatmul.mubr.bf16.gmra.mxu0 %v1029
      %v1932 = vpop.f32.mrf.mxu0
      %v1933 = vadd.f32 %v1772, %v1932
      %v1934 = vpop.f32.mrf.mxu0
      %v1935 = vpop.f32.mrf.mxu0
      %v1936 = vadd.f32 %v1775, %v1935
      %v1937 = vpop.f32.mrf.mxu0
      %1938 = vmatprep.mubr.bf16.mxu0 %v1039
      %1939 = vmatmul.mubr.bf16.gmra.mxu0 %v1038
      %v1940 = vpop.f32.mrf.mxu0
      %v1941 = vadd.f32 %v1780, %v1940
      %v1942 = vpop.f32.mrf.mxu0
      %v1943 = vpop.f32.mrf.mxu0
      %v1944 = vadd.f32 %v1783, %v1943
      %v1945 = vpop.f32.mrf.mxu0
      %1946 = vmatprep.mubr.bf16.mxu0 %v1048
      %1947 = vmatmul.mubr.bf16.gmra.mxu0 %v1047
      %v1948 = vpop.f32.mrf.mxu0
      %v1949 = vadd.f32 %v1788, %v1948
      %v1950 = vpop.f32.mrf.mxu0
      %v1951 = vpop.f32.mrf.mxu0
      %v1952 = vadd.f32 %v1791, %v1951
      %v1953 = vpop.f32.mrf.mxu0
      %1954 = vmatprep.mubr.bf16.mxu0 %v1057
      %1955 = vmatmul.mubr.bf16.gmra.mxu0 %v1056
      %v1956 = vpop.f32.mrf.mxu0
      %v1957 = vadd.f32 %v1796, %v1956
      %v1958 = vpop.f32.mrf.mxu0
      %v1959 = vpop.f32.mrf.mxu0
      %v1960 = vadd.f32 %v1799, %v1959
      %v1961 = vpop.f32.mrf.mxu0
      %1962 = vmatprep.mubr.bf16.mxu0 %v1066
      %1963 = vmatmul.mubr.bf16.gmra.mxu0 %v1065
      %v1964 = vpop.f32.mrf.mxu0
      %v1965 = vadd.f32 %v1804, %v1964
      %v1966 = vpop.f32.mrf.mxu0
      %v1967 = vpop.f32.mrf.mxu0
      %v1968 = vadd.f32 %v1807, %v1967
      %v1969 = vpop.f32.mrf.mxu0
      %1970 = vmatprep.mubr.bf16.mxu0 %v1075
      %1971 = vmatmul.mubr.bf16.gmra.mxu0 %v1074
      %v1972 = vpop.f32.mrf.mxu0
      %v1973 = vadd.f32 %v1812, %v1972
      %v1974 = vpop.f32.mrf.mxu0
      %v1975 = vpop.f32.mrf.mxu0
      %v1976 = vadd.f32 %v1815, %v1975
      %v1977 = vpop.f32.mrf.mxu0
      %1978 = vdwg.mxu0
      %1979 = vmatprep.subr.bf16.mxu0 0
      %1980 = vmatpush1.bf16.msra.mxu0 %v1552
      %1981 = vmatprep.subr.bf16.mxu0 0
      %1982 = vmatpush1.bf16.msra.mxu0 %v1551
      %1983 = vmatprep.subr.bf16.mxu0 0
      %1984 = vmatpush1.bf16.msra.mxu0 %v1550
      %1985 = vmatprep.subr.bf16.mxu0 0
      %1986 = vmatpush1.bf16.msra.mxu0 %v1549
      %1987 = vmatprep.subr.bf16.mxu0 0
      %1988 = vmatpush1.bf16.msra.mxu0 %v1548
      %1989 = vmatprep.subr.bf16.mxu0 0
      %1990 = vmatpush1.bf16.msra.mxu0 %v1547
      %1991 = vmatprep.subr.bf16.mxu0 0
      %1992 = vmatpush1.bf16.msra.mxu0 %v1546
      %1993 = vmatprep.subr.bf16.mxu0 0
      %1994 = vmatpush1.bf16.msra.mxu0 %v1545
      %1995 = vmatprep.subr.bf16.mxu0 0
      %1996 = vmatpush2.bf16.msra.mxu0 %v1560
      %1997 = vmatprep.subr.bf16.mxu0 0
      %1998 = vmatpush2.bf16.msra.mxu0 %v1559
      %1999 = vmatprep.subr.bf16.mxu0 0
      %2000 = vmatpush2.bf16.msra.mxu0 %v1558
      %2001 = vmatprep.subr.bf16.mxu0 0
      %2002 = vmatpush2.bf16.msra.mxu0 %v1557
      %2003 = vmatprep.subr.bf16.mxu0 0
      %2004 = vmatpush2.bf16.msra.mxu0 %v1556
      %2005 = vmatprep.subr.bf16.mxu0 0
      %2006 = vmatpush2.bf16.msra.mxu0 %v1555
      %2007 = vmatprep.subr.bf16.mxu0 0
      %2008 = vmatpush2.bf16.msra.mxu0 %v1554
      %2009 = vmatprep.subr.bf16.mxu0 0
      %2010 = vmatpush2.bf16.msra.mxu0 %v1553
      %2011 = vmatprep.mubr.bf16.mxu0 %v942
      %2012 = vmatmul.mubr.bf16.gmra.mxu0 %v941
      %v2013 = vpop.f32.mrf.mxu0
      %v2014 = vadd.f32 %v1853, %v2013
      %v2015 = vpop.f32.mrf.mxu0
      %v2016 = vpop.f32.mrf.mxu0
      %v2017 = vadd.f32 %v1856, %v2016
      %v2018 = vpop.f32.mrf.mxu0
      %2019 = vmatprep.mubr.bf16.mxu0 %v951
      %2020 = vmatmul.mubr.bf16.gmra.mxu0 %v950
      %v2021 = vpop.f32.mrf.mxu0
      %v2022 = vadd.f32 %v1861, %v2021
      %v2023 = vpop.f32.mrf.mxu0
      %v2024 = vpop.f32.mrf.mxu0
      %v2025 = vadd.f32 %v1864, %v2024
      %v2026 = vpop.f32.mrf.mxu0
      %2027 = vmatprep.mubr.bf16.mxu0 %v960
      %2028 = vmatmul.mubr.bf16.gmra.mxu0 %v959
      %v2029 = vpop.f32.mrf.mxu0
      %v2030 = vadd.f32 %v1869, %v2029
      %v2031 = vpop.f32.mrf.mxu0
      %v2032 = vpop.f32.mrf.mxu0
      %v2033 = vadd.f32 %v1872, %v2032
      %v2034 = vpop.f32.mrf.mxu0
      %2035 = vmatprep.mubr.bf16.mxu0 %v969
      %2036 = vmatmul.mubr.bf16.gmra.mxu0 %v968
      %v2037 = vpop.f32.mrf.mxu0
      %v2038 = vadd.f32 %v1877, %v2037
      %v2039 = vpop.f32.mrf.mxu0
      %v2040 = vpop.f32.mrf.mxu0
      %v2041 = vadd.f32 %v1880, %v2040
      %v2042 = vpop.f32.mrf.mxu0
      %2043 = vmatprep.mubr.bf16.mxu0 %v978
      %2044 = vmatmul.mubr.bf16.gmra.mxu0 %v977
      %v2045 = vpop.f32.mrf.mxu0
      %v2046 = vadd.f32 %v1885, %v2045
      %v2047 = vpop.f32.mrf.mxu0
      %v2048 = vpop.f32.mrf.mxu0
      %v2049 = vadd.f32 %v1888, %v2048
      %v2050 = vpop.f32.mrf.mxu0
      %2051 = vmatprep.mubr.bf16.mxu0 %v987
      %2052 = vmatmul.mubr.bf16.gmra.mxu0 %v986
      %v2053 = vpop.f32.mrf.mxu0
      %v2054 = vadd.f32 %v1893, %v2053
      %v2055 = vpop.f32.mrf.mxu0
      %v2056 = vpop.f32.mrf.mxu0
      %v2057 = vadd.f32 %v1896, %v2056
      %v2058 = vpop.f32.mrf.mxu0
      %2059 = vmatprep.mubr.bf16.mxu0 %v996
      %2060 = vmatmul.mubr.bf16.gmra.mxu0 %v995
      %v2061 = vpop.f32.mrf.mxu0
      %v2062 = vadd.f32 %v1901, %v2061
      %v2063 = vpop.f32.mrf.mxu0
      %v2064 = vpop.f32.mrf.mxu0
      %v2065 = vadd.f32 %v1904, %v2064
      %v2066 = vpop.f32.mrf.mxu0
      %2067 = vmatprep.mubr.bf16.mxu0 %v1005
      %2068 = vmatmul.mubr.bf16.gmra.mxu0 %v1004
      %v2069 = vpop.f32.mrf.mxu0
      %v2070 = vadd.f32 %v1909, %v2069
      %v2071 = vpop.f32.mrf.mxu0
      %v2072 = vpop.f32.mrf.mxu0
      %v2073 = vadd.f32 %v1912, %v2072
      %v2074 = vpop.f32.mrf.mxu0
      %2075 = vmatprep.mubr.bf16.mxu0 %v1014
      %2076 = vmatmul.mubr.bf16.gmra.mxu0 %v1013
      %v2077 = vpop.f32.mrf.mxu0
      %v2078 = vadd.f32 %v1917, %v2077
      %v2079 = vpop.f32.mrf.mxu0
      %v2080 = vpop.f32.mrf.mxu0
      %v2081 = vadd.f32 %v1920, %v2080
      %v2082 = vpop.f32.mrf.mxu0
      %2083 = vmatprep.mubr.bf16.mxu0 %v1023
      %2084 = vmatmul.mubr.bf16.gmra.mxu0 %v1022
      %v2085 = vpop.f32.mrf.mxu0
      %v2086 = vadd.f32 %v1925, %v2085
      %v2087 = vpop.f32.mrf.mxu0
      %v2088 = vpop.f32.mrf.mxu0
      %v2089 = vadd.f32 %v1928, %v2088
      %v2090 = vpop.f32.mrf.mxu0
      %2091 = vmatprep.mubr.bf16.mxu0 %v1032
      %2092 = vmatmul.mubr.bf16.gmra.mxu0 %v1031
      %v2093 = vpop.f32.mrf.mxu0
      %v2094 = vadd.f32 %v1933, %v2093
      %v2095 = vpop.f32.mrf.mxu0
      %v2096 = vpop.f32.mrf.mxu0
      %v2097 = vadd.f32 %v1936, %v2096
      %v2098 = vpop.f32.mrf.mxu0
      %2099 = vmatprep.mubr.bf16.mxu0 %v1041
      %2100 = vmatmul.mubr.bf16.gmra.mxu0 %v1040
      %v2101 = vpop.f32.mrf.mxu0
      %v2102 = vadd.f32 %v1941, %v2101
      %v2103 = vpop.f32.mrf.mxu0
      %v2104 = vpop.f32.mrf.mxu0
      %v2105 = vadd.f32 %v1944, %v2104
      %v2106 = vpop.f32.mrf.mxu0
      %2107 = vmatprep.mubr.bf16.mxu0 %v1050
      %2108 = vmatmul.mubr.bf16.gmra.mxu0 %v1049
      %v2109 = vpop.f32.mrf.mxu0
      %v2110 = vadd.f32 %v1949, %v2109
      %v2111 = vpop.f32.mrf.mxu0
      %v2112 = vpop.f32.mrf.mxu0
      %v2113 = vadd.f32 %v1952, %v2112
      %v2114 = vpop.f32.mrf.mxu0
      %2115 = vmatprep.mubr.bf16.mxu0 %v1059
      %2116 = vmatmul.mubr.bf16.gmra.mxu0 %v1058
      %v2117 = vpop.f32.mrf.mxu0
      %v2118 = vadd.f32 %v1957, %v2117
      %v2119 = vpop.f32.mrf.mxu0
      %v2120 = vpop.f32.mrf.mxu0
      %v2121 = vadd.f32 %v1960, %v2120
      %v2122 = vpop.f32.mrf.mxu0
      %2123 = vmatprep.mubr.bf16.mxu0 %v1068
      %2124 = vmatmul.mubr.bf16.gmra.mxu0 %v1067
      %v2125 = vpop.f32.mrf.mxu0
      %v2126 = vadd.f32 %v1965, %v2125
      %v2127 = vpop.f32.mrf.mxu0
      %v2128 = vpop.f32.mrf.mxu0
      %v2129 = vadd.f32 %v1968, %v2128
      %v2130 = vpop.f32.mrf.mxu0
      %2131 = vmatprep.mubr.bf16.mxu0 %v1077
      %2132 = vmatmul.mubr.bf16.gmra.mxu0 %v1076
      %v2133 = vpop.f32.mrf.mxu0
      %v2134 = vadd.f32 %v1973, %v2133
      %v2135 = vpop.f32.mrf.mxu0
      %v2136 = vpop.f32.mrf.mxu0
      %v2137 = vadd.f32 %v1976, %v2136
      %v2138 = vpop.f32.mrf.mxu0
      %2139 = vdwg.mxu0
      %2140 = vmatprep.subr.bf16.mxu0 0
      %2141 = vmatpush1.bf16.msra.mxu0 %v1568
      %2142 = vmatprep.subr.bf16.mxu0 0
      %2143 = vmatpush1.bf16.msra.mxu0 %v1567
      %2144 = vmatprep.subr.bf16.mxu0 0
      %2145 = vmatpush1.bf16.msra.mxu0 %v1566
      %2146 = vmatprep.subr.bf16.mxu0 0
      %2147 = vmatpush1.bf16.msra.mxu0 %v1565
      %2148 = vmatprep.subr.bf16.mxu0 0
      %2149 = vmatpush1.bf16.msra.mxu0 %v1564
      %2150 = vmatprep.subr.bf16.mxu0 0
      %2151 = vmatpush1.bf16.msra.mxu0 %v1563
      %2152 = vmatprep.subr.bf16.mxu0 0
      %2153 = vmatpush1.bf16.msra.mxu0 %v1562
      %2154 = vmatprep.subr.bf16.mxu0 0
      %2155 = vmatpush1.bf16.msra.mxu0 %v1561
      %2156 = vmatprep.subr.bf16.mxu0 0
      %2157 = vmatpush2.bf16.msra.mxu0 %v1576
      %2158 = vmatprep.subr.bf16.mxu0 0
      %2159 = vmatpush2.bf16.msra.mxu0 %v1575
      %2160 = vmatprep.subr.bf16.mxu0 0
      %2161 = vmatpush2.bf16.msra.mxu0 %v1574
      %2162 = vmatprep.subr.bf16.mxu0 0
      %2163 = vmatpush2.bf16.msra.mxu0 %v1573
      %2164 = vmatprep.subr.bf16.mxu0 0
      %2165 = vmatpush2.bf16.msra.mxu0 %v1572
      %2166 = vmatprep.subr.bf16.mxu0 0
      %2167 = vmatpush2.bf16.msra.mxu0 %v1571
      %2168 = vmatprep.subr.bf16.mxu0 0
      %2169 = vmatpush2.bf16.msra.mxu0 %v1570
      %2170 = vmatprep.subr.bf16.mxu0 0
      %2171 = vmatpush2.bf16.msra.mxu0 %v1569
      %2172 = vmatprep.mubr.bf16.mxu0 %v944
      %2173 = vmatmul.mubr.bf16.gmra.mxu0 %v943
      %v2174 = vpop.f32.mrf.mxu0
      %v2175 = vadd.f32 %v2014, %v2174
      %v2176 = vpop.f32.mrf.mxu0
      %v2177 = vpop.f32.mrf.mxu0
      %v2178 = vadd.f32 %v2017, %v2177
      %v2179 = vpop.f32.mrf.mxu0
      %2180 = vmatprep.mubr.bf16.mxu0 %v953
      %2181 = vmatmul.mubr.bf16.gmra.mxu0 %v952
      %v2182 = vpop.f32.mrf.mxu0
      %v2183 = vadd.f32 %v2022, %v2182
      %v2184 = vpop.f32.mrf.mxu0
      %v2185 = vpop.f32.mrf.mxu0
      %v2186 = vadd.f32 %v2025, %v2185
      %v2187 = vpop.f32.mrf.mxu0
      %2188 = vmatprep.mubr.bf16.mxu0 %v962
      %2189 = vmatmul.mubr.bf16.gmra.mxu0 %v961
      %v2190 = vpop.f32.mrf.mxu0
      %v2191 = vadd.f32 %v2030, %v2190
      %v2192 = vpop.f32.mrf.mxu0
      %v2193 = vpop.f32.mrf.mxu0
      %v2194 = vadd.f32 %v2033, %v2193
      %v2195 = vpop.f32.mrf.mxu0
      %2196 = vmatprep.mubr.bf16.mxu0 %v971
      %2197 = vmatmul.mubr.bf16.gmra.mxu0 %v970
      %v2198 = vpop.f32.mrf.mxu0
      %v2199 = vadd.f32 %v2038, %v2198
      %v2200 = vpop.f32.mrf.mxu0
      %v2201 = vpop.f32.mrf.mxu0
      %v2202 = vadd.f32 %v2041, %v2201
      %v2203 = vpop.f32.mrf.mxu0
      %2204 = vmatprep.mubr.bf16.mxu0 %v980
      %2205 = vmatmul.mubr.bf16.gmra.mxu0 %v979
      %v2206 = vpop.f32.mrf.mxu0
      %v2207 = vadd.f32 %v2046, %v2206
      %v2208 = vpop.f32.mrf.mxu0
      %v2209 = vpop.f32.mrf.mxu0
      %v2210 = vadd.f32 %v2049, %v2209
      %v2211 = vpop.f32.mrf.mxu0
      %2212 = vmatprep.mubr.bf16.mxu0 %v989
      %2213 = vmatmul.mubr.bf16.gmra.mxu0 %v988
      %v2214 = vpop.f32.mrf.mxu0
      %v2215 = vadd.f32 %v2054, %v2214
      %v2216 = vpop.f32.mrf.mxu0
      %v2217 = vpop.f32.mrf.mxu0
      %v2218 = vadd.f32 %v2057, %v2217
      %v2219 = vpop.f32.mrf.mxu0
      %2220 = vmatprep.mubr.bf16.mxu0 %v998
      %2221 = vmatmul.mubr.bf16.gmra.mxu0 %v997
      %v2222 = vpop.f32.mrf.mxu0
      %v2223 = vadd.f32 %v2062, %v2222
      %v2224 = vpop.f32.mrf.mxu0
      %v2225 = vpop.f32.mrf.mxu0
      %v2226 = vadd.f32 %v2065, %v2225
      %v2227 = vpop.f32.mrf.mxu0
      %2228 = vmatprep.mubr.bf16.mxu0 %v1007
      %2229 = vmatmul.mubr.bf16.gmra.mxu0 %v1006
      %v2230 = vpop.f32.mrf.mxu0
      %v2231 = vadd.f32 %v2070, %v2230
      %v2232 = vpop.f32.mrf.mxu0
      %v2233 = vpop.f32.mrf.mxu0
      %v2234 = vadd.f32 %v2073, %v2233
      %v2235 = vpop.f32.mrf.mxu0
      %2236 = vmatprep.mubr.bf16.mxu0 %v1016
      %2237 = vmatmul.mubr.bf16.gmra.mxu0 %v1015
      %v2238 = vpop.f32.mrf.mxu0
      %v2239 = vadd.f32 %v2078, %v2238
      %v2240 = vpop.f32.mrf.mxu0
      %v2241 = vpop.f32.mrf.mxu0
      %v2242 = vadd.f32 %v2081, %v2241
      %v2243 = vpop.f32.mrf.mxu0
      %2244 = vmatprep.mubr.bf16.mxu0 %v1025
      %2245 = vmatmul.mubr.bf16.gmra.mxu0 %v1024
      %v2246 = vpop.f32.mrf.mxu0
      %v2247 = vadd.f32 %v2086, %v2246
      %v2248 = vpop.f32.mrf.mxu0
      %v2249 = vpop.f32.mrf.mxu0
      %v2250 = vadd.f32 %v2089, %v2249
      %v2251 = vpop.f32.mrf.mxu0
      %2252 = vmatprep.mubr.bf16.mxu0 %v1034
      %2253 = vmatmul.mubr.bf16.gmra.mxu0 %v1033
      %v2254 = vpop.f32.mrf.mxu0
      %v2255 = vadd.f32 %v2094, %v2254
      %v2256 = vpop.f32.mrf.mxu0
      %v2257 = vpop.f32.mrf.mxu0
      %v2258 = vadd.f32 %v2097, %v2257
      %v2259 = vpop.f32.mrf.mxu0
      %2260 = vmatprep.mubr.bf16.mxu0 %v1043
      %2261 = vmatmul.mubr.bf16.gmra.mxu0 %v1042
      %v2262 = vpop.f32.mrf.mxu0
      %v2263 = vadd.f32 %v2102, %v2262
      %v2264 = vpop.f32.mrf.mxu0
      %v2265 = vpop.f32.mrf.mxu0
      %v2266 = vadd.f32 %v2105, %v2265
      %v2267 = vpop.f32.mrf.mxu0
      %2268 = vmatprep.mubr.bf16.mxu0 %v1052
      %2269 = vmatmul.mubr.bf16.gmra.mxu0 %v1051
      %v2270 = vpop.f32.mrf.mxu0
      %v2271 = vadd.f32 %v2110, %v2270
      %v2272 = vpop.f32.mrf.mxu0
      %v2273 = vpop.f32.mrf.mxu0
      %v2274 = vadd.f32 %v2113, %v2273
      %v2275 = vpop.f32.mrf.mxu0
      %2276 = vmatprep.mubr.bf16.mxu0 %v1061
      %2277 = vmatmul.mubr.bf16.gmra.mxu0 %v1060
      %v2278 = vpop.f32.mrf.mxu0
      %v2279 = vadd.f32 %v2118, %v2278
      %v2280 = vpop.f32.mrf.mxu0
      %v2281 = vpop.f32.mrf.mxu0
      %v2282 = vadd.f32 %v2121, %v2281
      %v2283 = vpop.f32.mrf.mxu0
      %2284 = vmatprep.mubr.bf16.mxu0 %v1070
      %2285 = vmatmul.mubr.bf16.gmra.mxu0 %v1069
      %v2286 = vpop.f32.mrf.mxu0
      %v2287 = vadd.f32 %v2126, %v2286
      %v2288 = vpop.f32.mrf.mxu0
      %v2289 = vpop.f32.mrf.mxu0
      %v2290 = vadd.f32 %v2129, %v2289
      %v2291 = vpop.f32.mrf.mxu0
      %2292 = vmatprep.mubr.bf16.mxu0 %v1079
      %2293 = vmatmul.mubr.bf16.gmra.mxu0 %v1078
      %v2294 = vpop.f32.mrf.mxu0
      %v2295 = vadd.f32 %v2134, %v2294
      %v2296 = vpop.f32.mrf.mxu0
      %v2297 = vpop.f32.mrf.mxu0
      %v2298 = vadd.f32 %v2137, %v2297
      %v2299 = vpop.f32.mrf.mxu0
      %2300 = vdwg.mxu0
      %2301 = vmatprep.subr.bf16.mxu0 0
      %2302 = vmatpush1.bf16.msra.mxu0 %v1584
      %2303 = vmatprep.subr.bf16.mxu0 0
      %2304 = vmatpush1.bf16.msra.mxu0 %v1583
      %2305 = vmatprep.subr.bf16.mxu0 0
      %2306 = vmatpush1.bf16.msra.mxu0 %v1582
      %2307 = vmatprep.subr.bf16.mxu0 0
      %2308 = vmatpush1.bf16.msra.mxu0 %v1581
      %2309 = vmatprep.subr.bf16.mxu0 0
      %2310 = vmatpush1.bf16.msra.mxu0 %v1580
      %2311 = vmatprep.subr.bf16.mxu0 0
      %2312 = vmatpush1.bf16.msra.mxu0 %v1579
      %2313 = vmatprep.subr.bf16.mxu0 0
      %2314 = vmatpush1.bf16.msra.mxu0 %v1578
      %2315 = vmatprep.subr.bf16.mxu0 0
      %2316 = vmatpush1.bf16.msra.mxu0 %v1577
      %2317 = vmatprep.subr.bf16.mxu0 0
      %2318 = vmatpush2.bf16.msra.mxu0 0
      %2319 = vmatprep.subr.bf16.mxu0 0
      %2320 = vmatpush2.bf16.msra.mxu0 0
      %2321 = vmatprep.subr.bf16.mxu0 0
      %2322 = vmatpush2.bf16.msra.mxu0 0
      %2323 = vmatprep.subr.bf16.mxu0 0
      %2324 = vmatpush2.bf16.msra.mxu0 0
      %2325 = vmatprep.subr.bf16.mxu0 0
      %2326 = vmatpush2.bf16.msra.mxu0 0
      %2327 = vmatprep.subr.bf16.mxu0 0
      %2328 = vmatpush2.bf16.msra.mxu0 0
      %2329 = vmatprep.subr.bf16.mxu0 0
      %2330 = vmatpush2.bf16.msra.mxu0 0
      %2331 = vmatprep.subr.bf16.mxu0 0
      %2332 = vmatpush2.bf16.msra.mxu0 0
      %2333 = vmatprep.mubr.bf16.mxu0 0
      %2334 = vmatmul.mubr.bf16.gmra.mxu0 %v945
      %v2335 = vpop.f32.mrf.mxu0
      %v2336 = vadd.f32 %v2175, %v2335
      %v2337 = vpop.f32.mrf.mxu0
      %v2338 = vpop.f32.mrf.mxu0
      %v2339 = vadd.f32 %v2178, %v2338
      %v2340 = vpop.f32.mrf.mxu0
      %2341 = vmatprep.mubr.bf16.mxu0 0
      %2342 = vmatmul.mubr.bf16.gmra.mxu0 %v954
      %v2343 = vpop.f32.mrf.mxu0
      %v2344 = vadd.f32 %v2183, %v2343
      %v2345 = vpop.f32.mrf.mxu0
      %v2346 = vpop.f32.mrf.mxu0
      %v2347 = vadd.f32 %v2186, %v2346
      %v2348 = vpop.f32.mrf.mxu0
      %2349 = vmatprep.mubr.bf16.mxu0 0
      %2350 = vmatmul.mubr.bf16.gmra.mxu0 %v963
      %v2351 = vpop.f32.mrf.mxu0
      %v2352 = vadd.f32 %v2191, %v2351
      %v2353 = vpop.f32.mrf.mxu0
      %v2354 = vpop.f32.mrf.mxu0
      %v2355 = vadd.f32 %v2194, %v2354
      %v2356 = vpop.f32.mrf.mxu0
      %2357 = vmatprep.mubr.bf16.mxu0 0
      %2358 = vmatmul.mubr.bf16.gmra.mxu0 %v972
      %v2359 = vpop.f32.mrf.mxu0
      %v2360 = vadd.f32 %v2199, %v2359
      %v2361 = vpop.f32.mrf.mxu0
      %v2362 = vpop.f32.mrf.mxu0
      %v2363 = vadd.f32 %v2202, %v2362
      %v2364 = vpop.f32.mrf.mxu0
      %2365 = vmatprep.mubr.bf16.mxu0 0
      %2366 = vmatmul.mubr.bf16.gmra.mxu0 %v981
      %v2367 = vpop.f32.mrf.mxu0
      %v2368 = vadd.f32 %v2207, %v2367
      %v2369 = vpop.f32.mrf.mxu0
      %v2370 = vpop.f32.mrf.mxu0
      %v2371 = vadd.f32 %v2210, %v2370
      %v2372 = vpop.f32.mrf.mxu0
      %2373 = vmatprep.mubr.bf16.mxu0 0
      %2374 = vmatmul.mubr.bf16.gmra.mxu0 %v990
      %v2375 = vpop.f32.mrf.mxu0
      %v2376 = vadd.f32 %v2215, %v2375
      %v2377 = vpop.f32.mrf.mxu0
      %v2378 = vpop.f32.mrf.mxu0
      %v2379 = vadd.f32 %v2218, %v2378
      %v2380 = vpop.f32.mrf.mxu0
      %2381 = vmatprep.mubr.bf16.mxu0 0
      %2382 = vmatmul.mubr.bf16.gmra.mxu0 %v999
      %v2383 = vpop.f32.mrf.mxu0
      %v2384 = vadd.f32 %v2223, %v2383
      %v2385 = vpop.f32.mrf.mxu0
      %v2386 = vpop.f32.mrf.mxu0
      %v2387 = vadd.f32 %v2226, %v2386
      %v2388 = vpop.f32.mrf.mxu0
      %2389 = vmatprep.mubr.bf16.mxu0 0
      %2390 = vmatmul.mubr.bf16.gmra.mxu0 %v1008
      %v2391 = vpop.f32.mrf.mxu0
      %v2392 = vadd.f32 %v2231, %v2391
      %v2393 = vpop.f32.mrf.mxu0
      %v2394 = vpop.f32.mrf.mxu0
      %v2395 = vadd.f32 %v2234, %v2394
      %v2396 = vpop.f32.mrf.mxu0
      %2397 = vmatprep.mubr.bf16.mxu0 0
      %2398 = vmatmul.mubr.bf16.gmra.mxu0 %v1017
      %v2399 = vpop.f32.mrf.mxu0
      %v2400 = vadd.f32 %v2239, %v2399
      %v2401 = vpop.f32.mrf.mxu0
      %v2402 = vpop.f32.mrf.mxu0
      %v2403 = vadd.f32 %v2242, %v2402
      %v2404 = vpop.f32.mrf.mxu0
      %2405 = vmatprep.mubr.bf16.mxu0 0
      %2406 = vmatmul.mubr.bf16.gmra.mxu0 %v1026
      %v2407 = vpop.f32.mrf.mxu0
      %v2408 = vadd.f32 %v2247, %v2407
      %v2409 = vpop.f32.mrf.mxu0
      %v2410 = vpop.f32.mrf.mxu0
      %v2411 = vadd.f32 %v2250, %v2410
      %v2412 = vpop.f32.mrf.mxu0
      %2413 = vmatprep.mubr.bf16.mxu0 0
      %2414 = vmatmul.mubr.bf16.gmra.mxu0 %v1035
      %v2415 = vpop.f32.mrf.mxu0
      %v2416 = vadd.f32 %v2255, %v2415
      %v2417 = vpop.f32.mrf.mxu0
      %v2418 = vpop.f32.mrf.mxu0
      %v2419 = vadd.f32 %v2258, %v2418
      %v2420 = vpop.f32.mrf.mxu0
      %2421 = vmatprep.mubr.bf16.mxu0 0
      %2422 = vmatmul.mubr.bf16.gmra.mxu0 %v1044
      %v2423 = vpop.f32.mrf.mxu0
      %v2424 = vadd.f32 %v2263, %v2423
      %v2425 = vpop.f32.mrf.mxu0
      %v2426 = vpop.f32.mrf.mxu0
      %v2427 = vadd.f32 %v2266, %v2426
      %v2428 = vpop.f32.mrf.mxu0
      %2429 = vmatprep.mubr.bf16.mxu0 0
      %2430 = vmatmul.mubr.bf16.gmra.mxu0 %v1053
      %v2431 = vpop.f32.mrf.mxu0
      %v2432 = vadd.f32 %v2271, %v2431
      %v2433 = vpop.f32.mrf.mxu0
      %v2434 = vpop.f32.mrf.mxu0
      %v2435 = vadd.f32 %v2274, %v2434
      %v2436 = vpop.f32.mrf.mxu0
      %2437 = vmatprep.mubr.bf16.mxu0 0
      %2438 = vmatmul.mubr.bf16.gmra.mxu0 %v1062
      %v2439 = vpop.f32.mrf.mxu0
      %v2440 = vadd.f32 %v2279, %v2439
      %v2441 = vpop.f32.mrf.mxu0
      %v2442 = vpop.f32.mrf.mxu0
      %v2443 = vadd.f32 %v2282, %v2442
      %v2444 = vpop.f32.mrf.mxu0
      %2445 = vmatprep.mubr.bf16.mxu0 0
      %2446 = vmatmul.mubr.bf16.gmra.mxu0 %v1071
      %v2447 = vpop.f32.mrf.mxu0
      %v2448 = vadd.f32 %v2287, %v2447
      %v2449 = vpop.f32.mrf.mxu0
      %v2450 = vpop.f32.mrf.mxu0
      %v2451 = vadd.f32 %v2290, %v2450
      %v2452 = vpop.f32.mrf.mxu0
      %2453 = vmatprep.mubr.bf16.mxu0 0
      %2454 = vmatmul.mubr.bf16.gmra.mxu0 %v1080
      %v2455 = vpop.f32.mrf.mxu0
      %v2456 = vadd.f32 %v2295, %v2455
      %v2457 = vpop.f32.mrf.mxu0
      %v2458 = vpop.f32.mrf.mxu0
      %v2459 = vadd.f32 %v2298, %v2458
      %v2460 = vpop.f32.mrf.mxu0
      %2461 = vdwg.mxu0
      %v2462 = vlaneseq
      %v2463 = vand.u32 %v2462, 127
      %v2464 = vsub.f32 0.0, %v2336
      %v2465 = vsub.f32 0.0, %v2339
      %v2466 = vsub.f32 0.0, %v2344
      %v2467 = vsub.f32 0.0, %v2347
      %v2468 = vsub.f32 0.0, %v2352
      %v2469 = vsub.f32 0.0, %v2355
      %v2470 = vsub.f32 0.0, %v2360
      %v2471 = vsub.f32 0.0, %v2363
      %v2472 = vsub.f32 0.0, %v2368
      %v2473 = vsub.f32 0.0, %v2371
      %v2474 = vsub.f32 0.0, %v2376
      %v2475 = vsub.f32 0.0, %v2379
      %v2476 = vsub.f32 0.0, %v2384
      %v2477 = vsub.f32 0.0, %v2387
      %v2478 = vsub.f32 0.0, %v2392
      %v2479 = vsub.f32 0.0, %v2395
      %v2480 = vsub.f32 0.0, %v2400
      %v2481 = vsub.f32 0.0, %v2403
      %v2482 = vsub.f32 0.0, %v2408
      %v2483 = vsub.f32 0.0, %v2411
      %v2484 = vsub.f32 0.0, %v2416
      %v2485 = vsub.f32 0.0, %v2419
      %v2486 = vsub.f32 0.0, %v2424
      %v2487 = vsub.f32 0.0, %v2427
      %v2488 = vsub.f32 0.0, %v2432
      %v2489 = vsub.f32 0.0, %v2435
      %v2490 = vsub.f32 0.0, %v2440
      %v2491 = vsub.f32 0.0, %v2443
      %v2492 = vsub.f32 0.0, %v2448
      %v2493 = vsub.f32 0.0, %v2451
      %v2494 = vsub.f32 0.0, %v2456
      %v2495 = vsub.f32 0.0, %v2459
      %v2496 = vmul.f32 %v2464, 1.442695
      %v2497 = vpow.pop %v2496
      %v2498 = vmul.f32 %v2465, 1.442695
      %v2499 = vpow.pop %v2498
      %v2500 = vmul.f32 %v2466, 1.442695
      %v2501 = vpow.pop %v2500
      %v2502 = vmul.f32 %v2467, 1.442695
      %v2503 = vpow.pop %v2502
      %v2504 = vmul.f32 %v2468, 1.442695
      %v2505 = vpow.pop %v2504
      %v2506 = vmul.f32 %v2469, 1.442695
      %v2507 = vpow.pop %v2506
      %v2508 = vmul.f32 %v2470, 1.442695
      %v2509 = vpow.pop %v2508
      %v2510 = vmul.f32 %v2471, 1.442695
      %v2511 = vpow.pop %v2510
      %v2512 = vmul.f32 %v2472, 1.442695
      %v2513 = vpow.pop %v2512
      %v2514 = vmul.f32 %v2473, 1.442695
      %v2515 = vpow.pop %v2514
      %v2516 = vmul.f32 %v2474, 1.442695
      %v2517 = vpow.pop %v2516
      %v2518 = vmul.f32 %v2475, 1.442695
      %v2519 = vpow.pop %v2518
      %v2520 = vmul.f32 %v2476, 1.442695
      %v2521 = vpow.pop %v2520
      %v2522 = vmul.f32 %v2477, 1.442695
      %v2523 = vpow.pop %v2522
      %v2524 = vmul.f32 %v2478, 1.442695
      %v2525 = vpow.pop %v2524
      %v2526 = vmul.f32 %v2479, 1.442695
      %v2527 = vpow.pop %v2526
      %v2528 = vmul.f32 %v2480, 1.442695
      %v2529 = vpow.pop %v2528
      %v2530 = vmul.f32 %v2481, 1.442695
      %v2531 = vpow.pop %v2530
      %v2532 = vmul.f32 %v2482, 1.442695
      %v2533 = vpow.pop %v2532
      %v2534 = vmul.f32 %v2483, 1.442695
      %v2535 = vpow.pop %v2534
      %v2536 = vmul.f32 %v2484, 1.442695
      %v2537 = vpow.pop %v2536
      %v2538 = vmul.f32 %v2485, 1.442695
      %v2539 = vpow.pop %v2538
      %v2540 = vmul.f32 %v2486, 1.442695
      %v2541 = vpow.pop %v2540
      %v2542 = vmul.f32 %v2487, 1.442695
      %v2543 = vpow.pop %v2542
      %v2544 = vmul.f32 %v2488, 1.442695
      %v2545 = vpow.pop %v2544
      %v2546 = vmul.f32 %v2489, 1.442695
      %v2547 = vpow.pop %v2546
      %v2548 = vmul.f32 %v2490, 1.442695
      %v2549 = vpow.pop %v2548
      %v2550 = vmul.f32 %v2491, 1.442695
      %v2551 = vpow.pop %v2550
      %v2552 = vmul.f32 %v2492, 1.442695
      %v2553 = vpow.pop %v2552
      %v2554 = vmul.f32 %v2493, 1.442695
      %v2555 = vpow.pop %v2554
      %v2556 = vmul.f32 %v2494, 1.442695
      %v2557 = vpow.pop %v2556
      %v2558 = vmul.f32 %v2495, 1.442695
      %v2559 = vpow.pop %v2558
      %v2560 = vadd.f32 %v2497, 1.0
      %v2561 = vadd.f32 %v2499, 1.0
      %v2562 = vadd.f32 %v2501, 1.0
      %v2563 = vadd.f32 %v2503, 1.0
      %v2564 = vadd.f32 %v2505, 1.0
      %v2565 = vadd.f32 %v2507, 1.0
      %v2566 = vadd.f32 %v2509, 1.0
      %v2567 = vadd.f32 %v2511, 1.0
      %v2568 = vadd.f32 %v2513, 1.0
      %v2569 = vadd.f32 %v2515, 1.0
      %v2570 = vadd.f32 %v2517, 1.0
      %v2571 = vadd.f32 %v2519, 1.0
      %v2572 = vadd.f32 %v2521, 1.0
      %v2573 = vadd.f32 %v2523, 1.0
      %v2574 = vadd.f32 %v2525, 1.0
      %v2575 = vadd.f32 %v2527, 1.0
      %v2576 = vadd.f32 %v2529, 1.0
      %v2577 = vadd.f32 %v2531, 1.0
      %v2578 = vadd.f32 %v2533, 1.0
      %v2579 = vadd.f32 %v2535, 1.0
      %v2580 = vadd.f32 %v2537, 1.0
      %v2581 = vadd.f32 %v2539, 1.0
      %v2582 = vadd.f32 %v2541, 1.0
      %v2583 = vadd.f32 %v2543, 1.0
      %v2584 = vadd.f32 %v2545, 1.0
      %v2585 = vadd.f32 %v2547, 1.0
      %v2586 = vadd.f32 %v2549, 1.0
      %v2587 = vadd.f32 %v2551, 1.0
      %v2588 = vadd.f32 %v2553, 1.0
      %v2589 = vadd.f32 %v2555, 1.0
      %v2590 = vadd.f32 %v2557, 1.0
      %v2591 = vadd.f32 %v2559, 1.0
      %v2592 = vrcp.pop %v2560
      %v2593 = vmul.f32 1.0, %v2592
      %v2594 = vrcp.pop %v2561
      %v2595 = vmul.f32 1.0, %v2594
      %v2596 = vrcp.pop %v2562
      %v2597 = vmul.f32 1.0, %v2596
      %v2598 = vrcp.pop %v2563
      %v2599 = vmul.f32 1.0, %v2598
      %v2600 = vrcp.pop %v2564
      %v2601 = vmul.f32 1.0, %v2600
      %v2602 = vrcp.pop %v2565
      %v2603 = vmul.f32 1.0, %v2602
      %v2604 = vrcp.pop %v2566
      %v2605 = vmul.f32 1.0, %v2604
      %v2606 = vrcp.pop %v2567
      %v2607 = vmul.f32 1.0, %v2606
      %v2608 = vrcp.pop %v2568
      %v2609 = vmul.f32 1.0, %v2608
      %v2610 = vrcp.pop %v2569
      %v2611 = vmul.f32 1.0, %v2610
      %v2612 = vrcp.pop %v2570
      %v2613 = vmul.f32 1.0, %v2612
      %v2614 = vrcp.pop %v2571
      %v2615 = vmul.f32 1.0, %v2614
      %v2616 = vrcp.pop %v2572
      %v2617 = vmul.f32 1.0, %v2616
      %v2618 = vrcp.pop %v2573
      %v2619 = vmul.f32 1.0, %v2618
      %v2620 = vrcp.pop %v2574
      %v2621 = vmul.f32 1.0, %v2620
      %v2622 = vrcp.pop %v2575
      %v2623 = vmul.f32 1.0, %v2622
      %v2624 = vrcp.pop %v2576
      %v2625 = vmul.f32 1.0, %v2624
      %v2626 = vrcp.pop %v2577
      %v2627 = vmul.f32 1.0, %v2626
      %v2628 = vrcp.pop %v2578
      %v2629 = vmul.f32 1.0, %v2628
      %v2630 = vrcp.pop %v2579
      %v2631 = vmul.f32 1.0, %v2630
      %v2632 = vrcp.pop %v2580
      %v2633 = vmul.f32 1.0, %v2632
      %v2634 = vrcp.pop %v2581
      %v2635 = vmul.f32 1.0, %v2634
      %v2636 = vrcp.pop %v2582
      %v2637 = vmul.f32 1.0, %v2636
      %v2638 = vrcp.pop %v2583
      %v2639 = vmul.f32 1.0, %v2638
      %v2640 = vrcp.pop %v2584
      %v2641 = vmul.f32 1.0, %v2640
      %v2642 = vrcp.pop %v2585
      %v2643 = vmul.f32 1.0, %v2642
      %v2644 = vrcp.pop %v2586
      %v2645 = vmul.f32 1.0, %v2644
      %v2646 = vrcp.pop %v2587
      %v2647 = vmul.f32 1.0, %v2646
      %v2648 = vrcp.pop %v2588
      %v2649 = vmul.f32 1.0, %v2648
      %v2650 = vrcp.pop %v2589
      %v2651 = vmul.f32 1.0, %v2650
      %v2652 = vrcp.pop %v2590
      %v2653 = vmul.f32 1.0, %v2652
      %v2654 = vrcp.pop %v2591
      %v2655 = vmul.f32 1.0, %v2654
      %vm2656 = vcmp.ge.s32.totalorder %v2463, 18
      %v2657 = vsel %vm2656, %v2593, %v2336
      %v2658 = vsel %vm2656, %v2595, %v2339
      %v2659 = vsel %vm2656, %v2597, %v2344
      %v2660 = vsel %vm2656, %v2599, %v2347
      %v2661 = vsel %vm2656, %v2601, %v2352
      %v2662 = vsel %vm2656, %v2603, %v2355
      %v2663 = vsel %vm2656, %v2605, %v2360
      %v2664 = vsel %vm2656, %v2607, %v2363
      %v2665 = vsel %vm2656, %v2609, %v2368
      %v2666 = vsel %vm2656, %v2611, %v2371
      %v2667 = vsel %vm2656, %v2613, %v2376
      %v2668 = vsel %vm2656, %v2615, %v2379
      %v2669 = vsel %vm2656, %v2617, %v2384
      %v2670 = vsel %vm2656, %v2619, %v2387
      %v2671 = vsel %vm2656, %v2621, %v2392
      %v2672 = vsel %vm2656, %v2623, %v2395
      %v2673 = vsel %vm2656, %v2625, %v2400
      %v2674 = vsel %vm2656, %v2627, %v2403
      %v2675 = vsel %vm2656, %v2629, %v2408
      %v2676 = vsel %vm2656, %v2631, %v2411
      %v2677 = vsel %vm2656, %v2633, %v2416
      %v2678 = vsel %vm2656, %v2635, %v2419
      %v2679 = vsel %vm2656, %v2637, %v2424
      %v2680 = vsel %vm2656, %v2639, %v2427
      %v2681 = vsel %vm2656, %v2641, %v2432
      %v2682 = vsel %vm2656, %v2643, %v2435
      %v2683 = vsel %vm2656, %v2645, %v2440
      %v2684 = vsel %vm2656, %v2647, %v2443
      %v2685 = vsel %vm2656, %v2649, %v2448
      %v2686 = vsel %vm2656, %v2651, %v2451
      %v2687 = vsel %vm2656, %v2653, %v2456
      %v2688 = vsel %vm2656, %v2655, %v2459
      %vm2689 = vcmask 220160
      %2690 = vst.msk [vmem:[%s175] sm:$0xff] %vm2689, %v2657
      %2691 = vst.msk [vmem:[%s175 + $0x8] sm:$0xff] %vm2689, %v2658
      %2692 = vst.msk [vmem:[%s175 + $0x10] sm:$0xff] %vm2689, %v2659
      %2693 = vst.msk [vmem:[%s175 + $0x18] sm:$0xff] %vm2689, %v2660
      %2694 = vst.msk [vmem:[%s175 + $0x20] sm:$0xff] %vm2689, %v2661
      %2695 = vst.msk [vmem:[%s175 + $0x28] sm:$0xff] %vm2689, %v2662
      %2696 = vst.msk [vmem:[%s175 + $0x30] sm:$0xff] %vm2689, %v2663
      %2697 = vst.msk [vmem:[%s175 + $0x38] sm:$0xff] %vm2689, %v2664
      %2698 = vst.msk [vmem:[%s175 + $0x40] sm:$0xff] %vm2689, %v2665
      %2699 = vst.msk [vmem:[%s175 + $0x48] sm:$0xff] %vm2689, %v2666
      %2700 = vst.msk [vmem:[%s175 + $0x50] sm:$0xff] %vm2689, %v2667
      %2701 = vst.msk [vmem:[%s175 + $0x58] sm:$0xff] %vm2689, %v2668
      %2702 = vst.msk [vmem:[%s175 + $0x60] sm:$0xff] %vm2689, %v2669
      %2703 = vst.msk [vmem:[%s175 + $0x68] sm:$0xff] %vm2689, %v2670
      %2704 = vst.msk [vmem:[%s175 + $0x70] sm:$0xff] %vm2689, %v2671
      %2705 = vst.msk [vmem:[%s175 + $0x78] sm:$0xff] %vm2689, %v2672
      %2706 = vst.msk [vmem:[%s175 + $0x80] sm:$0xff] %vm2689, %v2673
      %2707 = vst.msk [vmem:[%s175 + $0x88] sm:$0xff] %vm2689, %v2674
      %2708 = vst.msk [vmem:[%s175 + $0x90] sm:$0xff] %vm2689, %v2675
      %2709 = vst.msk [vmem:[%s175 + $0x98] sm:$0xff] %vm2689, %v2676
      %2710 = vst.msk [vmem:[%s175 + $0xa0] sm:$0xff] %vm2689, %v2677
      %2711 = vst.msk [vmem:[%s175 + $0xa8] sm:$0xff] %vm2689, %v2678
      %2712 = vst.msk [vmem:[%s175 + $0xb0] sm:$0xff] %vm2689, %v2679
      %2713 = vst.msk [vmem:[%s175 + $0xb8] sm:$0xff] %vm2689, %v2680
      %2714 = vst.msk [vmem:[%s175 + $0xc0] sm:$0xff] %vm2689, %v2681
      %2715 = vst.msk [vmem:[%s175 + $0xc8] sm:$0xff] %vm2689, %v2682
      %2716 = vst.msk [vmem:[%s175 + $0xd0] sm:$0xff] %vm2689, %v2683
      %2717 = vst.msk [vmem:[%s175 + $0xd8] sm:$0xff] %vm2689, %v2684
      %2718 = vst.msk [vmem:[%s175 + $0xe0] sm:$0xff] %vm2689, %v2685
      %2719 = vst.msk [vmem:[%s175 + $0xe8] sm:$0xff] %vm2689, %v2686
      %2720 = vst.msk [vmem:[%s175 + $0xf0] sm:$0xff] %vm2689, %v2687
      %2721 = vst.msk [vmem:[%s175 + $0xf8] sm:$0xff] %vm2689, %v2688
      %s2722 = smul.u32 32, %s14
      %p2723 = scmp.lt.s32.totalorder %s2722, 63
      %s2724 = scalar_select %p2723, %s2722, 63
      %s2725 = smul.addr %s2724, 8
      %s2726 = scalar_lea.vmem %s3, %s2725
      // Predicated region
      $region33: #{dcn_layer_forward.2} parent=31 // pred_check
        %p2727 = pneg %p100
      $region34: #{dcn_layer_forward.2} parent=31 // pred_check_branch
        %2729 = sbr.rel (%p2727) target = $region36
      $region35: #{dcn_layer_forward.2} parent=31 // pred_region
        %s2730 = smul.u32 32, %s14
      $region36: #{dcn_layer_forward.2} parent=31 // pred_fallthru
        _
    $region32: #{dcn_layer_forward.2} parent=5 // pred_fallthru
      _
    %p2731 = scmp.le.s32.totalorder 2, %s9
    // Predicated region
    $region37: #{dcn_layer_forward.2} parent=5 // pred_check
      %p2732 = pneg %p2731
    $region38: #{dcn_layer_forward.2} parent=5 // pred_check_branch
      %2734 = sbr.rel (%p2732) target = $region40
    $region39: #{dcn_layer_forward.2} parent=5 // pred_region
      %s2735 = ssub.s32 %s9, 2
      // Predicated region
      $region41: #{dcn_layer_forward.2} parent=39 // pred_check
        %p2736 = pneg %p106
      $region42: #{dcn_layer_forward.2} parent=39 // pred_check_branch
        %2738 = sbr.rel (%p2736) target = $region44
      $region43: #{dcn_layer_forward.2} parent=39 // pred_region
        %s2739 = smul.u32 32, %s15
        %p2740 = scmp.lt.s32.totalorder %s2739, 63
        %s2741 = scalar_select %p2740, %s2739, 63
        %s2742 = smul.addr %s2741, 8
        %s2743 = scalar_lea.vmem %s3, %s2742
      $region44: #{dcn_layer_forward.2} parent=39 // pred_fallthru
        _
    $region40: #{dcn_layer_forward.2} parent=5 // pred_fallthru
      _
  $region6: #{dcn_layer_forward.2} parent=0 // loop_footer
    %s13 = sadd.s32 1, %s9
  $region7: #{dcn_layer_forward.2} parent=0 // loop_footer_branch
    %8 = sbr.rel target = $region3
  $region8: #{dcn_layer_forward.2} parent=0 // loop_exit
    _

// kernel: dcn_layer_forward.3
$region0: #{dcn_layer_forward.3}
  #allocation0 [shape = 'u32[]', space=smem, size = 0x4, offset = 0x4, fixed_abs, tag = 'smem constant byte address 0x4 - core index']
  #allocation1 [shape = 'u32[144,128]{1,0:T(1,128)}', space=vmem, size = 0x12000, scoped, tag = 'internal scratch']
  %s0 = inlined_call_operand.vmem [shape: bf16[512,576], index: 0, kind: input, shape index: {}]
  %s1 = inlined_call_operand.vmem [shape: bf16[576,64], index: 1, kind: input, shape index: {}]
  %s2 = inlined_call_operand.vmem [shape: f32[1,64], index: 2, kind: input, shape index: {}]
  %s3 = inlined_call_operand.hbm [shape: f32[512,64], index: 3, kind: output, shape index: {}]
  %s4 = sld [smem:[#allocation0]]
  $region45: #{dcn_layer_forward.3} parent=0
    _
  %s6 = ssub.s32 1, %s4
  %s7 = scalar_select 0, %s6, %s4
  $region1: #{dcn_layer_forward.3} parent=0
    #allocation2 [shape = 'u8[262144]{0}', space=vmem, size = 0x40000, scoped, tag = 'output window, operand 0']
    #allocation3 [shape = 's32[2]{0}', space=sflag, size = 0x8, scoped, tag = 'scoped memory for dcn_layer_forward.3']
    %8 = vsyncpa [#allocation3], 0
    %s9 = scalar_lea.sflag [#allocation3], 1
    %10 = vsyncpa %s9, 0
    loop: start=0, step=1, limit=4
    $region2: #{dcn_layer_forward.3} parent=1 // loop_pre_header
      _
    $region3: #{dcn_layer_forward.3} parent=1 // loop_header
      %s12 = sphi 0, %s16
      %p13 = scmp.ge.s32.totalorder %s12, 4
      %s22 = sphi 0, %s24
      %s25 = sphi 0, %s22
      %s26 = sphi 0, %s25
      %s42 = sphi 0, %s26
      %s46 = sphi 0, %s46
      %s48 = sphi 0, %s46
      %s49 = sphi 0, %s48
      %s63 = sphi 0, %s49
      %s67 = sphi 0, %s67
      %s69 = sphi 0, %s67
      %s70 = sphi 0, %s69
      %s84 = sphi 0, %s70
      %s90 = sphi 0, %s92
      %s93 = sphi 0, %s90
      %s94 = sphi 0, %s93
      %s110 = sphi 0, %s94
    $region4: #{dcn_layer_forward.3} parent=1 // loop_header_branch
      %15 = sbr.rel (%p13) target = $region8
    $region5: #{dcn_layer_forward.3} parent=1 // loop_body
      %s17 = ssub.s32 %s12, 1
      %s18 = ssub.s32 %s12, 2
      %s19 = sadd.s32 %s12, 1
      %s20 = ssub.s32 %s12, %s19
      %p21 = scmp.eq.s32.totalorder %s20, 0
      %s23 = sadd.s32 %s22, 1
      %s24 = scalar_select %p21, %s22, %s23
      %p27 = pneg %p21
      %p28 = scmp.eq.s32.totalorder %s12, 1
      %p29 = por %p27, %p28
      %p30 = scmp.ne.s32.totalorder %s22, %s25
      %p31 = scmp.eq.s32.totalorder %s12, 0
      %p32 = por %p30, %p31
      %p33 = scmp.ne.s32.totalorder %s22, %s25
      %p34 = scmp.eq.s32.totalorder %s17, 1
      %p35 = por %p33, %p34
      %p36 = scmp.ne.s32.totalorder %s25, %s26
      %p37 = scmp.eq.s32.totalorder %s17, 0
      %p38 = por %p36, %p37
      %p39 = scmp.ne.s32.totalorder %s25, %s26
      %p40 = scmp.eq.s32.totalorder %s18, 1
      %p41 = por %p39, %p40
      %p43 = scmp.ne.s32.totalorder %s26, %s42
      %p44 = scmp.eq.s32.totalorder %s18, 0
      %p45 = por %p43, %p44
      %s47 = sadd.s32 %s46, 1
      %p50 = scmp.eq.s32.totalorder %s12, 1
      %p51 = scmp.ne.s32.totalorder %s46, %s48
      %p52 = scmp.eq.s32.totalorder %s12, 0
      %p53 = por %p51, %p52
      %p54 = scmp.ne.s32.totalorder %s46, %s48
      %p55 = scmp.eq.s32.totalorder %s17, 1
      %p56 = por %p54, %p55
      %p57 = scmp.ne.s32.totalorder %s48, %s49
      %p58 = scmp.eq.s32.totalorder %s17, 0
      %p59 = por %p57, %p58
      %p60 = scmp.ne.s32.totalorder %s48, %s49
      %p61 = scmp.eq.s32.totalorder %s18, 1
      %p62 = por %p60, %p61
      %p64 = scmp.ne.s32.totalorder %s49, %s63
      %p65 = scmp.eq.s32.totalorder %s18, 0
      %p66 = por %p64, %p65
      %s68 = sadd.s32 %s67, 1
      %p71 = scmp.eq.s32.totalorder %s12, 1
      %p72 = scmp.ne.s32.totalorder %s67, %s69
      %p73 = scmp.eq.s32.totalorder %s12, 0
      %p74 = por %p72, %p73
      %p75 = scmp.ne.s32.totalorder %s67, %s69
      %p76 = scmp.eq.s32.totalorder %s17, 1
      %p77 = por %p75, %p76
      %p78 = scmp.ne.s32.totalorder %s69, %s70
      %p79 = scmp.eq.s32.totalorder %s17, 0
      %p80 = por %p78, %p79
      %p81 = scmp.ne.s32.totalorder %s69, %s70
      %p82 = scmp.eq.s32.totalorder %s18, 1
      %p83 = por %p81, %p82
      %p85 = scmp.ne.s32.totalorder %s70, %s84
      %p86 = scmp.eq.s32.totalorder %s18, 0
      %p87 = por %p85, %p86
      %s88 = ssub.s32 %s12, %s19
      %p89 = scmp.eq.s32.totalorder %s88, 0
      %s91 = sadd.s32 %s90, 1
      %s92 = scalar_select %p89, %s90, %s91
      %p95 = pneg %p89
      %p96 = scmp.eq.s32.totalorder %s12, 1
      %p97 = por %p95, %p96
      %p98 = scmp.ne.s32.totalorder %s90, %s93
      %p99 = scmp.eq.s32.totalorder %s12, 0
      %p100 = por %p98, %p99
      %p101 = scmp.ne.s32.totalorder %s90, %s93
      %p102 = scmp.eq.s32.totalorder %s17, 1
      %p103 = por %p101, %p102
      %p104 = scmp.ne.s32.totalorder %s93, %s94
      %p105 = scmp.eq.s32.totalorder %s17, 0
      %p106 = por %p104, %p105
      %p107 = scmp.ne.s32.totalorder %s93, %s94
      %p108 = scmp.eq.s32.totalorder %s18, 1
      %p109 = por %p107, %p108
      %p111 = scmp.ne.s32.totalorder %s94, %s110
      %p112 = scmp.eq.s32.totalorder %s18, 0
      %p113 = por %p111, %p112
      %p114 = scmp.le.s32.totalorder 1, %s12
      %p115 = scmp.lt.s32.totalorder %s12, 3
      %p116 = pnand %p114, %p115
      %p117 = pneg %p116
      // Predicated region
      $region9: #{dcn_layer_forward.3} parent=5 // pred_check
        _
      $region10: #{dcn_layer_forward.3} parent=5 // pred_check_branch
        %119 = sbr.rel (%p116) target = $region12
      $region11: #{dcn_layer_forward.3} parent=5 // pred_region
        %s120 = ssub.s32 %s12, 1
        // Predicated region
        $region13: #{dcn_layer_forward.3} parent=11 // pred_check
          %p121 = pneg %p59
        $region14: #{dcn_layer_forward.3} parent=11 // pred_check_branch
          %123 = sbr.rel (%p121) target = $region16
        $region15: #{dcn_layer_forward.3} parent=11 // pred_region
          _
        $region16: #{dcn_layer_forward.3} parent=11 // pred_fallthru
          _
        // Predicated region
        $region17: #{dcn_layer_forward.3} parent=11 // pred_check
          %p124 = pneg %p80
        $region18: #{dcn_layer_forward.3} parent=11 // pred_check_branch
          %126 = sbr.rel (%p124) target = $region20
        $region19: #{dcn_layer_forward.3} parent=11 // pred_region
          _
        $region20: #{dcn_layer_forward.3} parent=11 // pred_fallthru
          _
      $region12: #{dcn_layer_forward.3} parent=5 // pred_fallthru
        _
      %p127 = scmp.lt.s32.totalorder %s12, 2
      // Predicated region
      $region21: #{dcn_layer_forward.3} parent=5 // pred_check
        %p128 = pneg %p127
      $region22: #{dcn_layer_forward.3} parent=5 // pred_check_branch
        %130 = sbr.rel (%p128) target = $region24
      $region23: #{dcn_layer_forward.3} parent=5 // pred_region
        // Predicated region
        $region25: #{dcn_layer_forward.3} parent=23 // pred_check
          %p131 = pneg %p32
        $region26: #{dcn_layer_forward.3} parent=23 // pred_check_branch
          %133 = sbr.rel (%p131) target = $region28
        $region27: #{dcn_layer_forward.3} parent=23 // pred_region
          %s134 = smul.u32 32, %s12
          %p135 = scmp.lt.s32.totalorder %s134, 63
          %s136 = scalar_select %p135, %s134, 63
          %s137 = smul.addr %s136, 5
          %s138 = smul.addr %s137, 4
          %s139 = scalar_lea.vmem %s0, %s138
          %s140 = smul.u32 32, %s12
        $region28: #{dcn_layer_forward.3} parent=23 // pred_fallthru
          _
      $region24: #{dcn_layer_forward.3} parent=5 // pred_fallthru
        _
      %p141 = scmp.le.s32.totalorder 1, %s12
      %p142 = scmp.lt.s32.totalorder %s12, 3
      %p143 = pnand %p141, %p142
      %p144 = pneg %p143
      // Predicated region
      $region29: #{dcn_layer_forward.3} parent=5 // pred_check
        _
      $region30: #{dcn_layer_forward.3} parent=5 // pred_check_branch
        %146 = sbr.rel (%p143) target = $region32
      $region31: #{dcn_layer_forward.3} parent=5 // pred_region
        %s147 = ssub.s32 %s12, 1
        %s148 = smul.u32 32, %s17
        %p149 = scmp.lt.s32.totalorder %s148, 63
        %s150 = scalar_select %p149, %s148, 63
        %s151 = smul.addr %s150, 5
        %s152 = smul.addr %s151, 4
        %s153 = scalar_lea.vmem %s0, %s152
        %p154 = pneg %p38
        %p155 = pneg %p35
        %p156 = pneg %p59
        %p157 = pneg %p56
        %p158 = pneg %p80
        %p159 = pneg %p77
        %p160 = pneg %p106
        %p161 = pneg %p103
        %s162 = sand.u32 %s93, 1
        %s163 = scalar_lea.sflag [#allocation3], %s162
        %s164 = sand.u32 %s93, 1
        %s165 = smul.addr %s164, 256
        %s166 = scalar_lea.vmem [#allocation2], %s165
        %s167 = smul.u32 32, %s17
        %p168 = scmp.lt.s32.totalorder %s167, 63
        %s169 = scalar_select %p168, %s167, 63
        %s170 = smul.addr %s169, 5
        %s171 = smul.addr %s170, 4
        %s172 = scalar_lea.vmem %s0, %s171
        %s173 = smul.u32 32, %s17
        %s174 = smul.u32 32, %s17
        %v176 = vld [vmem:[%s172] sm:$0xff]
        %v177 = vld [vmem:[%s172 + $0x8] sm:$0xff]
        %v178 = vld [vmem:[%s172 + $0x10] sm:$0xf]
        %v179 = vld [vmem:[%s172 + $0x14] sm:$0xff]
        %v180 = vld [vmem:[%s172 + $0x1c] sm:$0xff]
        %v181 = vld [vmem:[%s172 + $0x24] sm:$0xf]
        %v182 = vld [vmem:[%s172 + $0x28] sm:$0xff]
        %v183 = vld [vmem:[%s172 + $0x30] sm:$0xff]
        %v184 = vld [vmem:[%s172 + $0x38] sm:$0xf]
        %v185 = vld [vmem:[%s172 + $0x3c] sm:$0xff]
        %v186 = vld [vmem:[%s172 + $0x44] sm:$0xff]
        %v187 = vld [vmem:[%s172 + $0x4c] sm:$0xf]
        %v188 = vld [vmem:[%s172 + $0x50] sm:$0xff]
        %v189 = vld [vmem:[%s172 + $0x58] sm:$0xff]
        %v190 = vld [vmem:[%s172 + $0x60] sm:$0xf]
        %v191 = vld [vmem:[%s172 + $0x64] sm:$0xff]
        %v192 = vld [vmem:[%s172 + $0x6c] sm:$0xff]
        %v193 = vld [vmem:[%s172 + $0x74] sm:$0xf]
        %v194 = vld [vmem:[%s172 + $0x78] sm:$0xff]
        %v195 = vld [vmem:[%s172 + $0x80] sm:$0xff]
        %v196 = vld [vmem:[%s172 + $0x88] sm:$0xf]
        %v197 = vld [vmem:[%s172 + $0x8c] sm:$0xff]
        %v198 = vld [vmem:[%s172 + $0x94] sm:$0xff]
        %v199 = vld [vmem:[%s172 + $0x9c] sm:$0xf]
        %v200 = vld [vmem:[%s172 + $0xa0] sm:$0xff]
        %v201 = vld [vmem:[%s172 + $0xa8] sm:$0xff]
        %v202 = vld [vmem:[%s172 + $0xb0] sm:$0xf]
        %v203 = vld [vmem:[%s172 + $0xb4] sm:$0xff]
        %v204 = vld [vmem:[%s172 + $0xbc] sm:$0xff]
        %v205 = vld [vmem:[%s172 + $0xc4] sm:$0xf]
        %v206 = vld [vmem:[%s172 + $0xc8] sm:$0xff]
        %v207 = vld [vmem:[%s172 + $0xd0] sm:$0xff]
        %v208 = vld [vmem:[%s172 + $0xd8] sm:$0xf]
        %v209 = vld [vmem:[%s172 + $0xdc] sm:$0xff]
        %v210 = vld [vmem:[%s172 + $0xe4] sm:$0xff]
        %v211 = vld [vmem:[%s172 + $0xec] sm:$0xf]
        %v212 = vld [vmem:[%s172 + $0xf0] sm:$0xff]
        %v213 = vld [vmem:[%s172 + $0xf8] sm:$0xff]
        %v214 = vld [vmem:[%s172 + $0x100] sm:$0xf]
        %v215 = vld [vmem:[%s172 + $0x104] sm:$0xff]
        %v216 = vld [vmem:[%s172 + $0x10c] sm:$0xff]
        %v217 = vld [vmem:[%s172 + $0x114] sm:$0xf]
        %v218 = vld [vmem:[%s172 + $0x118] sm:$0xff]
        %v219 = vld [vmem:[%s172 + $0x120] sm:$0xff]
        %v220 = vld [vmem:[%s172 + $0x128] sm:$0xf]
        %v221 = vld [vmem:[%s172 + $0x12c] sm:$0xff]
        %v222 = vld [vmem:[%s172 + $0x134] sm:$0xff]
        %v223 = vld [vmem:[%s172 + $0x13c] sm:$0xf]
        %v224 = vld [vmem:[%s172 + $0x140] sm:$0xff]
        %v225 = vld [vmem:[%s172 + $0x148] sm:$0xff]
        %v226 = vld [vmem:[%s172 + $0x150] sm:$0xf]
        %v227 = vld [vmem:[%s172 + $0x154] sm:$0xff]
        %v228 = vld [vmem:[%s172 + $0x15c] sm:$0xff]
        %v229 = vld [vmem:[%s172 + $0x164] sm:$0xf]
        %v230 = vld [vmem:[%s172 + $0x168] sm:$0xff]
        %v231 = vld [vmem:[%s172 + $0x170] sm:$0xff]
        %v232 = vld [vmem:[%s172 + $0x178] sm:$0xf]
        %v233 = vld [vmem:[%s172 + $0x17c] sm:$0xff]
        %v234 = vld [vmem:[%s172 + $0x184] sm:$0xff]
        %v235 = vld [vmem:[%s172 + $0x18c] sm:$0xf]
        %v236 = vld [vmem:[%s172 + $0x190] sm:$0xff]
        %v237 = vld [vmem:[%s172 + $0x198] sm:$0xff]
        %v238 = vld [vmem:[%s172 + $0x1a0] sm:$0xf]
        %v239 = vld [vmem:[%s172 + $0x1a4] sm:$0xff]
        %v240 = vld [vmem:[%s172 + $0x1ac] sm:$0xff]
        %v241 = vld [vmem:[%s172 + $0x1b4] sm:$0xf]
        %v242 = vld [vmem:[%s172 + $0x1b8] sm:$0xff]
        %v243 = vld [vmem:[%s172 + $0x1c0] sm:$0xff]
        %v244 = vld [vmem:[%s172 + $0x1c8] sm:$0xf]
        %v245 = vld [vmem:[%s172 + $0x1cc] sm:$0xff]
        %v246 = vld [vmem:[%s172 + $0x1d4] sm:$0xff]
        %v247 = vld [vmem:[%s172 + $0x1dc] sm:$0xf]
        %v248 = vld [vmem:[%s172 + $0x1e0] sm:$0xff]
        %v249 = vld [vmem:[%s172 + $0x1e8] sm:$0xff]
        %v250 = vld [vmem:[%s172 + $0x1f0] sm:$0xf]
        %v251 = vld [vmem:[%s172 + $0x1f4] sm:$0xff]
        %v252 = vld [vmem:[%s172 + $0x1fc] sm:$0xff]
        %v253 = vld [vmem:[%s172 + $0x204] sm:$0xf]
        %v254 = vld [vmem:[%s172 + $0x208] sm:$0xff]
        %v255 = vld [vmem:[%s172 + $0x210] sm:$0xff]
        %v256 = vld [vmem:[%s172 + $0x218] sm:$0xf]
        %v257 = vld [vmem:[%s172 + $0x21c] sm:$0xff]
        %v258 = vld [vmem:[%s172 + $0x224] sm:$0xff]
        %v259 = vld [vmem:[%s172 + $0x22c] sm:$0xf]
        %v260 = vld [vmem:[%s172 + $0x230] sm:$0xff]
        %v261 = vld [vmem:[%s172 + $0x238] sm:$0xff]
        %v262 = vld [vmem:[%s172 + $0x240] sm:$0xf]
        %v263 = vld [vmem:[%s172 + $0x244] sm:$0xff]
        %v264 = vld [vmem:[%s172 + $0x24c] sm:$0xff]
        %v265 = vld [vmem:[%s172 + $0x254] sm:$0xf]
        %v266 = vld [vmem:[%s172 + $0x258] sm:$0xff]
        %v267 = vld [vmem:[%s172 + $0x260] sm:$0xff]
        %v268 = vld [vmem:[%s172 + $0x268] sm:$0xf]
        %v269 = vld [vmem:[%s172 + $0x26c] sm:$0xff]
        %v270 = vld [vmem:[%s172 + $0x274] sm:$0xff]
        %v271 = vld [vmem:[%s172 + $0x27c] sm:$0xf]
        %v272 = vld [vmem:[%s1] sm:$0xf]
        %v273 = vld [vmem:[%s1 + $0x4] sm:$0xf]
        %v274 = vld [vmem:[%s1 + $0x8] sm:$0xf]
        %v275 = vld [vmem:[%s1 + $0xc] sm:$0xf]
        %v276 = vld [vmem:[%s1 + $0x10] sm:$0xf]
        %v277 = vld [vmem:[%s1 + $0x14] sm:$0xf]
        %v278 = vld [vmem:[%s1 + $0x18] sm:$0xf]
        %v279 = vld [vmem:[%s1 + $0x1c] sm:$0xf]
        %v280 = vld [vmem:[%s1 + $0x20] sm:$0xf]
        %v281 = vld [vmem:[%s1 + $0x24] sm:$0xf]
        %v282 = vld [vmem:[%s1 + $0x28] sm:$0xf]
        %v283 = vld [vmem:[%s1 + $0x2c] sm:$0xf]
        %v284 = vld [vmem:[%s1 + $0x30] sm:$0xf]
        %v285 = vld [vmem:[%s1 + $0x34] sm:$0xf]
        %v286 = vld [vmem:[%s1 + $0x38] sm:$0xf]
        %v287 = vld [vmem:[%s1 + $0x3c] sm:$0xf]
        %v288 = vld [vmem:[%s1 + $0x40] sm:$0xf]
        %v289 = vld [vmem:[%s1 + $0x44] sm:$0xf]
        %v290 = vld [vmem:[%s1 + $0x48] sm:$0xf]
        %v291 = vld [vmem:[%s1 + $0x4c] sm:$0xf]
        %v292 = vld [vmem:[%s1 + $0x50] sm:$0xf]
        %v293 = vld [vmem:[%s1 + $0x54] sm:$0xf]
        %v294 = vld [vmem:[%s1 + $0x58] sm:$0xf]
        %v295 = vld [vmem:[%s1 + $0x5c] sm:$0xf]
        %v296 = vld [vmem:[%s1 + $0x60] sm:$0xf]
        %v297 = vld [vmem:[%s1 + $0x64] sm:$0xf]
        %v298 = vld [vmem:[%s1 + $0x68] sm:$0xf]
        %v299 = vld [vmem:[%s1 + $0x6c] sm:$0xf]
        %v300 = vld [vmem:[%s1 + $0x70] sm:$0xf]
        %v301 = vld [vmem:[%s1 + $0x74] sm:$0xf]
        %v302 = vld [vmem:[%s1 + $0x78] sm:$0xf]
        %v303 = vld [vmem:[%s1 + $0x7c] sm:$0xf]
        %v304 = vld [vmem:[%s1 + $0x80] sm:$0xf]
        %v305 = vld [vmem:[%s1 + $0x84] sm:$0xf]
        %v306 = vld [vmem:[%s1 + $0x88] sm:$0xf]
        %v307 = vld [vmem:[%s1 + $0x8c] sm:$0xf]
        %v308 = vld [vmem:[%s1 + $0x90] sm:$0xf]
        %v309 = vld [vmem:[%s1 + $0x94] sm:$0xf]
        %v310 = vld [vmem:[%s1 + $0x98] sm:$0xf]
        %v311 = vld [vmem:[%s1 + $0x9c] sm:$0xf]
        %v312 = vld [vmem:[%s1 + $0xa0] sm:$0xf]
        %v313 = vld [vmem:[%s1 + $0xa4] sm:$0xf]
        %v314 = vld [vmem:[%s1 + $0xa8] sm:$0xf]
        %v315 = vld [vmem:[%s1 + $0xac] sm:$0xf]
        %v316 = vld [vmem:[%s1 + $0xb0] sm:$0xf]
        %v317 = vld [vmem:[%s1 + $0xb4] sm:$0xf]
        %v318 = vld [vmem:[%s1 + $0xb8] sm:$0xf]
        %v319 = vld [vmem:[%s1 + $0xbc] sm:$0xf]
        %v320 = vld [vmem:[%s1 + $0xc0] sm:$0xf]
        %v321 = vld [vmem:[%s1 + $0xc4] sm:$0xf]
        %v322 = vld [vmem:[%s1 + $0xc8] sm:$0xf]
        %v323 = vld [vmem:[%s1 + $0xcc] sm:$0xf]
        %v324 = vld [vmem:[%s1 + $0xd0] sm:$0xf]
        %v325 = vld [vmem:[%s1 + $0xd4] sm:$0xf]
        %v326 = vld [vmem:[%s1 + $0xd8] sm:$0xf]
        %v327 = vld [vmem:[%s1 + $0xdc] sm:$0xf]
        %v328 = vld [vmem:[%s1 + $0xe0] sm:$0xf]
        %v329 = vld [vmem:[%s1 + $0xe4] sm:$0xf]
        %v330 = vld [vmem:[%s1 + $0xe8] sm:$0xf]
        %v331 = vld [vmem:[%s1 + $0xec] sm:$0xf]
        %v332 = vld [vmem:[%s1 + $0xf0] sm:$0xf]
        %v333 = vld [vmem:[%s1 + $0xf4] sm:$0xf]
        %v334 = vld [vmem:[%s1 + $0xf8] sm:$0xf]
        %v335 = vld [vmem:[%s1 + $0xfc] sm:$0xf]
        %v336 = vld [vmem:[%s1 + $0x100] sm:$0xf]
        %v337 = vld [vmem:[%s1 + $0x104] sm:$0xf]
        %v338 = vld [vmem:[%s1 + $0x108] sm:$0xf]
        %v339 = vld [vmem:[%s1 + $0x10c] sm:$0xf]
        %v340 = vld [vmem:[%s1 + $0x110] sm:$0xf]
        %v341 = vld [vmem:[%s1 + $0x114] sm:$0xf]
        %v342 = vld [vmem:[%s1 + $0x118] sm:$0xf]
        %v343 = vld [vmem:[%s1 + $0x11c] sm:$0xf]
        %v344 = vld [vmem:[%s2] sm:$0x1]
        %v346 = vlaneseq
        %v347 = vshrl.u32 %v346, 7
        %v348 = vsub.s32 0, %v347
        %v349 = vrot.slane %v344, %v348
        %v447 = vunpack.c.l.b16 %v176
        %v448 = vunpack.c.h.b16 %v176
        %v449 = vunpack.c.l.b16 %v177
        %v450 = vunpack.c.h.b16 %v177
        %v451 = vunpack.c.l.b16 %v178
        %v452 = vunpack.c.l.b16 %v179
        %v453 = vunpack.c.h.b16 %v179
        %v454 = vunpack.c.l.b16 %v180
        %v455 = vunpack.c.h.b16 %v180
        %v456 = vunpack.c.l.b16 %v181
        %v457 = vunpack.c.l.b16 %v182
        %v458 = vunpack.c.h.b16 %v182
        %v459 = vunpack.c.l.b16 %v183
        %v460 = vunpack.c.h.b16 %v183
        %v461 = vunpack.c.l.b16 %v184
        %v462 = vunpack.c.l.b16 %v185
        %v463 = vunpack.c.h.b16 %v185
        %v464 = vunpack.c.l.b16 %v186
        %v465 = vunpack.c.h.b16 %v186
        %v466 = vunpack.c.l.b16 %v187
        %v467 = vunpack.c.l.b16 %v188
        %v468 = vunpack.c.h.b16 %v188
        %v469 = vunpack.c.l.b16 %v189
        %v470 = vunpack.c.h.b16 %v189
        %v471 = vunpack.c.l.b16 %v190
        %v472 = vunpack.c.l.b16 %v191
        %v473 = vunpack.c.h.b16 %v191
        %v474 = vunpack.c.l.b16 %v192
        %v475 = vunpack.c.h.b16 %v192
        %v476 = vunpack.c.l.b16 %v193
        %v477 = vunpack.c.l.b16 %v194
        %v478 = vunpack.c.h.b16 %v194
        %v479 = vunpack.c.l.b16 %v195
        %v480 = vunpack.c.h.b16 %v195
        %v481 = vunpack.c.l.b16 %v196
        %v482 = vunpack.c.l.b16 %v197
        %v483 = vunpack.c.h.b16 %v197
        %v484 = vunpack.c.l.b16 %v198
        %v485 = vunpack.c.h.b16 %v198
        %v486 = vunpack.c.l.b16 %v199
        %v487 = vunpack.c.l.b16 %v200
        %v488 = vunpack.c.h.b16 %v200
        %v489 = vunpack.c.l.b16 %v201
        %v490 = vunpack.c.h.b16 %v201
        %v491 = vunpack.c.l.b16 %v202
        %v492 = vunpack.c.l.b16 %v203
        %v493 = vunpack.c.h.b16 %v203
        %v494 = vunpack.c.l.b16 %v204
        %v495 = vunpack.c.h.b16 %v204
        %v496 = vunpack.c.l.b16 %v205
        %v497 = vunpack.c.l.b16 %v206
        %v498 = vunpack.c.h.b16 %v206
        %v499 = vunpack.c.l.b16 %v207
        %v500 = vunpack.c.h.b16 %v207
        %v501 = vunpack.c.l.b16 %v208
        %v502 = vunpack.c.l.b16 %v209
        %v503 = vunpack.c.h.b16 %v209
        %v504 = vunpack.c.l.b16 %v210
        %v505 = vunpack.c.h.b16 %v210
        %v506 = vunpack.c.l.b16 %v211
        %v507 = vunpack.c.l.b16 %v212
        %v508 = vunpack.c.h.b16 %v212
        %v509 = vunpack.c.l.b16 %v213
        %v510 = vunpack.c.h.b16 %v213
        %v511 = vunpack.c.l.b16 %v214
        %v512 = vunpack.c.l.b16 %v215
        %v513 = vunpack.c.h.b16 %v215
        %v514 = vunpack.c.l.b16 %v216
        %v515 = vunpack.c.h.b16 %v216
        %v516 = vunpack.c.l.b16 %v217
        %v517 = vunpack.c.l.b16 %v218
        %v518 = vunpack.c.h.b16 %v218
        %v519 = vunpack.c.l.b16 %v219
        %v520 = vunpack.c.h.b16 %v219
        %v521 = vunpack.c.l.b16 %v220
        %v522 = vunpack.c.l.b16 %v221
        %v523 = vunpack.c.h.b16 %v221
        %v524 = vunpack.c.l.b16 %v222
        %v525 = vunpack.c.h.b16 %v222
        %v526 = vunpack.c.l.b16 %v223
        %v527 = vunpack.c.l.b16 %v224
        %v528 = vunpack.c.h.b16 %v224
        %v529 = vunpack.c.l.b16 %v225
        %v530 = vunpack.c.h.b16 %v225
        %v531 = vunpack.c.l.b16 %v226
        %v532 = vunpack.c.l.b16 %v227
        %v533 = vunpack.c.h.b16 %v227
        %v534 = vunpack.c.l.b16 %v228
        %v535 = vunpack.c.h.b16 %v228
        %v536 = vunpack.c.l.b16 %v229
        %v537 = vunpack.c.l.b16 %v230
        %v538 = vunpack.c.h.b16 %v230
        %v539 = vunpack.c.l.b16 %v231
        %v540 = vunpack.c.h.b16 %v231
        %v541 = vunpack.c.l.b16 %v232
        %v542 = vunpack.c.l.b16 %v233
        %v543 = vunpack.c.h.b16 %v233
        %v544 = vunpack.c.l.b16 %v234
        %v545 = vunpack.c.h.b16 %v234
        %v546 = vunpack.c.l.b16 %v235
        %v547 = vunpack.c.l.b16 %v236
        %v548 = vunpack.c.h.b16 %v236
        %v549 = vunpack.c.l.b16 %v237
        %v550 = vunpack.c.h.b16 %v237
        %v551 = vunpack.c.l.b16 %v238
        %v552 = vunpack.c.l.b16 %v239
        %v553 = vunpack.c.h.b16 %v239
        %v554 = vunpack.c.l.b16 %v240
        %v555 = vunpack.c.h.b16 %v240
        %v556 = vunpack.c.l.b16 %v241
        %v557 = vunpack.c.l.b16 %v242
        %v558 = vunpack.c.h.b16 %v242
        %v559 = vunpack.c.l.b16 %v243
        %v560 = vunpack.c.h.b16 %v243
        %v561 = vunpack.c.l.b16 %v244
        %v562 = vunpack.c.l.b16 %v245
        %v563 = vunpack.c.h.b16 %v245
        %v564 = vunpack.c.l.b16 %v246
        %v565 = vunpack.c.h.b16 %v246
        %v566 = vunpack.c.l.b16 %v247
        %v567 = vunpack.c.l.b16 %v248
        %v568 = vunpack.c.h.b16 %v248
        %v569 = vunpack.c.l.b16 %v249
        %v570 = vunpack.c.h.b16 %v249
        %v571 = vunpack.c.l.b16 %v250
        %v572 = vunpack.c.l.b16 %v251
        %v573 = vunpack.c.h.b16 %v251
        %v574 = vunpack.c.l.b16 %v252
        %v575 = vunpack.c.h.b16 %v252
        %v576 = vunpack.c.l.b16 %v253
        %v577 = vunpack.c.l.b16 %v254
        %v578 = vunpack.c.h.b16 %v254
        %v579 = vunpack.c.l.b16 %v255
        %v580 = vunpack.c.h.b16 %v255
        %v581 = vunpack.c.l.b16 %v256
        %v582 = vunpack.c.l.b16 %v257
        %v583 = vunpack.c.h.b16 %v257
        %v584 = vunpack.c.l.b16 %v258
        %v585 = vunpack.c.h.b16 %v258
        %v586 = vunpack.c.l.b16 %v259
        %v587 = vunpack.c.l.b16 %v260
        %v588 = vunpack.c.h.b16 %v260
        %v589 = vunpack.c.l.b16 %v261
        %v590 = vunpack.c.h.b16 %v261
        %v591 = vunpack.c.l.b16 %v262
        %v592 = vunpack.c.l.b16 %v263
        %v593 = vunpack.c.h.b16 %v263
        %v594 = vunpack.c.l.b16 %v264
        %v595 = vunpack.c.h.b16 %v264
        %v596 = vunpack.c.l.b16 %v265
        %v597 = vunpack.c.l.b16 %v266
        %v598 = vunpack.c.h.b16 %v266
        %v599 = vunpack.c.l.b16 %v267
        %v600 = vunpack.c.h.b16 %v267
        %v601 = vunpack.c.l.b16 %v268
        %v602 = vunpack.c.l.b16 %v269
        %v603 = vunpack.c.h.b16 %v269
        %v604 = vunpack.c.l.b16 %v270
        %v605 = vunpack.c.h.b16 %v270
        %v606 = vunpack.c.l.b16 %v271
        %v607 = vpack.c.b16 %v452, %v447
        %v608 = vpack.c.b16 %v453, %v448
        %v609 = vpack.c.b16 %v454, %v449
        %v610 = vpack.c.b16 %v455, %v450
        %v611 = vpack.c.b16 %v456, %v451
        %v612 = vpack.c.b16 %v462, %v457
        %v613 = vpack.c.b16 %v463, %v458
        %v614 = vpack.c.b16 %v464, %v459
        %v615 = vpack.c.b16 %v465, %v460
        %v616 = vpack.c.b16 %v466, %v461
        %v617 = vpack.c.b16 %v472, %v467
        %v618 = vpack.c.b16 %v473, %v468
        %v619 = vpack.c.b16 %v474, %v469
        %v620 = vpack.c.b16 %v475, %v470
        %v621 = vpack.c.b16 %v476, %v471
        %v622 = vpack.c.b16 %v482, %v477
        %v623 = vpack.c.b16 %v483, %v478
        %v624 = vpack.c.b16 %v484, %v479
        %v625 = vpack.c.b16 %v485, %v480
        %v626 = vpack.c.b16 %v486, %v481
        %v627 = vpack.c.b16 %v492, %v487
        %v628 = vpack.c.b16 %v493, %v488
        %v629 = vpack.c.b16 %v494, %v489
        %v630 = vpack.c.b16 %v495, %v490
        %v631 = vpack.c.b16 %v496, %v491
        %v632 = vpack.c.b16 %v502, %v497
        %v633 = vpack.c.b16 %v503, %v498
        %v634 = vpack.c.b16 %v504, %v499
        %v635 = vpack.c.b16 %v505, %v500
        %v636 = vpack.c.b16 %v506, %v501
        %v637 = vpack.c.b16 %v512, %v507
        %v638 = vpack.c.b16 %v513, %v508
        %v639 = vpack.c.b16 %v514, %v509
        %v640 = vpack.c.b16 %v515, %v510
        %v641 = vpack.c.b16 %v516, %v511
        %v642 = vpack.c.b16 %v522, %v517
        %v643 = vpack.c.b16 %v523, %v518
        %v644 = vpack.c.b16 %v524, %v519
        %v645 = vpack.c.b16 %v525, %v520
        %v646 = vpack.c.b16 %v526, %v521
        %v647 = vpack.c.b16 %v532, %v527
        %v648 = vpack.c.b16 %v533, %v528
        %v649 = vpack.c.b16 %v534, %v529
        %v650 = vpack.c.b16 %v535, %v530
        %v651 = vpack.c.b16 %v536, %v531
        %v652 = vpack.c.b16 %v542, %v537
        %v653 = vpack.c.b16 %v543, %v538
        %v654 = vpack.c.b16 %v544, %v539
        %v655 = vpack.c.b16 %v545, %v540
        %v656 = vpack.c.b16 %v546, %v541
        %v657 = vpack.c.b16 %v552, %v547
        %v658 = vpack.c.b16 %v553, %v548
        %v659 = vpack.c.b16 %v554, %v549
        %v660 = vpack.c.b16 %v555, %v550
        %v661 = vpack.c.b16 %v556, %v551
        %v662 = vpack.c.b16 %v562, %v557
        %v663 = vpack.c.b16 %v563, %v558
        %v664 = vpack.c.b16 %v564, %v559
        %v665 = vpack.c.b16 %v565, %v560
        %v666 = vpack.c.b16 %v566, %v561
        %v667 = vpack.c.b16 %v572, %v567
        %v668 = vpack.c.b16 %v573, %v568
        %v669 = vpack.c.b16 %v574, %v569
        %v670 = vpack.c.b16 %v575, %v570
        %v671 = vpack.c.b16 %v576, %v571
        %v672 = vpack.c.b16 %v582, %v577
        %v673 = vpack.c.b16 %v583, %v578
        %v674 = vpack.c.b16 %v584, %v579
        %v675 = vpack.c.b16 %v585, %v580
        %v676 = vpack.c.b16 %v586, %v581
        %v677 = vpack.c.b16 %v592, %v587
        %v678 = vpack.c.b16 %v593, %v588
        %v679 = vpack.c.b16 %v594, %v589
        %v680 = vpack.c.b16 %v595, %v590
        %v681 = vpack.c.b16 %v596, %v591
        %v682 = vpack.c.b16 %v602, %v597
        %v683 = vpack.c.b16 %v603, %v598
        %v684 = vpack.c.b16 %v604, %v599
        %v685 = vpack.c.b16 %v605, %v600
        %v686 = vpack.c.b16 %v606, %v601
        %v823 = vunpack.c.l.b16 %v272
        %v824 = vunpack.c.l.b16 %v273
        %v825 = vunpack.c.l.b16 %v274
        %v826 = vunpack.c.l.b16 %v275
        %v827 = vunpack.c.l.b16 %v276
        %v828 = vunpack.c.l.b16 %v277
        %v829 = vunpack.c.l.b16 %v278
        %v830 = vunpack.c.l.b16 %v279
        %v831 = vunpack.c.l.b16 %v280
        %v832 = vunpack.c.l.b16 %v281
        %v833 = vunpack.c.l.b16 %v282
        %v834 = vunpack.c.l.b16 %v283
        %v835 = vunpack.c.l.b16 %v284
        %v836 = vunpack.c.l.b16 %v285
        %v837 = vunpack.c.l.b16 %v286
        %v838 = vunpack.c.l.b16 %v287
        %v839 = vunpack.c.l.b16 %v288
        %v840 = vunpack.c.l.b16 %v289
        %v841 = vunpack.c.l.b16 %v290
        %v842 = vunpack.c.l.b16 %v291
        %v843 = vunpack.c.l.b16 %v292
        %v844 = vunpack.c.l.b16 %v293
        %v845 = vunpack.c.l.b16 %v294
        %v846 = vunpack.c.l.b16 %v295
        %v847 = vunpack.c.l.b16 %v296
        %v848 = vunpack.c.l.b16 %v297
        %v849 = vunpack.c.l.b16 %v298
        %v850 = vunpack.c.l.b16 %v299
        %v851 = vunpack.c.l.b16 %v300
        %v852 = vunpack.c.l.b16 %v301
        %v853 = vunpack.c.l.b16 %v302
        %v854 = vunpack.c.l.b16 %v303
        %v855 = vunpack.c.l.b16 %v304
        %v856 = vunpack.c.l.b16 %v305
        %v857 = vunpack.c.l.b16 %v306
        %v858 = vunpack.c.l.b16 %v307
        %v859 = vunpack.c.l.b16 %v308
        %v860 = vunpack.c.l.b16 %v309
        %v861 = vunpack.c.l.b16 %v310
        %v862 = vunpack.c.l.b16 %v311
        %v863 = vunpack.c.l.b16 %v312
        %v864 = vunpack.c.l.b16 %v313
        %v865 = vunpack.c.l.b16 %v314
        %v866 = vunpack.c.l.b16 %v315
        %v867 = vunpack.c.l.b16 %v316
        %v868 = vunpack.c.l.b16 %v317
        %v869 = vunpack.c.l.b16 %v318
        %v870 = vunpack.c.l.b16 %v319
        %v871 = vunpack.c.l.b16 %v320
        %v872 = vunpack.c.l.b16 %v321
        %v873 = vunpack.c.l.b16 %v322
        %v874 = vunpack.c.l.b16 %v323
        %v875 = vunpack.c.l.b16 %v324
        %v876 = vunpack.c.l.b16 %v325
        %v877 = vunpack.c.l.b16 %v326
        %v878 = vunpack.c.l.b16 %v327
        %v879 = vunpack.c.l.b16 %v328
        %v880 = vunpack.c.l.b16 %v329
        %v881 = vunpack.c.l.b16 %v330
        %v882 = vunpack.c.l.b16 %v331
        %v883 = vunpack.c.l.b16 %v332
        %v884 = vunpack.c.l.b16 %v333
        %v885 = vunpack.c.l.b16 %v334
        %v886 = vunpack.c.l.b16 %v335
        %v887 = vunpack.c.l.b16 %v336
        %v888 = vunpack.c.l.b16 %v337
        %v889 = vunpack.c.l.b16 %v338
        %v890 = vunpack.c.l.b16 %v339
        %v891 = vunpack.c.l.b16 %v340
        %v892 = vunpack.c.l.b16 %v341
        %v893 = vunpack.c.l.b16 %v342
        %v894 = vunpack.c.l.b16 %v343
        %v895 = vpack.c.b16 %v824, %v823
        %v896 = vpack.c.b16 %v826, %v825
        %v897 = vpack.c.b16 %v828, %v827
        %v898 = vpack.c.b16 %v830, %v829
        %v899 = vpack.c.b16 %v832, %v831
        %v900 = vpack.c.b16 %v834, %v833
        %v901 = vpack.c.b16 %v836, %v835
        %v902 = vpack.c.b16 %v838, %v837
        %v903 = vpack.c.b16 %v840, %v839
        %v904 = vpack.c.b16 %v842, %v841
        %v905 = vpack.c.b16 %v844, %v843
        %v906 = vpack.c.b16 %v846, %v845
        %v907 = vpack.c.b16 %v848, %v847
        %v908 = vpack.c.b16 %v850, %v849
        %v909 = vpack.c.b16 %v852, %v851
        %v910 = vpack.c.b16 %v854, %v853
        %v911 = vpack.c.b16 %v856, %v855
        %v912 = vpack.c.b16 %v858, %v857
        %v913 = vpack.c.b16 %v860, %v859
        %v914 = vpack.c.b16 %v862, %v861
        %v915 = vpack.c.b16 %v864, %v863
        %v916 = vpack.c.b16 %v866, %v865
        %v917 = vpack.c.b16 %v868, %v867
        %v918 = vpack.c.b16 %v870, %v869
        %v919 = vpack.c.b16 %v872, %v871
        %v920 = vpack.c.b16 %v874, %v873
        %v921 = vpack.c.b16 %v876, %v875
        %v922 = vpack.c.b16 %v878, %v877
        %v923 = vpack.c.b16 %v880, %v879
        %v924 = vpack.c.b16 %v882, %v881
        %v925 = vpack.c.b16 %v884, %v883
        %v926 = vpack.c.b16 %v886, %v885
        %v927 = vpack.c.b16 %v888, %v887
        %v928 = vpack.c.b16 %v890, %v889
        %v929 = vpack.c.b16 %v892, %v891
        %v930 = vpack.c.b16 %v894, %v893
        %vm967 = vcmask 523264
        %v969 = vsel %vm967, %v611, 0
        %v972 = vsel %vm967, %v616, 0
        %v975 = vsel %vm967, %v621, 0
        %v978 = vsel %vm967, %v626, 0
        %v981 = vsel %vm967, %v631, 0
        %v984 = vsel %vm967, %v636, 0
        %v987 = vsel %vm967, %v641, 0
        %v990 = vsel %vm967, %v646, 0
        %v993 = vsel %vm967, %v651, 0
        %v996 = vsel %vm967, %v656, 0
        %v999 = vsel %vm967, %v661, 0
        %v1002 = vsel %vm967, %v666, 0
        %v1005 = vsel %vm967, %v671, 0
        %v1008 = vsel %vm967, %v676, 0
        %v1011 = vsel %vm967, %v681, 0
        %v1014 = vsel %vm967, %v686, 0
        %1016 = vmatprep.subr.bf16.mxu0 0
        %1017 = vmatpush1.bf16.msra.mxu0 %v902
        %1018 = vmatprep.subr.bf16.mxu0 0
        %1019 = vmatpush1.bf16.msra.mxu0 %v901
        %1020 = vmatprep.subr.bf16.mxu0 0
        %1021 = vmatpush1.bf16.msra.mxu0 %v900
        %1022 = vmatprep.subr.bf16.mxu0 0
        %1023 = vmatpush1.bf16.msra.mxu0 %v899
        %1024 = vmatprep.subr.bf16.mxu0 0
        %1025 = vmatpush1.bf16.msra.mxu0 %v898
        %1026 = vmatprep.subr.bf16.mxu0 0
        %1027 = vmatpush1.bf16.msra.mxu0 %v897
        %1028 = vmatprep.subr.bf16.mxu0 0
        %1029 = vmatpush1.bf16.msra.mxu0 %v896
        %1030 = vmatprep.subr.bf16.mxu0 0
        %1031 = vmatpush1.bf16.msra.mxu0 %v895
        %1032 = vmatprep.subr.bf16.mxu0 0
        %1033 = vmatpush2.bf16.msra.mxu0 %v910
        %1034 = vmatprep.subr.bf16.mxu0 0
        %1035 = vmatpush2.bf16.msra.mxu0 %v909
        %1036 = vmatprep.subr.bf16.mxu0 0
        %1037 = vmatpush2.bf16.msra.mxu0 %v908
        %1038 = vmatprep.subr.bf16.mxu0 0
        %1039 = vmatpush2.bf16.msra.mxu0 %v907
        %1040 = vmatprep.subr.bf16.mxu0 0
        %1041 = vmatpush2.bf16.msra.mxu0 %v906
        %1042 = vmatprep.subr.bf16.mxu0 0
        %1043 = vmatpush2.bf16.msra.mxu0 %v905
        %1044 = vmatprep.subr.bf16.mxu0 0
        %1045 = vmatpush2.bf16.msra.mxu0 %v904
        %1046 = vmatprep.subr.bf16.mxu0 0
        %1047 = vmatpush2.bf16.msra.mxu0 %v903
        %1048 = vmatprep.mubr.bf16.mxu0 %v608
        %1049 = vmatmul.mubr.bf16.gmra.mxu0 %v607
        %v1050 = vpop.f32.mrf.mxu0
        %v1051 = vadd.f32 %v349, %v1050
        %v1052 = vpop.f32.mrf.mxu0
        %v1053 = vpop.f32.mrf.mxu0
        %v1054 = vadd.f32 %v349, %v1053
        %v1055 = vpop.f32.mrf.mxu0
        %1056 = vmatprep.mubr.bf16.mxu0 %v613
        %1057 = vmatmul.mubr.bf16.gmra.mxu0 %v612
        %v1058 = vpop.f32.mrf.mxu0
        %v1059 = vadd.f32 %v349, %v1058
        %v1060 = vpop.f32.mrf.mxu0
        %v1061 = vpop.f32.mrf.mxu0
        %v1062 = vadd.f32 %v349, %v1061
        %v1063 = vpop.f32.mrf.mxu0
        %1064 = vmatprep.mubr.bf16.mxu0 %v618
        %1065 = vmatmul.mubr.bf16.gmra.mxu0 %v617
        %v1066 = vpop.f32.mrf.mxu0
        %v1067 = vadd.f32 %v349, %v1066
        %v1068 = vpop.f32.mrf.mxu0
        %v1069 = vpop.f32.mrf.mxu0
        %v1070 = vadd.f32 %v349, %v1069
        %v1071 = vpop.f32.mrf.mxu0
        %1072 = vmatprep.mubr.bf16.mxu0 %v623
        %1073 = vmatmul.mubr.bf16.gmra.mxu0 %v622
        %v1074 = vpop.f32.mrf.mxu0
        %v1075 = vadd.f32 %v349, %v1074
        %v1076 = vpop.f32.mrf.mxu0
        %v1077 = vpop.f32.mrf.mxu0
        %v1078 = vadd.f32 %v349, %v1077
        %v1079 = vpop.f32.mrf.mxu0
        %1080 = vmatprep.mubr.bf16.mxu0 %v628
        %1081 = vmatmul.mubr.bf16.gmra.mxu0 %v627
        %v1082 = vpop.f32.mrf.mxu0
        %v1083 = vadd.f32 %v349, %v1082
        %v1084 = vpop.f32.mrf.mxu0
        %v1085 = vpop.f32.mrf.mxu0
        %v1086 = vadd.f32 %v349, %v1085
        %v1087 = vpop.f32.mrf.mxu0
        %1088 = vmatprep.mubr.bf16.mxu0 %v633
        %1089 = vmatmul.mubr.bf16.gmra.mxu0 %v632
        %v1090 = vpop.f32.mrf.mxu0
        %v1091 = vadd.f32 %v349, %v1090
        %v1092 = vpop.f32.mrf.mxu0
        %v1093 = vpop.f32.mrf.mxu0
        %v1094 = vadd.f32 %v349, %v1093
        %v1095 = vpop.f32.mrf.mxu0
        %1096 = vmatprep.mubr.bf16.mxu0 %v638
        %1097 = vmatmul.mubr.bf16.gmra.mxu0 %v637
        %v1098 = vpop.f32.mrf.mxu0
        %v1099 = vadd.f32 %v349, %v1098
        %v1100 = vpop.f32.mrf.mxu0
        %v1101 = vpop.f32.mrf.mxu0
        %v1102 = vadd.f32 %v349, %v1101
        %v1103 = vpop.f32.mrf.mxu0
        %1104 = vmatprep.mubr.bf16.mxu0 %v643
        %1105 = vmatmul.mubr.bf16.gmra.mxu0 %v642
        %v1106 = vpop.f32.mrf.mxu0
        %v1107 = vadd.f32 %v349, %v1106
        %v1108 = vpop.f32.mrf.mxu0
        %v1109 = vpop.f32.mrf.mxu0
        %v1110 = vadd.f32 %v349, %v1109
        %v1111 = vpop.f32.mrf.mxu0
        %1112 = vmatprep.mubr.bf16.mxu0 %v648
        %1113 = vmatmul.mubr.bf16.gmra.mxu0 %v647
        %v1114 = vpop.f32.mrf.mxu0
        %v1115 = vadd.f32 %v349, %v1114
        %v1116 = vpop.f32.mrf.mxu0
        %v1117 = vpop.f32.mrf.mxu0
        %v1118 = vadd.f32 %v349, %v1117
        %v1119 = vpop.f32.mrf.mxu0
        %1120 = vmatprep.mubr.bf16.mxu0 %v653
        %1121 = vmatmul.mubr.bf16.gmra.mxu0 %v652
        %v1122 = vpop.f32.mrf.mxu0
        %v1123 = vadd.f32 %v349, %v1122
        %v1124 = vpop.f32.mrf.mxu0
        %v1125 = vpop.f32.mrf.mxu0
        %v1126 = vadd.f32 %v349, %v1125
        %v1127 = vpop.f32.mrf.mxu0
        %1128 = vmatprep.mubr.bf16.mxu0 %v658
        %1129 = vmatmul.mubr.bf16.gmra.mxu0 %v657
        %v1130 = vpop.f32.mrf.mxu0
        %v1131 = vadd.f32 %v349, %v1130
        %v1132 = vpop.f32.mrf.mxu0
        %v1133 = vpop.f32.mrf.mxu0
        %v1134 = vadd.f32 %v349, %v1133
        %v1135 = vpop.f32.mrf.mxu0
        %1136 = vmatprep.mubr.bf16.mxu0 %v663
        %1137 = vmatmul.mubr.bf16.gmra.mxu0 %v662
        %v1138 = vpop.f32.mrf.mxu0
        %v1139 = vadd.f32 %v349, %v1138
        %v1140 = vpop.f32.mrf.mxu0
        %v1141 = vpop.f32.mrf.mxu0
        %v1142 = vadd.f32 %v349, %v1141
        %v1143 = vpop.f32.mrf.mxu0
        %1144 = vmatprep.mubr.bf16.mxu0 %v668
        %1145 = vmatmul.mubr.bf16.gmra.mxu0 %v667
        %v1146 = vpop.f32.mrf.mxu0
        %v1147 = vadd.f32 %v349, %v1146
        %v1148 = vpop.f32.mrf.mxu0
        %v1149 = vpop.f32.mrf.mxu0
        %v1150 = vadd.f32 %v349, %v1149
        %v1151 = vpop.f32.mrf.mxu0
        %1152 = vmatprep.mubr.bf16.mxu0 %v673
        %1153 = vmatmul.mubr.bf16.gmra.mxu0 %v672
        %v1154 = vpop.f32.mrf.mxu0
        %v1155 = vadd.f32 %v349, %v1154
        %v1156 = vpop.f32.mrf.mxu0
        %v1157 = vpop.f32.mrf.mxu0
        %v1158 = vadd.f32 %v349, %v1157
        %v1159 = vpop.f32.mrf.mxu0
        %1160 = vmatprep.mubr.bf16.mxu0 %v678
        %1161 = vmatmul.mubr.bf16.gmra.mxu0 %v677
        %v1162 = vpop.f32.mrf.mxu0
        %v1163 = vadd.f32 %v349, %v1162
        %v1164 = vpop.f32.mrf.mxu0
        %v1165 = vpop.f32.mrf.mxu0
        %v1166 = vadd.f32 %v349, %v1165
        %v1167 = vpop.f32.mrf.mxu0
        %1168 = vmatprep.mubr.bf16.mxu0 %v683
        %1169 = vmatmul.mubr.bf16.gmra.mxu0 %v682
        %v1170 = vpop.f32.mrf.mxu0
        %v1171 = vadd.f32 %v349, %v1170
        %v1172 = vpop.f32.mrf.mxu0
        %v1173 = vpop.f32.mrf.mxu0
        %v1174 = vadd.f32 %v349, %v1173
        %v1175 = vpop.f32.mrf.mxu0
        %1176 = vdwg.mxu0
        %1177 = vmatprep.subr.bf16.mxu0 0
        %1178 = vmatpush1.bf16.msra.mxu0 %v918
        %1179 = vmatprep.subr.bf16.mxu0 0
        %1180 = vmatpush1.bf16.msra.mxu0 %v917
        %1181 = vmatprep.subr.bf16.mxu0 0
        %1182 = vmatpush1.bf16.msra.mxu0 %v916
        %1183 = vmatprep.subr.bf16.mxu0 0
        %1184 = vmatpush1.bf16.msra.mxu0 %v915
        %1185 = vmatprep.subr.bf16.mxu0 0
        %1186 = vmatpush1.bf16.msra.mxu0 %v914
        %1187 = vmatprep.subr.bf16.mxu0 0
        %1188 = vmatpush1.bf16.msra.mxu0 %v913
        %1189 = vmatprep.subr.bf16.mxu0 0
        %1190 = vmatpush1.bf16.msra.mxu0 %v912
        %1191 = vmatprep.subr.bf16.mxu0 0
        %1192 = vmatpush1.bf16.msra.mxu0 %v911
        %1193 = vmatprep.subr.bf16.mxu0 0
        %1194 = vmatpush2.bf16.msra.mxu0 %v926
        %1195 = vmatprep.subr.bf16.mxu0 0
        %1196 = vmatpush2.bf16.msra.mxu0 %v925
        %1197 = vmatprep.subr.bf16.mxu0 0
        %1198 = vmatpush2.bf16.msra.mxu0 %v924
        %1199 = vmatprep.subr.bf16.mxu0 0
        %1200 = vmatpush2.bf16.msra.mxu0 %v923
        %1201 = vmatprep.subr.bf16.mxu0 0
        %1202 = vmatpush2.bf16.msra.mxu0 %v922
        %1203 = vmatprep.subr.bf16.mxu0 0
        %1204 = vmatpush2.bf16.msra.mxu0 %v921
        %1205 = vmatprep.subr.bf16.mxu0 0
        %1206 = vmatpush2.bf16.msra.mxu0 %v920
        %1207 = vmatprep.subr.bf16.mxu0 0
        %1208 = vmatpush2.bf16.msra.mxu0 %v919
        %1209 = vmatprep.mubr.bf16.mxu0 %v610
        %1210 = vmatmul.mubr.bf16.gmra.mxu0 %v609
        %v1211 = vpop.f32.mrf.mxu0
        %v1212 = vadd.f32 %v1051, %v1211
        %v1213 = vpop.f32.mrf.mxu0
        %v1214 = vpop.f32.mrf.mxu0
        %v1215 = vadd.f32 %v1054, %v1214
        %v1216 = vpop.f32.mrf.mxu0
        %1217 = vmatprep.mubr.bf16.mxu0 %v615
        %1218 = vmatmul.mubr.bf16.gmra.mxu0 %v614
        %v1219 = vpop.f32.mrf.mxu0
        %v1220 = vadd.f32 %v1059, %v1219
        %v1221 = vpop.f32.mrf.mxu0
        %v1222 = vpop.f32.mrf.mxu0
        %v1223 = vadd.f32 %v1062, %v1222
        %v1224 = vpop.f32.mrf.mxu0
        %1225 = vmatprep.mubr.bf16.mxu0 %v620
        %1226 = vmatmul.mubr.bf16.gmra.mxu0 %v619
        %v1227 = vpop.f32.mrf.mxu0
        %v1228 = vadd.f32 %v1067, %v1227
        %v1229 = vpop.f32.mrf.mxu0
        %v1230 = vpop.f32.mrf.mxu0
        %v1231 = vadd.f32 %v1070, %v1230
        %v1232 = vpop.f32.mrf.mxu0
        %1233 = vmatprep.mubr.bf16.mxu0 %v625
        %1234 = vmatmul.mubr.bf16.gmra.mxu0 %v624
        %v1235 = vpop.f32.mrf.mxu0
        %v1236 = vadd.f32 %v1075, %v1235
        %v1237 = vpop.f32.mrf.mxu0
        %v1238 = vpop.f32.mrf.mxu0
        %v1239 = vadd.f32 %v1078, %v1238
        %v1240 = vpop.f32.mrf.mxu0
        %1241 = vmatprep.mubr.bf16.mxu0 %v630
        %1242 = vmatmul.mubr.bf16.gmra.mxu0 %v629
        %v1243 = vpop.f32.mrf.mxu0
        %v1244 = vadd.f32 %v1083, %v1243
        %v1245 = vpop.f32.mrf.mxu0
        %v1246 = vpop.f32.mrf.mxu0
        %v1247 = vadd.f32 %v1086, %v1246
        %v1248 = vpop.f32.mrf.mxu0
        %1249 = vmatprep.mubr.bf16.mxu0 %v635
        %1250 = vmatmul.mubr.bf16.gmra.mxu0 %v634
        %v1251 = vpop.f32.mrf.mxu0
        %v1252 = vadd.f32 %v1091, %v1251
        %v1253 = vpop.f32.mrf.mxu0
        %v1254 = vpop.f32.mrf.mxu0
        %v1255 = vadd.f32 %v1094, %v1254
        %v1256 = vpop.f32.mrf.mxu0
        %1257 = vmatprep.mubr.bf16.mxu0 %v640
        %1258 = vmatmul.mubr.bf16.gmra.mxu0 %v639
        %v1259 = vpop.f32.mrf.mxu0
        %v1260 = vadd.f32 %v1099, %v1259
        %v1261 = vpop.f32.mrf.mxu0
        %v1262 = vpop.f32.mrf.mxu0
        %v1263 = vadd.f32 %v1102, %v1262
        %v1264 = vpop.f32.mrf.mxu0
        %1265 = vmatprep.mubr.bf16.mxu0 %v645
        %1266 = vmatmul.mubr.bf16.gmra.mxu0 %v644
        %v1267 = vpop.f32.mrf.mxu0
        %v1268 = vadd.f32 %v1107, %v1267
        %v1269 = vpop.f32.mrf.mxu0
        %v1270 = vpop.f32.mrf.mxu0
        %v1271 = vadd.f32 %v1110, %v1270
        %v1272 = vpop.f32.mrf.mxu0
        %1273 = vmatprep.mubr.bf16.mxu0 %v650
        %1274 = vmatmul.mubr.bf16.gmra.mxu0 %v649
        %v1275 = vpop.f32.mrf.mxu0
        %v1276 = vadd.f32 %v1115, %v1275
        %v1277 = vpop.f32.mrf.mxu0
        %v1278 = vpop.f32.mrf.mxu0
        %v1279 = vadd.f32 %v1118, %v1278
        %v1280 = vpop.f32.mrf.mxu0
        %1281 = vmatprep.mubr.bf16.mxu0 %v655
        %1282 = vmatmul.mubr.bf16.gmra.mxu0 %v654
        %v1283 = vpop.f32.mrf.mxu0
        %v1284 = vadd.f32 %v1123, %v1283
        %v1285 = vpop.f32.mrf.mxu0
        %v1286 = vpop.f32.mrf.mxu0
        %v1287 = vadd.f32 %v1126, %v1286
        %v1288 = vpop.f32.mrf.mxu0
        %1289 = vmatprep.mubr.bf16.mxu0 %v660
        %1290 = vmatmul.mubr.bf16.gmra.mxu0 %v659
        %v1291 = vpop.f32.mrf.mxu0
        %v1292 = vadd.f32 %v1131, %v1291
        %v1293 = vpop.f32.mrf.mxu0
        %v1294 = vpop.f32.mrf.mxu0
        %v1295 = vadd.f32 %v1134, %v1294
        %v1296 = vpop.f32.mrf.mxu0
        %1297 = vmatprep.mubr.bf16.mxu0 %v665
        %1298 = vmatmul.mubr.bf16.gmra.mxu0 %v664
        %v1299 = vpop.f32.mrf.mxu0
        %v1300 = vadd.f32 %v1139, %v1299
        %v1301 = vpop.f32.mrf.mxu0
        %v1302 = vpop.f32.mrf.mxu0
        %v1303 = vadd.f32 %v1142, %v1302
        %v1304 = vpop.f32.mrf.mxu0
        %1305 = vmatprep.mubr.bf16.mxu0 %v670
        %1306 = vmatmul.mubr.bf16.gmra.mxu0 %v669
        %v1307 = vpop.f32.mrf.mxu0
        %v1308 = vadd.f32 %v1147, %v1307
        %v1309 = vpop.f32.mrf.mxu0
        %v1310 = vpop.f32.mrf.mxu0
        %v1311 = vadd.f32 %v1150, %v1310
        %v1312 = vpop.f32.mrf.mxu0
        %1313 = vmatprep.mubr.bf16.mxu0 %v675
        %1314 = vmatmul.mubr.bf16.gmra.mxu0 %v674
        %v1315 = vpop.f32.mrf.mxu0
        %v1316 = vadd.f32 %v1155, %v1315
        %v1317 = vpop.f32.mrf.mxu0
        %v1318 = vpop.f32.mrf.mxu0
        %v1319 = vadd.f32 %v1158, %v1318
        %v1320 = vpop.f32.mrf.mxu0
        %1321 = vmatprep.mubr.bf16.mxu0 %v680
        %1322 = vmatmul.mubr.bf16.gmra.mxu0 %v679
        %v1323 = vpop.f32.mrf.mxu0
        %v1324 = vadd.f32 %v1163, %v1323
        %v1325 = vpop.f32.mrf.mxu0
        %v1326 = vpop.f32.mrf.mxu0
        %v1327 = vadd.f32 %v1166, %v1326
        %v1328 = vpop.f32.mrf.mxu0
        %1329 = vmatprep.mubr.bf16.mxu0 %v685
        %1330 = vmatmul.mubr.bf16.gmra.mxu0 %v684
        %v1331 = vpop.f32.mrf.mxu0
        %v1332 = vadd.f32 %v1171, %v1331
        %v1333 = vpop.f32.mrf.mxu0
        %v1334 = vpop.f32.mrf.mxu0
        %v1335 = vadd.f32 %v1174, %v1334
        %v1336 = vpop.f32.mrf.mxu0
        %1337 = vdwg.mxu0
        %1338 = vmatprep.subr.bf16.mxu0 0
        %1339 = vmatpush1.bf16.msra.mxu0 0
        %1340 = vmatprep.subr.bf16.mxu0 0
        %1341 = vmatpush1.bf16.msra.mxu0 0
        %1342 = vmatprep.subr.bf16.mxu0 0
        %1343 = vmatpush1.bf16.msra.mxu0 0
        %1344 = vmatprep.subr.bf16.mxu0 0
        %1345 = vmatpush1.bf16.msra.mxu0 0
        %1346 = vmatprep.subr.bf16.mxu0 0
        %1347 = vmatpush1.bf16.msra.mxu0 %v930
        %1348 = vmatprep.subr.bf16.mxu0 0
        %1349 = vmatpush1.bf16.msra.mxu0 %v929
        %1350 = vmatprep.subr.bf16.mxu0 0
        %1351 = vmatpush1.bf16.msra.mxu0 %v928
        %1352 = vmatprep.subr.bf16.mxu0 0
        %1353 = vmatpush1.bf16.msra.mxu0 %v927
        %1354 = vmatprep.subr.bf16.mxu0 0
        %1355 = vmatpush2.bf16.msra.mxu0 0
        %1356 = vmatprep.subr.bf16.mxu0 0
        %1357 = vmatpush2.bf16.msra.mxu0 0
        %1358 = vmatprep.subr.bf16.mxu0 0
        %1359 = vmatpush2.bf16.msra.mxu0 0
        %1360 = vmatprep.subr.bf16.mxu0 0
        %1361 = vmatpush2.bf16.msra.mxu0 0
        %1362 = vmatprep.subr.bf16.mxu0 0
        %1363 = vmatpush2.bf16.msra.mxu0 0
        %1364 = vmatprep.subr.bf16.mxu0 0
        %1365 = vmatpush2.bf16.msra.mxu0 0
        %1366 = vmatprep.subr.bf16.mxu0 0
        %1367 = vmatpush2.bf16.msra.mxu0 0
        %1368 = vmatprep.subr.bf16.mxu0 0
        %1369 = vmatpush2.bf16.msra.mxu0 0
        %1370 = vmatprep.mubr.bf16.mxu0 0
        %1371 = vmatmul.mubr.bf16.gmra.mxu0 %v969
        %v1372 = vpop.f32.mrf.mxu0
        %v1373 = vadd.f32 %v1212, %v1372
        %v1374 = vpop.f32.mrf.mxu0
        %v1375 = vpop.f32.mrf.mxu0
        %v1376 = vadd.f32 %v1215, %v1375
        %v1377 = vpop.f32.mrf.mxu0
        %1378 = vmatprep.mubr.bf16.mxu0 0
        %1379 = vmatmul.mubr.bf16.gmra.mxu0 %v972
        %v1380 = vpop.f32.mrf.mxu0
        %v1381 = vadd.f32 %v1220, %v1380
        %v1382 = vpop.f32.mrf.mxu0
        %v1383 = vpop.f32.mrf.mxu0
        %v1384 = vadd.f32 %v1223, %v1383
        %v1385 = vpop.f32.mrf.mxu0
        %1386 = vmatprep.mubr.bf16.mxu0 0
        %1387 = vmatmul.mubr.bf16.gmra.mxu0 %v975
        %v1388 = vpop.f32.mrf.mxu0
        %v1389 = vadd.f32 %v1228, %v1388
        %v1390 = vpop.f32.mrf.mxu0
        %v1391 = vpop.f32.mrf.mxu0
        %v1392 = vadd.f32 %v1231, %v1391
        %v1393 = vpop.f32.mrf.mxu0
        %1394 = vmatprep.mubr.bf16.mxu0 0
        %1395 = vmatmul.mubr.bf16.gmra.mxu0 %v978
        %v1396 = vpop.f32.mrf.mxu0
        %v1397 = vadd.f32 %v1236, %v1396
        %v1398 = vpop.f32.mrf.mxu0
        %v1399 = vpop.f32.mrf.mxu0
        %v1400 = vadd.f32 %v1239, %v1399
        %v1401 = vpop.f32.mrf.mxu0
        %1402 = vmatprep.mubr.bf16.mxu0 0
        %1403 = vmatmul.mubr.bf16.gmra.mxu0 %v981
        %v1404 = vpop.f32.mrf.mxu0
        %v1405 = vadd.f32 %v1244, %v1404
        %v1406 = vpop.f32.mrf.mxu0
        %v1407 = vpop.f32.mrf.mxu0
        %v1408 = vadd.f32 %v1247, %v1407
        %v1409 = vpop.f32.mrf.mxu0
        %1410 = vmatprep.mubr.bf16.mxu0 0
        %1411 = vmatmul.mubr.bf16.gmra.mxu0 %v984
        %v1412 = vpop.f32.mrf.mxu0
        %v1413 = vadd.f32 %v1252, %v1412
        %v1414 = vpop.f32.mrf.mxu0
        %v1415 = vpop.f32.mrf.mxu0
        %v1416 = vadd.f32 %v1255, %v1415
        %v1417 = vpop.f32.mrf.mxu0
        %1418 = vmatprep.mubr.bf16.mxu0 0
        %1419 = vmatmul.mubr.bf16.gmra.mxu0 %v987
        %v1420 = vpop.f32.mrf.mxu0
        %v1421 = vadd.f32 %v1260, %v1420
        %v1422 = vpop.f32.mrf.mxu0
        %v1423 = vpop.f32.mrf.mxu0
        %v1424 = vadd.f32 %v1263, %v1423
        %v1425 = vpop.f32.mrf.mxu0
        %1426 = vmatprep.mubr.bf16.mxu0 0
        %1427 = vmatmul.mubr.bf16.gmra.mxu0 %v990
        %v1428 = vpop.f32.mrf.mxu0
        %v1429 = vadd.f32 %v1268, %v1428
        %v1430 = vpop.f32.mrf.mxu0
        %v1431 = vpop.f32.mrf.mxu0
        %v1432 = vadd.f32 %v1271, %v1431
        %v1433 = vpop.f32.mrf.mxu0
        %1434 = vmatprep.mubr.bf16.mxu0 0
        %1435 = vmatmul.mubr.bf16.gmra.mxu0 %v993
        %v1436 = vpop.f32.mrf.mxu0
        %v1437 = vadd.f32 %v1276, %v1436
        %v1438 = vpop.f32.mrf.mxu0
        %v1439 = vpop.f32.mrf.mxu0
        %v1440 = vadd.f32 %v1279, %v1439
        %v1441 = vpop.f32.mrf.mxu0
        %1442 = vmatprep.mubr.bf16.mxu0 0
        %1443 = vmatmul.mubr.bf16.gmra.mxu0 %v996
        %v1444 = vpop.f32.mrf.mxu0
        %v1445 = vadd.f32 %v1284, %v1444
        %v1446 = vpop.f32.mrf.mxu0
        %v1447 = vpop.f32.mrf.mxu0
        %v1448 = vadd.f32 %v1287, %v1447
        %v1449 = vpop.f32.mrf.mxu0
        %1450 = vmatprep.mubr.bf16.mxu0 0
        %1451 = vmatmul.mubr.bf16.gmra.mxu0 %v999
        %v1452 = vpop.f32.mrf.mxu0
        %v1453 = vadd.f32 %v1292, %v1452
        %v1454 = vpop.f32.mrf.mxu0
        %v1455 = vpop.f32.mrf.mxu0
        %v1456 = vadd.f32 %v1295, %v1455
        %v1457 = vpop.f32.mrf.mxu0
        %1458 = vmatprep.mubr.bf16.mxu0 0
        %1459 = vmatmul.mubr.bf16.gmra.mxu0 %v1002
        %v1460 = vpop.f32.mrf.mxu0
        %v1461 = vadd.f32 %v1300, %v1460
        %v1462 = vpop.f32.mrf.mxu0
        %v1463 = vpop.f32.mrf.mxu0
        %v1464 = vadd.f32 %v1303, %v1463
        %v1465 = vpop.f32.mrf.mxu0
        %1466 = vmatprep.mubr.bf16.mxu0 0
        %1467 = vmatmul.mubr.bf16.gmra.mxu0 %v1005
        %v1468 = vpop.f32.mrf.mxu0
        %v1469 = vadd.f32 %v1308, %v1468
        %v1470 = vpop.f32.mrf.mxu0
        %v1471 = vpop.f32.mrf.mxu0
        %v1472 = vadd.f32 %v1311, %v1471
        %v1473 = vpop.f32.mrf.mxu0
        %1474 = vmatprep.mubr.bf16.mxu0 0
        %1475 = vmatmul.mubr.bf16.gmra.mxu0 %v1008
        %v1476 = vpop.f32.mrf.mxu0
        %v1477 = vadd.f32 %v1316, %v1476
        %v1478 = vpop.f32.mrf.mxu0
        %v1479 = vpop.f32.mrf.mxu0
        %v1480 = vadd.f32 %v1319, %v1479
        %v1481 = vpop.f32.mrf.mxu0
        %1482 = vmatprep.mubr.bf16.mxu0 0
        %1483 = vmatmul.mubr.bf16.gmra.mxu0 %v1011
        %v1484 = vpop.f32.mrf.mxu0
        %v1485 = vadd.f32 %v1324, %v1484
        %v1486 = vpop.f32.mrf.mxu0
        %v1487 = vpop.f32.mrf.mxu0
        %v1488 = vadd.f32 %v1327, %v1487
        %v1489 = vpop.f32.mrf.mxu0
        %1490 = vmatprep.mubr.bf16.mxu0 0
        %1491 = vmatmul.mubr.bf16.gmra.mxu0 %v1014
        %v1492 = vpop.f32.mrf.mxu0
        %v1493 = vadd.f32 %v1332, %v1492
        %v1494 = vpop.f32.mrf.mxu0
        %v1495 = vpop.f32.mrf.mxu0
        %v1496 = vadd.f32 %v1335, %v1495
        %v1497 = vpop.f32.mrf.mxu0
        %1498 = vdwg.mxu0
        %1499 = vst.msk [vmem:[%s166] sm:$0xff] %vm967, %v1373
        %1500 = vst.msk [vmem:[%s166 + $0x8] sm:$0xff] %vm967, %v1376
        %1501 = vst.msk [vmem:[%s166 + $0x10] sm:$0xff] %vm967, %v1381
        %1502 = vst.msk [vmem:[%s166 + $0x18] sm:$0xff] %vm967, %v1384
        %1503 = vst.msk [vmem:[%s166 + $0x20] sm:$0xff] %vm967, %v1389
        %1504 = vst.msk [vmem:[%s166 + $0x28] sm:$0xff] %vm967, %v1392
        %1505 = vst.msk [vmem:[%s166 + $0x30] sm:$0xff] %vm967, %v1397
        %1506 = vst.msk [vmem:[%s166 + $0x38] sm:$0xff] %vm967, %v1400
        %1507 = vst.msk [vmem:[%s166 + $0x40] sm:$0xff] %vm967, %v1405
        %1508 = vst.msk [vmem:[%s166 + $0x48] sm:$0xff] %vm967, %v1408
        %1509 = vst.msk [vmem:[%s166 + $0x50] sm:$0xff] %vm967, %v1413
        %1510 = vst.msk [vmem:[%s166 + $0x58] sm:$0xff] %vm967, %v1416
        %1511 = vst.msk [vmem:[%s166 + $0x60] sm:$0xff] %vm967, %v1421
        %1512 = vst.msk [vmem:[%s166 + $0x68] sm:$0xff] %vm967, %v1424
        %1513 = vst.msk [vmem:[%s166 + $0x70] sm:$0xff] %vm967, %v1429
        %1514 = vst.msk [vmem:[%s166 + $0x78] sm:$0xff] %vm967, %v1432
        %1515 = vst.msk [vmem:[%s166 + $0x80] sm:$0xff] %vm967, %v1437
        %1516 = vst.msk [vmem:[%s166 + $0x88] sm:$0xff] %vm967, %v1440
        %1517 = vst.msk [vmem:[%s166 + $0x90] sm:$0xff] %vm967, %v1445
        %1518 = vst.msk [vmem:[%s166 + $0x98] sm:$0xff] %vm967, %v1448
        %1519 = vst.msk [vmem:[%s166 + $0xa0] sm:$0xff] %vm967, %v1453
        %1520 = vst.msk [vmem:[%s166 + $0xa8] sm:$0xff] %vm967, %v1456
        %1521 = vst.msk [vmem:[%s166 + $0xb0] sm:$0xff] %vm967, %v1461
        %1522 = vst.msk [vmem:[%s166 + $0xb8] sm:$0xff] %vm967, %v1464
        %1523 = vst.msk [vmem:[%s166 + $0xc0] sm:$0xff] %vm967, %v1469
        %1524 = vst.msk [vmem:[%s166 + $0xc8] sm:$0xff] %vm967, %v1472
        %1525 = vst.msk [vmem:[%s166 + $0xd0] sm:$0xff] %vm967, %v1477
        %1526 = vst.msk [vmem:[%s166 + $0xd8] sm:$0xff] %vm967, %v1480
        %1527 = vst.msk [vmem:[%s166 + $0xe0] sm:$0xff] %vm967, %v1485
        %1528 = vst.msk [vmem:[%s166 + $0xe8] sm:$0xff] %vm967, %v1488
        %1529 = vst.msk [vmem:[%s166 + $0xf0] sm:$0xff] %vm967, %v1493
        %1530 = vst.msk [vmem:[%s166 + $0xf8] sm:$0xff] %vm967, %v1496
        %s1531 = sand.u32 %s93, 1
        %s1532 = scalar_lea.sflag [#allocation3], %s1531
        %s1533 = sand.u32 %s93, 1
        %s1534 = smul.addr %s1533, 256
        %s1535 = scalar_lea.vmem [#allocation2], %s1534
        // Predicated region
        $region33: #{dcn_layer_forward.3} parent=31 // pred_check
          %p1536 = pneg %p103
        $region34: #{dcn_layer_forward.3} parent=31 // pred_check_branch
          %1538 = sbr.rel (%p1536) target = $region36
        $region35: #{dcn_layer_forward.3} parent=31 // pred_region
          %s1539 = smul.u32 32, %s17
          %s1541 = ssub.s32 4096, 4096
          %1542 = vsyncadd %s1532, %s1541
          %s1543 = smul.addr %s1539, 128
          %s1544 = scalar_lea.hbm %s3, %s1543
          %s1545 = sshll.u32 %s1535, 4
          %s1546 = int_to_ptr.vmem [resolvable:$true] %s1545
          %1551 = dma.vmem_to_hbm [thread:$0]  %s1546, 4096, %s1544, %s1532, 128, 128, 8
        $region36: #{dcn_layer_forward.3} parent=31 // pred_fallthru
          _
      $region32: #{dcn_layer_forward.3} parent=5 // pred_fallthru
        _
      %p1552 = scmp.le.s32.totalorder 2, %s12
      // Predicated region
      $region37: #{dcn_layer_forward.3} parent=5 // pred_check
        %p1553 = pneg %p1552
      $region38: #{dcn_layer_forward.3} parent=5 // pred_check_branch
        %1555 = sbr.rel (%p1553) target = $region40
      $region39: #{dcn_layer_forward.3} parent=5 // pred_region
        %s1556 = ssub.s32 %s12, 2
        // Predicated region
        $region41: #{dcn_layer_forward.3} parent=39 // pred_check
          %p1557 = pneg %p109
        $region42: #{dcn_layer_forward.3} parent=39 // pred_check_branch
          %1559 = sbr.rel (%p1557) target = $region44
        $region43: #{dcn_layer_forward.3} parent=39 // pred_region
          %s1560 = sand.u32 %s94, 1
          %s1561 = scalar_lea.sflag [#allocation3], %s1560
          %s1562 = sand.u32 %s94, 1
          %s1563 = smul.addr %s1562, 256
          %s1564 = scalar_lea.vmem [#allocation2], %s1563
          %1565 = dma.done %s1561, 4096
        $region44: #{dcn_layer_forward.3} parent=39 // pred_fallthru
          _
      $region40: #{dcn_layer_forward.3} parent=5 // pred_fallthru
        _
    $region6: #{dcn_layer_forward.3} parent=1 // loop_footer
      %s16 = sadd.s32 1, %s12
    $region7: #{dcn_layer_forward.3} parent=1 // loop_footer_branch
      %11 = sbr.rel target = $region3
    $region8: #{dcn_layer_forward.3} parent=1 // loop_exit
      _
    %1566 = vsyncpa [#allocation3], 1
    %s1567 = scalar_lea.sflag [#allocation3], 1
    %1568 = vsyncpa %s1567, 1

</llo_original>
